<compile_context>
chip_gen: v6e
topology: v6e:2x2x1
jax: 0.10.0
libtpu: 0.0.40
codegen_flags: <defaults>
</compile_context>

<pallas_src>
import functools

import jax
import jax.numpy as jnp
from jax import lax
from jax.experimental import pallas as pl
from jax.experimental.pallas import tpu as pltpu


def _round_up(n, m):
    return ((n + m - 1) // m) * m


# --------------------------------------------------------------------------
# Fused kernel, one grid step = one time chunk of T steps through ALL layers.
#   x_ref    : (T, Bp, Fmax)   time-major, zero-padded input chunk
#   wih_ref  : (L, Fmax, 4*Hp) stacked W_ih^T (per-gate column padding)
#   whh_ref  : (L, Hp,   4*Hp) stacked W_hh^T
#   b_ref    : (L, 1,    4*Hp) combined b_ih + b_hh (f32)
#   wfc_ref  : (Hp, Op)        FC weight^T
#   bfc_ref  : (1, Op)         FC bias (f32)
#   out_ref  : (T, Bp, Op)     output chunk
# Scratch (persists across grid steps):
#   h_sc, c_sc : (L, Bp, Hp)   per-layer recurrent state (carried over chunks)
#   gx_sc      : (T, Bp, 4Hp)  hoisted gate slab for the current chunk/layer
#   hseq_sc    : (T, Bp, Hp)   current chunk's layer output (next layer input)
# --------------------------------------------------------------------------
def _fused_rnn_kernel(x_ref, wih_ref, whh_ref, b_ref, wfc_ref, bfc_ref,
                      out_ref, h_sc, c_sc, gx_sc, hseq_sc, *, unroll):
    T, Bp, Fmax = x_ref.shape
    L, Hp, H4 = whh_ref.shape
    Op = wfc_ref.shape[1]
    wdt = wih_ref.dtype                      # matmul operand dtype (f32 / bf16)

    # Zero the recurrent state on the first time chunk only; it then persists
    # in VMEM scratch across the "arbitrary" time-chunk grid axis.
    @pl.when(pl.program_id(0) == 0)
    def _():
        h_sc[...] = jnp.zeros_like(h_sc)
        c_sc[...] = jnp.zeros_like(c_sc)

    prev = x_ref[...].reshape(T * Bp, Fmax)  # layer-0 input for this chunk

    for l in range(L):                       # L is static -> unrolled
        # ---- Phase 1: hoisted input projection for the whole chunk (one big
        #      MXU matmul per layer), bias folded in.  Ref slice, not value
        #      slice, for the l>0 row truncation. ----
        in_w = wih_ref[l] if l == 0 else wih_ref[l, :Hp, :]
        gx = jnp.dot(prev.astype(wdt), in_w, preferred_element_type=jnp.float32)
        gx_sc[...] = (gx + b_ref[l]).reshape(T, Bp, H4)

        whh_l = whh_ref[l]                   # (Hp, 4Hp), loop-invariant load

        # ---- Phase 2: serial recurrence over the chunk; only h @ W_hh is on
        #      the critical path, everything stays in VMEM/vregs. ----
        def step(t, carry, whh_l=whh_l, l=l):
            h = h_sc[l]
            g = gx_sc[t] + jnp.dot(h.astype(wdt), whh_l,
                                   preferred_element_type=jnp.float32)
            # Hp is a multiple of 128 -> each gate slice is vreg-aligned.
            i = jax.nn.sigmoid(g[:, 0 * Hp:1 * Hp])
            f = jax.nn.sigmoid(g[:, 1 * Hp:2 * Hp])
            gg = jnp.tanh(g[:, 2 * Hp:3 * Hp])
            o = jax.nn.sigmoid(g[:, 3 * Hp:4 * Hp])
            c_new = f * c_sc[l] + i * gg
            h_new = o * jnp.tanh(c_new)
            c_sc[l] = c_new
            h_sc[l] = h_new
            hseq_sc[t] = h_new
            return carry

        lax.fori_loop(0, T, step, 0, unroll=unroll)

        prev = hseq_sc[...].reshape(T * Bp, Hp)   # input to next layer

    # ---- FC head fused per chunk: lane-dense Op store, streamed out via the
    #      output BlockSpec (overlaps the next chunk's compute). ----
    out2d = jnp.dot(prev.astype(wdt), wfc_ref[...],
                    preferred_element_type=jnp.float32) + bfc_ref[...]
    out_ref[...] = out2d.reshape(T, Bp, Op).astype(out_ref.dtype)


def _fused_forward_pallas(x_tm, wih, whh, b, wfc, bfc, *, time_chunk):
    Sp, Bp, Fmax = x_tm.shape
    L, Hp, H4 = whh.shape
    Op = wfc.shape[1]
    T = time_chunk
    num_chunks = Sp // T

    # Partial unroll: pick a divisor of T (serial dependence -> no ILP gain
    # from full unroll, only IMEM/compile-time bloat for long sequences).
    unroll = next(u for u in (8, 4, 2, 1) if T % u == 0)

    # Explicit VMEM budget from the actual resident footprint: pipelined
    # operands assumed double-buffered, plus all scratch, plus headroom;
    # clamped to a ceiling safe on every generation (<= 100 MiB, and the small
    # shapes here stay far below v7x's 64 MiB physical VMEM).
    wsz = jnp.dtype(wih.dtype).itemsize
    operand_bytes = 2 * (
        T * Bp * Fmax * 4 + T * Bp * Op * 4
        + (L * Fmax * H4 + L * Hp * H4 + Hp * Op) * wsz
        + (L * H4 + Op) * 4)
    scratch_bytes = 4 * (2 * L * Bp * Hp + T * Bp * H4 + T * Bp * Hp)
    vmem_limit = int(min(max(operand_bytes + scratch_bytes + (8 << 20),
                             32 << 20), 100 << 20))

    kernel = functools.partial(_fused_rnn_kernel, unroll=unroll)
    return pl.pallas_call(
        kernel,
        out_shape=jax.ShapeDtypeStruct((Sp, Bp, Op), jnp.float32),
        grid_spec=pltpu.PrefetchScalarGridSpec(
            num_scalar_prefetch=0,
            grid=(num_chunks,),
            in_specs=[
                pl.BlockSpec((T, Bp, Fmax), lambda c: (c, 0, 0)),   # streamed
                pl.BlockSpec((L, Fmax, H4), lambda c: (0, 0, 0)),   # resident
                pl.BlockSpec((L, Hp, H4), lambda c: (0, 0, 0)),     # resident
                pl.BlockSpec((L, 1, H4), lambda c: (0, 0, 0)),      # resident
                pl.BlockSpec((Hp, Op), lambda c: (0, 0)),           # resident
                pl.BlockSpec((1, Op), lambda c: (0, 0)),            # resident
            ],
            out_specs=pl.BlockSpec((T, Bp, Op), lambda c: (c, 0, 0)),
            scratch_shapes=[
                pltpu.VMEM((L, Bp, Hp), jnp.float32),   # h state per layer
                pltpu.VMEM((L, Bp, Hp), jnp.float32),   # c state per layer
                pltpu.VMEM((T, Bp, H4), jnp.float32),   # chunk gate slab
                pltpu.VMEM((T, Bp, Hp), jnp.float32),   # chunk layer output
            ]),
        compiler_params=pltpu.CompilerParams(
            dimension_semantics=("arbitrary",),
            vmem_limit_bytes=vmem_limit),
    )(x_tm, wih, whh, b, wfc, bfc)


# --------------------------------------------------------------------------
# Parameter init (PyTorch-style U(-1/sqrt(H), 1/sqrt(H))) + packing/padding.
# param_dtype=jnp.bfloat16 is recommended on v6e/v7x for the matmul weights
# (biases and state stay f32); kept f32 here so the self-test is exact-ish.
# --------------------------------------------------------------------------
def init_params(key, input_size, hidden_size, output_size, num_layers,
                param_dtype=jnp.float32):
    H = hidden_size
    Hp = _round_up(H, 128)
    Fp = _round_up(input_size, 128)
    Fmax = max(Fp, Hp)
    Op = _round_up(output_size, 128)
    k = 1.0 / jnp.sqrt(jnp.float32(H))

    def pack_w(w, rows_pad):
        # w: (4H, rows_real) torch layout -> (rows_pad, 4*Hp), per-gate padded.
        rows_real = w.shape[1]
        w_t = w.T.reshape(rows_real, 4, H)
        w_t = jnp.pad(w_t, ((0, rows_pad - rows_real), (0, 0), (0, Hp - H)))
        return w_t.reshape(rows_pad, 4 * Hp)

    wih_list, whh_list, b_list, raw_lstm = [], [], [], []
    for layer in range(num_layers):
        in_sz = input_size if layer == 0 else H
        key, k1, k2, k3, k4 = jax.random.split(key, 5)
        w_ih = jax.random.uniform(k1, (4 * H, in_sz), jnp.float32, -k, k)
        w_hh = jax.random.uniform(k2, (4 * H, H), jnp.float32, -k, k)
        b_ih = jax.random.uniform(k3, (4 * H,), jnp.float32, -k, k)
        b_hh = jax.random.uniform(k4, (4 * H,), jnp.float32, -k, k)
        raw_lstm.append((w_ih, w_hh, b_ih, b_hh))

        wih_list.append(pack_w(w_ih, Fmax))
        whh_list.append(pack_w(w_hh, Hp))
        bsum = (b_ih + b_hh).reshape(4, H)
        bsum = jnp.pad(bsum, ((0, 0), (0, Hp - H))).reshape(1, 4 * Hp)
        b_list.append(bsum)

    key, k1, k2 = jax.random.split(key, 3)
    w_fc = jax.random.uniform(k1, (output_size, H), jnp.float32, -k, k)
    b_fc = jax.random.uniform(k2, (output_size,), jnp.float32, -k, k)
    wfc = jnp.pad(w_fc.T, ((0, Hp - H), (0, Op - output_size)))
    bfc = jnp.pad(b_fc.reshape(1, -1), ((0, 0), (0, Op - output_size)))

    packed = {
        "wih": jnp.stack(wih_list).astype(param_dtype),   # (L, Fmax, 4*Hp)
        "whh": jnp.stack(whh_list).astype(param_dtype),   # (L, Hp,   4*Hp)
        "b":   jnp.stack(b_list),                         # (L, 1,    4*Hp) f32
        "wfc": wfc.astype(param_dtype),                   # (Hp, Op)
        "bfc": bfc,                                       # (1, Op) f32
    }
    raw = {"lstm": raw_lstm, "fc_w": w_fc, "fc_b": b_fc}
    return packed, raw


# --------------------------------------------------------------------------
# Forward: out, (hn, cn) = lstm(x); out = fc(out)  -> returns out (B, S, O).
# --------------------------------------------------------------------------
@functools.partial(jax.jit, static_argnames=("output_size", "time_chunk"))
def rnn_model_forward(params, x, *, output_size, time_chunk=None):
    B, S, F = x.shape
    Fmax = params["wih"].shape[1]
    Bp = _round_up(B, 8)
    if time_chunk is None:
        time_chunk = max(8, 256 // Bp)       # ~256+ projection rows per chunk
    T = max(1, min(time_chunk, S))
    Sp = _round_up(S, T)
    # Layout plumbing only (tiny XLA pad+transpose): time-major, padded.
    # Trailing-time / batch / lane padding is zero-filled and never feeds back
    # into real rows/timesteps, so the math on the real slice is unchanged.
    x_tm = jnp.transpose(x.astype(jnp.float32), (1, 0, 2))
    x_tm = jnp.pad(x_tm, ((0, Sp - S), (0, Bp - B), (0, Fmax - F)))
    out_p = _fused_forward_pallas(x_tm, params["wih"], params["whh"],
                                  params["b"], params["wfc"], params["bfc"],
                                  time_chunk=T)
    out = out_p[:S, :B, :output_size]                 # (S, B, O)
    return jnp.transpose(out, (1, 0, 2))              # (B, S, O)


# Pure-JAX reference (unpadded), for a sanity check only.
def rnn_model_reference(raw, x):
    B, S, _ = x.shape
    h_seq = x
    for (w_ih, w_hh, b_ih, b_hh) in raw["lstm"]:
        H = w_hh.shape[1]
        h = jnp.zeros((B, H), jnp.float32)
        c = jnp.zeros((B, H), jnp.float32)
        outs = []
        for t in range(S):
            g = h_seq[:, t, :] @ w_ih.T + h @ w_hh.T + b_ih + b_hh
            i, f, gg, o = jnp.split(g, 4, axis=-1)
            i, f, o = jax.nn.sigmoid(i), jax.nn.sigmoid(f), jax.nn.sigmoid(o)
            gg = jnp.tanh(gg)
            c = f * c + i * gg
            h = o * jnp.tanh(c)
            outs.append(h)
        h_seq = jnp.stack(outs, axis=1)
    return h_seq @ raw["fc_w"].T + raw["fc_b"]


if __name__ == "__main__":
    input_size, hidden_size, output_size, num_layers = 16, 32, 8, 2
    batch, seq = 2, 8

    key = jax.random.PRNGKey(0)
    key, pkey, xkey = jax.random.split(key, 3)
    params, raw = init_params(pkey, input_size, hidden_size, output_size,
                              num_layers)
    x = jax.random.normal(xkey, (batch, seq, input_size), jnp.float32)

    # time_chunk=4 -> 2 grid steps: exercises streamed x/out and the
    # cross-chunk (h, c) carry in VMEM scratch.
    out = rnn_model_forward(params, x, output_size=output_size, time_chunk=4)
    jax.block_until_ready(out)
    assert out.shape == (batch, seq, output_size)

    ref = rnn_model_reference(raw, x)
    err = float(jnp.max(jnp.abs(out - ref)))
    assert jnp.allclose(out, ref, atol=2e-2, rtol=2e-2), err

    print("KERNEL_OK")
</pallas_src>

<mosaic_0001>
module attributes {stable_mosaic.version = 11 : i64} {
  func.func @_fused_rnn_kernel(%arg0: i32, %arg1: memref<4x8x128xf32, #tpu.memory_space<vmem>>, %arg2: memref<2x128x512xf32, #tpu.memory_space<vmem>>, %arg3: memref<2x128x512xf32, #tpu.memory_space<vmem>>, %arg4: memref<2x1x512xf32, #tpu.memory_space<vmem>>, %arg5: memref<128x128xf32, #tpu.memory_space<vmem>>, %arg6: memref<1x128xf32, #tpu.memory_space<vmem>>, %arg7: memref<4x8x128xf32, #tpu.memory_space<vmem>>, %arg8: memref<2x8x128xf32, #tpu.memory_space<vmem>>, %arg9: memref<2x8x128xf32, #tpu.memory_space<vmem>>, %arg10: memref<4x8x512xf32, #tpu.memory_space<vmem>>, %arg11: memref<4x8x128xf32, #tpu.memory_space<vmem>>) attributes {dimension_semantics = [#tpu.dimension_semantics<arbitrary>], iteration_bounds = array<i64: 2>, scalar_prefetch = 0 : i64, scratch_operands = 4 : i64, tpu.core_type = #tpu.core_type<tc>, window_params = [{transform_indices = @transform_0, window_bounds = array<i64: 4, 8, 128>}, {pipeline_mode = #tpu.pipeline_mode<synchronous>, transform_indices = @transform_1, window_bounds = array<i64: 2, 128, 512>}, {pipeline_mode = #tpu.pipeline_mode<synchronous>, transform_indices = @transform_2, window_bounds = array<i64: 2, 128, 512>}, {pipeline_mode = #tpu.pipeline_mode<synchronous>, transform_indices = @transform_3, window_bounds = array<i64: 2, 1, 512>}, {pipeline_mode = #tpu.pipeline_mode<synchronous>, transform_indices = @transform_4, window_bounds = array<i64: 128, 128>}, {pipeline_mode = #tpu.pipeline_mode<synchronous>, transform_indices = @transform_5, window_bounds = array<i64: 1, 128>}, {transform_indices = @transform_6, window_bounds = array<i64: 4, 8, 128>}]} {
    %c0_i32 = arith.constant 0 : i32
    %0 = arith.cmpi eq, %arg0, %c0_i32 : i32
    %1 = arith.extui %0 : i1 to i32
    %c0_i32_0 = arith.constant 0 : i32
    %2 = arith.cmpi ne, %1, %c0_i32_0 : i32
    scf.if %2 {
      %cst_207 = arith.constant 0.000000e+00 : f32
      %390 = vector.broadcast %cst_207 : f32 to vector<2x8x128xf32>
      %c0_208 = arith.constant 0 : index
      %c0_209 = arith.constant 0 : index
      %c0_210 = arith.constant 0 : index
      %391 = vector.load %arg8[%c0_208, %c0_209, %c0_210] : memref<2x8x128xf32, #tpu.memory_space<vmem>>, vector<2x8x128xf32>
      tpu.vector_store %arg8[%c0_208, %c0_209, %c0_210], %390 {strides = array<i32>} : memref<2x8x128xf32, #tpu.memory_space<vmem>>, vector<2x8x128xf32>,
      %cst_211 = arith.constant 0.000000e+00 : f32
      %392 = vector.broadcast %cst_211 : f32 to vector<2x8x128xf32>
      %c0_212 = arith.constant 0 : index
      %c0_213 = arith.constant 0 : index
      %c0_214 = arith.constant 0 : index
      %393 = vector.load %arg9[%c0_212, %c0_213, %c0_214] : memref<2x8x128xf32, #tpu.memory_space<vmem>>, vector<2x8x128xf32>
      tpu.vector_store %arg9[%c0_212, %c0_213, %c0_214], %392 {strides = array<i32>} : memref<2x8x128xf32, #tpu.memory_space<vmem>>, vector<2x8x128xf32>,
    } else {
    }
    %c0 = arith.constant 0 : index
    %c0_1 = arith.constant 0 : index
    %c0_2 = arith.constant 0 : index
    %3 = vector.load %arg1[%c0, %c0_1, %c0_2] : memref<4x8x128xf32, #tpu.memory_space<vmem>>, vector<4x8x128xf32>
    %4 = vector.shape_cast %3 : vector<4x8x128xf32> to vector<32x128xf32>
    %c0_3 = arith.constant 0 : index
    %c0_4 = arith.constant 0 : index
    %c0_5 = arith.constant 0 : index
    %5 = vector.load %arg2[%c0_3, %c0_4, %c0_5] : memref<2x128x512xf32, #tpu.memory_space<vmem>>, vector<1x128x512xf32>
    %6 = vector.shape_cast %5 : vector<1x128x512xf32> to vector<128x512xf32>
    %cst = arith.constant dense<0.000000e+00> : vector<32x512xf32>
    %7 = tpu.matmul %4, %6, %cst {dimension_numbers = #tpu.dot_dimension_numbers<[1], [0], [0], [1], [0, 0, 1, 1], [], []>} : vector<32x128xf32>, vector<128x512xf32>, vector<32x512xf32> -> vector<32x512xf32>
    %c0_6 = arith.constant 0 : index
    %c0_7 = arith.constant 0 : index
    %c0_8 = arith.constant 0 : index
    %8 = vector.load %arg4[%c0_6, %c0_7, %c0_8] : memref<2x1x512xf32, #tpu.memory_space<vmem>>, vector<1x1x512xf32>
    %9 = vector.shape_cast %8 : vector<1x1x512xf32> to vector<1x512xf32>
    %10 = vector.broadcast %9 : vector<1x512xf32> to vector<32x512xf32>
    %11 = arith.addf %7, %10 : vector<32x512xf32>
    %12 = vector.shape_cast %11 : vector<32x512xf32> to vector<4x8x512xf32>
    %c0_9 = arith.constant 0 : index
    %c0_10 = arith.constant 0 : index
    %c0_11 = arith.constant 0 : index
    %13 = vector.load %arg10[%c0_9, %c0_10, %c0_11] : memref<4x8x512xf32, #tpu.memory_space<vmem>>, vector<4x8x512xf32>
    tpu.vector_store %arg10[%c0_9, %c0_10, %c0_11], %12 {strides = array<i32>} : memref<4x8x512xf32, #tpu.memory_space<vmem>>, vector<4x8x512xf32>,
    %c0_12 = arith.constant 0 : index
    %c0_13 = arith.constant 0 : index
    %c0_14 = arith.constant 0 : index
    %14 = vector.load %arg3[%c0_12, %c0_13, %c0_14] : memref<2x128x512xf32, #tpu.memory_space<vmem>>, vector<1x128x512xf32>
    %15 = vector.shape_cast %14 : vector<1x128x512xf32> to vector<128x512xf32>
    %c0_i32_15 = arith.constant 0 : i32
    %c0_16 = arith.constant 0 : index
    %c0_17 = arith.constant 0 : index
    %c0_18 = arith.constant 0 : index
    %16 = vector.load %arg8[%c0_16, %c0_17, %c0_18] : memref<2x8x128xf32, #tpu.memory_space<vmem>>, vector<1x8x128xf32>
    %17 = vector.shape_cast %16 : vector<1x8x128xf32> to vector<8x128xf32>
    %18 = arith.index_cast %c0_i32_15 : i32 to index
    %c0_19 = arith.constant 0 : index
    %c0_20 = arith.constant 0 : index
    %19 = vector.load %arg10[%18, %c0_19, %c0_20] : memref<4x8x512xf32, #tpu.memory_space<vmem>>, vector<1x8x512xf32>
    %20 = vector.shape_cast %19 : vector<1x8x512xf32> to vector<8x512xf32>
    %cst_21 = arith.constant dense<0.000000e+00> : vector<8x512xf32>
    %21 = tpu.matmul %17, %15, %cst_21 {dimension_numbers = #tpu.dot_dimension_numbers<[1], [0], [0], [1], [0, 0, 1, 1], [], []>} : vector<8x128xf32>, vector<128x512xf32>, vector<8x512xf32> -> vector<8x512xf32>
    %22 = arith.addf %20, %21 : vector<8x512xf32>
    %23 = vector.extract_strided_slice %22 {offsets = [0, 0], sizes = [8, 128], strides = [1, 1]} : vector<8x512xf32> to vector<8x128xf32>
    %24 = arith.negf %23 : vector<8x128xf32>
    %25 = math.exp %24 : vector<8x128xf32>
    %cst_22 = arith.constant 1.000000e+00 : f32
    %26 = vector.broadcast %cst_22 : f32 to vector<8x128xf32>
    %27 = arith.addf %26, %25 : vector<8x128xf32>
    %28 = arith.divf %26, %27 : vector<8x128xf32>
    %29 = vector.extract_strided_slice %22 {offsets = [0, 128], sizes = [8, 128], strides = [1, 1]} : vector<8x512xf32> to vector<8x128xf32>
    %30 = arith.negf %29 : vector<8x128xf32>
    %31 = math.exp %30 : vector<8x128xf32>
    %cst_23 = arith.constant 1.000000e+00 : f32
    %32 = vector.broadcast %cst_23 : f32 to vector<8x128xf32>
    %33 = arith.addf %32, %31 : vector<8x128xf32>
    %34 = arith.divf %32, %33 : vector<8x128xf32>
    %35 = vector.extract_strided_slice %22 {offsets = [0, 256], sizes = [8, 128], strides = [1, 1]} : vector<8x512xf32> to vector<8x128xf32>
    %36 = math.tanh %35 : vector<8x128xf32>
    %37 = vector.extract_strided_slice %22 {offsets = [0, 384], sizes = [8, 128], strides = [1, 1]} : vector<8x512xf32> to vector<8x128xf32>
    %38 = arith.negf %37 : vector<8x128xf32>
    %39 = math.exp %38 : vector<8x128xf32>
    %cst_24 = arith.constant 1.000000e+00 : f32
    %40 = vector.broadcast %cst_24 : f32 to vector<8x128xf32>
    %41 = arith.addf %40, %39 : vector<8x128xf32>
    %42 = arith.divf %40, %41 : vector<8x128xf32>
    %c0_25 = arith.constant 0 : index
    %c0_26 = arith.constant 0 : index
    %c0_27 = arith.constant 0 : index
    %43 = vector.load %arg9[%c0_25, %c0_26, %c0_27] : memref<2x8x128xf32, #tpu.memory_space<vmem>>, vector<1x8x128xf32>
    %44 = vector.shape_cast %43 : vector<1x8x128xf32> to vector<8x128xf32>
    %45 = arith.mulf %34, %44 : vector<8x128xf32>
    %46 = arith.mulf %28, %36 : vector<8x128xf32>
    %47 = arith.addf %45, %46 : vector<8x128xf32>
    %48 = math.tanh %47 : vector<8x128xf32>
    %49 = arith.mulf %42, %48 : vector<8x128xf32>
    %c0_28 = arith.constant 0 : index
    %c0_29 = arith.constant 0 : index
    %c0_30 = arith.constant 0 : index
    %50 = vector.load %arg9[%c0_28, %c0_29, %c0_30] : memref<2x8x128xf32, #tpu.memory_space<vmem>>, vector<1x8x128xf32>
    %51 = vector.shape_cast %50 : vector<1x8x128xf32> to vector<8x128xf32>
    %52 = vector.shape_cast %47 : vector<8x128xf32> to vector<1x8x128xf32>
    tpu.vector_store %arg9[%c0_28, %c0_29, %c0_30], %52 {strides = array<i32>} : memref<2x8x128xf32, #tpu.memory_space<vmem>>, vector<1x8x128xf32>,
    %c0_31 = arith.constant 0 : index
    %c0_32 = arith.constant 0 : index
    %c0_33 = arith.constant 0 : index
    %53 = vector.load %arg8[%c0_31, %c0_32, %c0_33] : memref<2x8x128xf32, #tpu.memory_space<vmem>>, vector<1x8x128xf32>
    %54 = vector.shape_cast %53 : vector<1x8x128xf32> to vector<8x128xf32>
    %55 = vector.shape_cast %49 : vector<8x128xf32> to vector<1x8x128xf32>
    tpu.vector_store %arg8[%c0_31, %c0_32, %c0_33], %55 {strides = array<i32>} : memref<2x8x128xf32, #tpu.memory_space<vmem>>, vector<1x8x128xf32>,
    %56 = arith.index_cast %c0_i32_15 : i32 to index
    %c0_34 = arith.constant 0 : index
    %c0_35 = arith.constant 0 : index
    %57 = vector.load %arg11[%56, %c0_34, %c0_35] : memref<4x8x128xf32, #tpu.memory_space<vmem>>, vector<1x8x128xf32>
    %58 = vector.shape_cast %57 : vector<1x8x128xf32> to vector<8x128xf32>
    %59 = vector.shape_cast %49 : vector<8x128xf32> to vector<1x8x128xf32>
    tpu.vector_store %arg11[%56, %c0_34, %c0_35], %59 {strides = array<i32>} : memref<4x8x128xf32, #tpu.memory_space<vmem>>, vector<1x8x128xf32>,
    %c1_i32 = arith.constant 1 : i32
    %c0_36 = arith.constant 0 : index
    %c0_37 = arith.constant 0 : index
    %c0_38 = arith.constant 0 : index
    %60 = vector.load %arg8[%c0_36, %c0_37, %c0_38] : memref<2x8x128xf32, #tpu.memory_space<vmem>>, vector<1x8x128xf32>
    %61 = vector.shape_cast %60 : vector<1x8x128xf32> to vector<8x128xf32>
    %62 = arith.index_cast %c1_i32 : i32 to index
    %c0_39 = arith.constant 0 : index
    %c0_40 = arith.constant 0 : index
    %63 = vector.load %arg10[%62, %c0_39, %c0_40] : memref<4x8x512xf32, #tpu.memory_space<vmem>>, vector<1x8x512xf32>
    %64 = vector.shape_cast %63 : vector<1x8x512xf32> to vector<8x512xf32>
    %cst_41 = arith.constant dense<0.000000e+00> : vector<8x512xf32>
    %65 = tpu.matmul %61, %15, %cst_41 {dimension_numbers = #tpu.dot_dimension_numbers<[1], [0], [0], [1], [0, 0, 1, 1], [], []>} : vector<8x128xf32>, vector<128x512xf32>, vector<8x512xf32> -> vector<8x512xf32>
    %66 = arith.addf %64, %65 : vector<8x512xf32>
    %67 = vector.extract_strided_slice %66 {offsets = [0, 0], sizes = [8, 128], strides = [1, 1]} : vector<8x512xf32> to vector<8x128xf32>
    %68 = arith.negf %67 : vector<8x128xf32>
    %69 = math.exp %68 : vector<8x128xf32>
    %cst_42 = arith.constant 1.000000e+00 : f32
    %70 = vector.broadcast %cst_42 : f32 to vector<8x128xf32>
    %71 = arith.addf %70, %69 : vector<8x128xf32>
    %72 = arith.divf %70, %71 : vector<8x128xf32>
    %73 = vector.extract_strided_slice %66 {offsets = [0, 128], sizes = [8, 128], strides = [1, 1]} : vector<8x512xf32> to vector<8x128xf32>
    %74 = arith.negf %73 : vector<8x128xf32>
    %75 = math.exp %74 : vector<8x128xf32>
    %cst_43 = arith.constant 1.000000e+00 : f32
    %76 = vector.broadcast %cst_43 : f32 to vector<8x128xf32>
    %77 = arith.addf %76, %75 : vector<8x128xf32>
    %78 = arith.divf %76, %77 : vector<8x128xf32>
    %79 = vector.extract_strided_slice %66 {offsets = [0, 256], sizes = [8, 128], strides = [1, 1]} : vector<8x512xf32> to vector<8x128xf32>
    %80 = math.tanh %79 : vector<8x128xf32>
    %81 = vector.extract_strided_slice %66 {offsets = [0, 384], sizes = [8, 128], strides = [1, 1]} : vector<8x512xf32> to vector<8x128xf32>
    %82 = arith.negf %81 : vector<8x128xf32>
    %83 = math.exp %82 : vector<8x128xf32>
    %cst_44 = arith.constant 1.000000e+00 : f32
    %84 = vector.broadcast %cst_44 : f32 to vector<8x128xf32>
    %85 = arith.addf %84, %83 : vector<8x128xf32>
    %86 = arith.divf %84, %85 : vector<8x128xf32>
    %c0_45 = arith.constant 0 : index
    %c0_46 = arith.constant 0 : index
    %c0_47 = arith.constant 0 : index
    %87 = vector.load %arg9[%c0_45, %c0_46, %c0_47] : memref<2x8x128xf32, #tpu.memory_space<vmem>>, vector<1x8x128xf32>
    %88 = vector.shape_cast %87 : vector<1x8x128xf32> to vector<8x128xf32>
    %89 = arith.mulf %78, %88 : vector<8x128xf32>
    %90 = arith.mulf %72, %80 : vector<8x128xf32>
    %91 = arith.addf %89, %90 : vector<8x128xf32>
    %92 = math.tanh %91 : vector<8x128xf32>
    %93 = arith.mulf %86, %92 : vector<8x128xf32>
    %c0_48 = arith.constant 0 : index
    %c0_49 = arith.constant 0 : index
    %c0_50 = arith.constant 0 : index
    %94 = vector.load %arg9[%c0_48, %c0_49, %c0_50] : memref<2x8x128xf32, #tpu.memory_space<vmem>>, vector<1x8x128xf32>
    %95 = vector.shape_cast %94 : vector<1x8x128xf32> to vector<8x128xf32>
    %96 = vector.shape_cast %91 : vector<8x128xf32> to vector<1x8x128xf32>
    tpu.vector_store %arg9[%c0_48, %c0_49, %c0_50], %96 {strides = array<i32>} : memref<2x8x128xf32, #tpu.memory_space<vmem>>, vector<1x8x128xf32>,
    %c0_51 = arith.constant 0 : index
    %c0_52 = arith.constant 0 : index
    %c0_53 = arith.constant 0 : index
    %97 = vector.load %arg8[%c0_51, %c0_52, %c0_53] : memref<2x8x128xf32, #tpu.memory_space<vmem>>, vector<1x8x128xf32>
    %98 = vector.shape_cast %97 : vector<1x8x128xf32> to vector<8x128xf32>
    %99 = vector.shape_cast %93 : vector<8x128xf32> to vector<1x8x128xf32>
    tpu.vector_store %arg8[%c0_51, %c0_52, %c0_53], %99 {strides = array<i32>} : memref<2x8x128xf32, #tpu.memory_space<vmem>>, vector<1x8x128xf32>,
    %100 = arith.index_cast %c1_i32 : i32 to index
    %c0_54 = arith.constant 0 : index
    %c0_55 = arith.constant 0 : index
    %101 = vector.load %arg11[%100, %c0_54, %c0_55] : memref<4x8x128xf32, #tpu.memory_space<vmem>>, vector<1x8x128xf32>
    %102 = vector.shape_cast %101 : vector<1x8x128xf32> to vector<8x128xf32>
    %103 = vector.shape_cast %93 : vector<8x128xf32> to vector<1x8x128xf32>
    tpu.vector_store %arg11[%100, %c0_54, %c0_55], %103 {strides = array<i32>} : memref<4x8x128xf32, #tpu.memory_space<vmem>>, vector<1x8x128xf32>,
    %c2_i32 = arith.constant 2 : i32
    %c0_56 = arith.constant 0 : index
    %c0_57 = arith.constant 0 : index
    %c0_58 = arith.constant 0 : index
    %104 = vector.load %arg8[%c0_56, %c0_57, %c0_58] : memref<2x8x128xf32, #tpu.memory_space<vmem>>, vector<1x8x128xf32>
    %105 = vector.shape_cast %104 : vector<1x8x128xf32> to vector<8x128xf32>
    %106 = arith.index_cast %c2_i32 : i32 to index
    %c0_59 = arith.constant 0 : index
    %c0_60 = arith.constant 0 : index
    %107 = vector.load %arg10[%106, %c0_59, %c0_60] : memref<4x8x512xf32, #tpu.memory_space<vmem>>, vector<1x8x512xf32>
    %108 = vector.shape_cast %107 : vector<1x8x512xf32> to vector<8x512xf32>
    %cst_61 = arith.constant dense<0.000000e+00> : vector<8x512xf32>
    %109 = tpu.matmul %105, %15, %cst_61 {dimension_numbers = #tpu.dot_dimension_numbers<[1], [0], [0], [1], [0, 0, 1, 1], [], []>} : vector<8x128xf32>, vector<128x512xf32>, vector<8x512xf32> -> vector<8x512xf32>
    %110 = arith.addf %108, %109 : vector<8x512xf32>
    %111 = vector.extract_strided_slice %110 {offsets = [0, 0], sizes = [8, 128], strides = [1, 1]} : vector<8x512xf32> to vector<8x128xf32>
    %112 = arith.negf %111 : vector<8x128xf32>
    %113 = math.exp %112 : vector<8x128xf32>
    %cst_62 = arith.constant 1.000000e+00 : f32
    %114 = vector.broadcast %cst_62 : f32 to vector<8x128xf32>
    %115 = arith.addf %114, %113 : vector<8x128xf32>
    %116 = arith.divf %114, %115 : vector<8x128xf32>
    %117 = vector.extract_strided_slice %110 {offsets = [0, 128], sizes = [8, 128], strides = [1, 1]} : vector<8x512xf32> to vector<8x128xf32>
    %118 = arith.negf %117 : vector<8x128xf32>
    %119 = math.exp %118 : vector<8x128xf32>
    %cst_63 = arith.constant 1.000000e+00 : f32
    %120 = vector.broadcast %cst_63 : f32 to vector<8x128xf32>
    %121 = arith.addf %120, %119 : vector<8x128xf32>
    %122 = arith.divf %120, %121 : vector<8x128xf32>
    %123 = vector.extract_strided_slice %110 {offsets = [0, 256], sizes = [8, 128], strides = [1, 1]} : vector<8x512xf32> to vector<8x128xf32>
    %124 = math.tanh %123 : vector<8x128xf32>
    %125 = vector.extract_strided_slice %110 {offsets = [0, 384], sizes = [8, 128], strides = [1, 1]} : vector<8x512xf32> to vector<8x128xf32>
    %126 = arith.negf %125 : vector<8x128xf32>
    %127 = math.exp %126 : vector<8x128xf32>
    %cst_64 = arith.constant 1.000000e+00 : f32
    %128 = vector.broadcast %cst_64 : f32 to vector<8x128xf32>
    %129 = arith.addf %128, %127 : vector<8x128xf32>
    %130 = arith.divf %128, %129 : vector<8x128xf32>
    %c0_65 = arith.constant 0 : index
    %c0_66 = arith.constant 0 : index
    %c0_67 = arith.constant 0 : index
    %131 = vector.load %arg9[%c0_65, %c0_66, %c0_67] : memref<2x8x128xf32, #tpu.memory_space<vmem>>, vector<1x8x128xf32>
    %132 = vector.shape_cast %131 : vector<1x8x128xf32> to vector<8x128xf32>
    %133 = arith.mulf %122, %132 : vector<8x128xf32>
    %134 = arith.mulf %116, %124 : vector<8x128xf32>
    %135 = arith.addf %133, %134 : vector<8x128xf32>
    %136 = math.tanh %135 : vector<8x128xf32>
    %137 = arith.mulf %130, %136 : vector<8x128xf32>
    %c0_68 = arith.constant 0 : index
    %c0_69 = arith.constant 0 : index
    %c0_70 = arith.constant 0 : index
    %138 = vector.load %arg9[%c0_68, %c0_69, %c0_70] : memref<2x8x128xf32, #tpu.memory_space<vmem>>, vector<1x8x128xf32>
    %139 = vector.shape_cast %138 : vector<1x8x128xf32> to vector<8x128xf32>
    %140 = vector.shape_cast %135 : vector<8x128xf32> to vector<1x8x128xf32>
    tpu.vector_store %arg9[%c0_68, %c0_69, %c0_70], %140 {strides = array<i32>} : memref<2x8x128xf32, #tpu.memory_space<vmem>>, vector<1x8x128xf32>,
    %c0_71 = arith.constant 0 : index
    %c0_72 = arith.constant 0 : index
    %c0_73 = arith.constant 0 : index
    %141 = vector.load %arg8[%c0_71, %c0_72, %c0_73] : memref<2x8x128xf32, #tpu.memory_space<vmem>>, vector<1x8x128xf32>
    %142 = vector.shape_cast %141 : vector<1x8x128xf32> to vector<8x128xf32>
    %143 = vector.shape_cast %137 : vector<8x128xf32> to vector<1x8x128xf32>
    tpu.vector_store %arg8[%c0_71, %c0_72, %c0_73], %143 {strides = array<i32>} : memref<2x8x128xf32, #tpu.memory_space<vmem>>, vector<1x8x128xf32>,
    %144 = arith.index_cast %c2_i32 : i32 to index
    %c0_74 = arith.constant 0 : index
    %c0_75 = arith.constant 0 : index
    %145 = vector.load %arg11[%144, %c0_74, %c0_75] : memref<4x8x128xf32, #tpu.memory_space<vmem>>, vector<1x8x128xf32>
    %146 = vector.shape_cast %145 : vector<1x8x128xf32> to vector<8x128xf32>
    %147 = vector.shape_cast %137 : vector<8x128xf32> to vector<1x8x128xf32>
    tpu.vector_store %arg11[%144, %c0_74, %c0_75], %147 {strides = array<i32>} : memref<4x8x128xf32, #tpu.memory_space<vmem>>, vector<1x8x128xf32>,
    %c3_i32 = arith.constant 3 : i32
    %c0_76 = arith.constant 0 : index
    %c0_77 = arith.constant 0 : index
    %c0_78 = arith.constant 0 : index
    %148 = vector.load %arg8[%c0_76, %c0_77, %c0_78] : memref<2x8x128xf32, #tpu.memory_space<vmem>>, vector<1x8x128xf32>
    %149 = vector.shape_cast %148 : vector<1x8x128xf32> to vector<8x128xf32>
    %150 = arith.index_cast %c3_i32 : i32 to index
    %c0_79 = arith.constant 0 : index
    %c0_80 = arith.constant 0 : index
    %151 = vector.load %arg10[%150, %c0_79, %c0_80] : memref<4x8x512xf32, #tpu.memory_space<vmem>>, vector<1x8x512xf32>
    %152 = vector.shape_cast %151 : vector<1x8x512xf32> to vector<8x512xf32>
    %cst_81 = arith.constant dense<0.000000e+00> : vector<8x512xf32>
    %153 = tpu.matmul %149, %15, %cst_81 {dimension_numbers = #tpu.dot_dimension_numbers<[1], [0], [0], [1], [0, 0, 1, 1], [], []>} : vector<8x128xf32>, vector<128x512xf32>, vector<8x512xf32> -> vector<8x512xf32>
    %154 = arith.addf %152, %153 : vector<8x512xf32>
    %155 = vector.extract_strided_slice %154 {offsets = [0, 0], sizes = [8, 128], strides = [1, 1]} : vector<8x512xf32> to vector<8x128xf32>
    %156 = arith.negf %155 : vector<8x128xf32>
    %157 = math.exp %156 : vector<8x128xf32>
    %cst_82 = arith.constant 1.000000e+00 : f32
    %158 = vector.broadcast %cst_82 : f32 to vector<8x128xf32>
    %159 = arith.addf %158, %157 : vector<8x128xf32>
    %160 = arith.divf %158, %159 : vector<8x128xf32>
    %161 = vector.extract_strided_slice %154 {offsets = [0, 128], sizes = [8, 128], strides = [1, 1]} : vector<8x512xf32> to vector<8x128xf32>
    %162 = arith.negf %161 : vector<8x128xf32>
    %163 = math.exp %162 : vector<8x128xf32>
    %cst_83 = arith.constant 1.000000e+00 : f32
    %164 = vector.broadcast %cst_83 : f32 to vector<8x128xf32>
    %165 = arith.addf %164, %163 : vector<8x128xf32>
    %166 = arith.divf %164, %165 : vector<8x128xf32>
    %167 = vector.extract_strided_slice %154 {offsets = [0, 256], sizes = [8, 128], strides = [1, 1]} : vector<8x512xf32> to vector<8x128xf32>
    %168 = math.tanh %167 : vector<8x128xf32>
    %169 = vector.extract_strided_slice %154 {offsets = [0, 384], sizes = [8, 128], strides = [1, 1]} : vector<8x512xf32> to vector<8x128xf32>
    %170 = arith.negf %169 : vector<8x128xf32>
    %171 = math.exp %170 : vector<8x128xf32>
    %cst_84 = arith.constant 1.000000e+00 : f32
    %172 = vector.broadcast %cst_84 : f32 to vector<8x128xf32>
    %173 = arith.addf %172, %171 : vector<8x128xf32>
    %174 = arith.divf %172, %173 : vector<8x128xf32>
    %c0_85 = arith.constant 0 : index
    %c0_86 = arith.constant 0 : index
    %c0_87 = arith.constant 0 : index
    %175 = vector.load %arg9[%c0_85, %c0_86, %c0_87] : memref<2x8x128xf32, #tpu.memory_space<vmem>>, vector<1x8x128xf32>
    %176 = vector.shape_cast %175 : vector<1x8x128xf32> to vector<8x128xf32>
    %177 = arith.mulf %166, %176 : vector<8x128xf32>
    %178 = arith.mulf %160, %168 : vector<8x128xf32>
    %179 = arith.addf %177, %178 : vector<8x128xf32>
    %180 = math.tanh %179 : vector<8x128xf32>
    %181 = arith.mulf %174, %180 : vector<8x128xf32>
    %c0_88 = arith.constant 0 : index
    %c0_89 = arith.constant 0 : index
    %c0_90 = arith.constant 0 : index
    %182 = vector.load %arg9[%c0_88, %c0_89, %c0_90] : memref<2x8x128xf32, #tpu.memory_space<vmem>>, vector<1x8x128xf32>
    %183 = vector.shape_cast %182 : vector<1x8x128xf32> to vector<8x128xf32>
    %184 = vector.shape_cast %179 : vector<8x128xf32> to vector<1x8x128xf32>
    tpu.vector_store %arg9[%c0_88, %c0_89, %c0_90], %184 {strides = array<i32>} : memref<2x8x128xf32, #tpu.memory_space<vmem>>, vector<1x8x128xf32>,
    %c0_91 = arith.constant 0 : index
    %c0_92 = arith.constant 0 : index
    %c0_93 = arith.constant 0 : index
    %185 = vector.load %arg8[%c0_91, %c0_92, %c0_93] : memref<2x8x128xf32, #tpu.memory_space<vmem>>, vector<1x8x128xf32>
    %186 = vector.shape_cast %185 : vector<1x8x128xf32> to vector<8x128xf32>
    %187 = vector.shape_cast %181 : vector<8x128xf32> to vector<1x8x128xf32>
    tpu.vector_store %arg8[%c0_91, %c0_92, %c0_93], %187 {strides = array<i32>} : memref<2x8x128xf32, #tpu.memory_space<vmem>>, vector<1x8x128xf32>,
    %188 = arith.index_cast %c3_i32 : i32 to index
    %c0_94 = arith.constant 0 : index
    %c0_95 = arith.constant 0 : index
    %189 = vector.load %arg11[%188, %c0_94, %c0_95] : memref<4x8x128xf32, #tpu.memory_space<vmem>>, vector<1x8x128xf32>
    %190 = vector.shape_cast %189 : vector<1x8x128xf32> to vector<8x128xf32>
    %191 = vector.shape_cast %181 : vector<8x128xf32> to vector<1x8x128xf32>
    tpu.vector_store %arg11[%188, %c0_94, %c0_95], %191 {strides = array<i32>} : memref<4x8x128xf32, #tpu.memory_space<vmem>>, vector<1x8x128xf32>,
    %c4_i32 = arith.constant 4 : i32
    %c0_96 = arith.constant 0 : index
    %c0_97 = arith.constant 0 : index
    %c0_98 = arith.constant 0 : index
    %192 = vector.load %arg11[%c0_96, %c0_97, %c0_98] : memref<4x8x128xf32, #tpu.memory_space<vmem>>, vector<4x8x128xf32>
    %193 = vector.shape_cast %192 : vector<4x8x128xf32> to vector<32x128xf32>
    %c1 = arith.constant 1 : index
    %c0_99 = arith.constant 0 : index
    %c0_100 = arith.constant 0 : index
    %194 = vector.load %arg2[%c1, %c0_99, %c0_100] : memref<2x128x512xf32, #tpu.memory_space<vmem>>, vector<1x128x512xf32>
    %195 = vector.shape_cast %194 : vector<1x128x512xf32> to vector<128x512xf32>
    %cst_101 = arith.constant dense<0.000000e+00> : vector<32x512xf32>
    %196 = tpu.matmul %193, %195, %cst_101 {dimension_numbers = #tpu.dot_dimension_numbers<[1], [0], [0], [1], [0, 0, 1, 1], [], []>} : vector<32x128xf32>, vector<128x512xf32>, vector<32x512xf32> -> vector<32x512xf32>
    %c1_102 = arith.constant 1 : index
    %c0_103 = arith.constant 0 : index
    %c0_104 = arith.constant 0 : index
    %197 = vector.load %arg4[%c1_102, %c0_103, %c0_104] : memref<2x1x512xf32, #tpu.memory_space<vmem>>, vector<1x1x512xf32>
    %198 = vector.shape_cast %197 : vector<1x1x512xf32> to vector<1x512xf32>
    %199 = vector.broadcast %198 : vector<1x512xf32> to vector<32x512xf32>
    %200 = arith.addf %196, %199 : vector<32x512xf32>
    %201 = vector.shape_cast %200 : vector<32x512xf32> to vector<4x8x512xf32>
    %c0_105 = arith.constant 0 : index
    %c0_106 = arith.constant 0 : index
    %c0_107 = arith.constant 0 : index
    %202 = vector.load %arg10[%c0_105, %c0_106, %c0_107] : memref<4x8x512xf32, #tpu.memory_space<vmem>>, vector<4x8x512xf32>
    tpu.vector_store %arg10[%c0_105, %c0_106, %c0_107], %201 {strides = array<i32>} : memref<4x8x512xf32, #tpu.memory_space<vmem>>, vector<4x8x512xf32>,
    %c1_108 = arith.constant 1 : index
    %c0_109 = arith.constant 0 : index
    %c0_110 = arith.constant 0 : index
    %203 = vector.load %arg3[%c1_108, %c0_109, %c0_110] : memref<2x128x512xf32, #tpu.memory_space<vmem>>, vector<1x128x512xf32>
    %204 = vector.shape_cast %203 : vector<1x128x512xf32> to vector<128x512xf32>
    %c0_i32_111 = arith.constant 0 : i32
    %c1_112 = arith.constant 1 : index
    %c0_113 = arith.constant 0 : index
    %c0_114 = arith.constant 0 : index
    %205 = vector.load %arg8[%c1_112, %c0_113, %c0_114] : memref<2x8x128xf32, #tpu.memory_space<vmem>>, vector<1x8x128xf32>
    %206 = vector.shape_cast %205 : vector<1x8x128xf32> to vector<8x128xf32>
    %207 = arith.index_cast %c0_i32_111 : i32 to index
    %c0_115 = arith.constant 0 : index
    %c0_116 = arith.constant 0 : index
    %208 = vector.load %arg10[%207, %c0_115, %c0_116] : memref<4x8x512xf32, #tpu.memory_space<vmem>>, vector<1x8x512xf32>
    %209 = vector.shape_cast %208 : vector<1x8x512xf32> to vector<8x512xf32>
    %cst_117 = arith.constant dense<0.000000e+00> : vector<8x512xf32>
    %210 = tpu.matmul %206, %204, %cst_117 {dimension_numbers = #tpu.dot_dimension_numbers<[1], [0], [0], [1], [0, 0, 1, 1], [], []>} : vector<8x128xf32>, vector<128x512xf32>, vector<8x512xf32> -> vector<8x512xf32>
    %211 = arith.addf %209, %210 : vector<8x512xf32>
    %212 = vector.extract_strided_slice %211 {offsets = [0, 0], sizes = [8, 128], strides = [1, 1]} : vector<8x512xf32> to vector<8x128xf32>
    %213 = arith.negf %212 : vector<8x128xf32>
    %214 = math.exp %213 : vector<8x128xf32>
    %cst_118 = arith.constant 1.000000e+00 : f32
    %215 = vector.broadcast %cst_118 : f32 to vector<8x128xf32>
    %216 = arith.addf %215, %214 : vector<8x128xf32>
    %217 = arith.divf %215, %216 : vector<8x128xf32>
    %218 = vector.extract_strided_slice %211 {offsets = [0, 128], sizes = [8, 128], strides = [1, 1]} : vector<8x512xf32> to vector<8x128xf32>
    %219 = arith.negf %218 : vector<8x128xf32>
    %220 = math.exp %219 : vector<8x128xf32>
    %cst_119 = arith.constant 1.000000e+00 : f32
    %221 = vector.broadcast %cst_119 : f32 to vector<8x128xf32>
    %222 = arith.addf %221, %220 : vector<8x128xf32>
    %223 = arith.divf %221, %222 : vector<8x128xf32>
    %224 = vector.extract_strided_slice %211 {offsets = [0, 256], sizes = [8, 128], strides = [1, 1]} : vector<8x512xf32> to vector<8x128xf32>
    %225 = math.tanh %224 : vector<8x128xf32>
    %226 = vector.extract_strided_slice %211 {offsets = [0, 384], sizes = [8, 128], strides = [1, 1]} : vector<8x512xf32> to vector<8x128xf32>
    %227 = arith.negf %226 : vector<8x128xf32>
    %228 = math.exp %227 : vector<8x128xf32>
    %cst_120 = arith.constant 1.000000e+00 : f32
    %229 = vector.broadcast %cst_120 : f32 to vector<8x128xf32>
    %230 = arith.addf %229, %228 : vector<8x128xf32>
    %231 = arith.divf %229, %230 : vector<8x128xf32>
    %c1_121 = arith.constant 1 : index
    %c0_122 = arith.constant 0 : index
    %c0_123 = arith.constant 0 : index
    %232 = vector.load %arg9[%c1_121, %c0_122, %c0_123] : memref<2x8x128xf32, #tpu.memory_space<vmem>>, vector<1x8x128xf32>
    %233 = vector.shape_cast %232 : vector<1x8x128xf32> to vector<8x128xf32>
    %234 = arith.mulf %223, %233 : vector<8x128xf32>
    %235 = arith.mulf %217, %225 : vector<8x128xf32>
    %236 = arith.addf %234, %235 : vector<8x128xf32>
    %237 = math.tanh %236 : vector<8x128xf32>
    %238 = arith.mulf %231, %237 : vector<8x128xf32>
    %c1_124 = arith.constant 1 : index
    %c0_125 = arith.constant 0 : index
    %c0_126 = arith.constant 0 : index
    %239 = vector.load %arg9[%c1_124, %c0_125, %c0_126] : memref<2x8x128xf32, #tpu.memory_space<vmem>>, vector<1x8x128xf32>
    %240 = vector.shape_cast %239 : vector<1x8x128xf32> to vector<8x128xf32>
    %241 = vector.shape_cast %236 : vector<8x128xf32> to vector<1x8x128xf32>
    tpu.vector_store %arg9[%c1_124, %c0_125, %c0_126], %241 {strides = array<i32>} : memref<2x8x128xf32, #tpu.memory_space<vmem>>, vector<1x8x128xf32>,
    %c1_127 = arith.constant 1 : index
    %c0_128 = arith.constant 0 : index
    %c0_129 = arith.constant 0 : index
    %242 = vector.load %arg8[%c1_127, %c0_128, %c0_129] : memref<2x8x128xf32, #tpu.memory_space<vmem>>, vector<1x8x128xf32>
    %243 = vector.shape_cast %242 : vector<1x8x128xf32> to vector<8x128xf32>
    %244 = vector.shape_cast %238 : vector<8x128xf32> to vector<1x8x128xf32>
    tpu.vector_store %arg8[%c1_127, %c0_128, %c0_129], %244 {strides = array<i32>} : memref<2x8x128xf32, #tpu.memory_space<vmem>>, vector<1x8x128xf32>,
    %245 = arith.index_cast %c0_i32_111 : i32 to index
    %c0_130 = arith.constant 0 : index
    %c0_131 = arith.constant 0 : index
    %246 = vector.load %arg11[%245, %c0_130, %c0_131] : memref<4x8x128xf32, #tpu.memory_space<vmem>>, vector<1x8x128xf32>
    %247 = vector.shape_cast %246 : vector<1x8x128xf32> to vector<8x128xf32>
    %248 = vector.shape_cast %238 : vector<8x128xf32> to vector<1x8x128xf32>
    tpu.vector_store %arg11[%245, %c0_130, %c0_131], %248 {strides = array<i32>} : memref<4x8x128xf32, #tpu.memory_space<vmem>>, vector<1x8x128xf32>,
    %c1_i32_132 = arith.constant 1 : i32
    %c1_133 = arith.constant 1 : index
    %c0_134 = arith.constant 0 : index
    %c0_135 = arith.constant 0 : index
    %249 = vector.load %arg8[%c1_133, %c0_134, %c0_135] : memref<2x8x128xf32, #tpu.memory_space<vmem>>, vector<1x8x128xf32>
    %250 = vector.shape_cast %249 : vector<1x8x128xf32> to vector<8x128xf32>
    %251 = arith.index_cast %c1_i32_132 : i32 to index
    %c0_136 = arith.constant 0 : index
    %c0_137 = arith.constant 0 : index
    %252 = vector.load %arg10[%251, %c0_136, %c0_137] : memref<4x8x512xf32, #tpu.memory_space<vmem>>, vector<1x8x512xf32>
    %253 = vector.shape_cast %252 : vector<1x8x512xf32> to vector<8x512xf32>
    %cst_138 = arith.constant dense<0.000000e+00> : vector<8x512xf32>
    %254 = tpu.matmul %250, %204, %cst_138 {dimension_numbers = #tpu.dot_dimension_numbers<[1], [0], [0], [1], [0, 0, 1, 1], [], []>} : vector<8x128xf32>, vector<128x512xf32>, vector<8x512xf32> -> vector<8x512xf32>
    %255 = arith.addf %253, %254 : vector<8x512xf32>
    %256 = vector.extract_strided_slice %255 {offsets = [0, 0], sizes = [8, 128], strides = [1, 1]} : vector<8x512xf32> to vector<8x128xf32>
    %257 = arith.negf %256 : vector<8x128xf32>
    %258 = math.exp %257 : vector<8x128xf32>
    %cst_139 = arith.constant 1.000000e+00 : f32
    %259 = vector.broadcast %cst_139 : f32 to vector<8x128xf32>
    %260 = arith.addf %259, %258 : vector<8x128xf32>
    %261 = arith.divf %259, %260 : vector<8x128xf32>
    %262 = vector.extract_strided_slice %255 {offsets = [0, 128], sizes = [8, 128], strides = [1, 1]} : vector<8x512xf32> to vector<8x128xf32>
    %263 = arith.negf %262 : vector<8x128xf32>
    %264 = math.exp %263 : vector<8x128xf32>
    %cst_140 = arith.constant 1.000000e+00 : f32
    %265 = vector.broadcast %cst_140 : f32 to vector<8x128xf32>
    %266 = arith.addf %265, %264 : vector<8x128xf32>
    %267 = arith.divf %265, %266 : vector<8x128xf32>
    %268 = vector.extract_strided_slice %255 {offsets = [0, 256], sizes = [8, 128], strides = [1, 1]} : vector<8x512xf32> to vector<8x128xf32>
    %269 = math.tanh %268 : vector<8x128xf32>
    %270 = vector.extract_strided_slice %255 {offsets = [0, 384], sizes = [8, 128], strides = [1, 1]} : vector<8x512xf32> to vector<8x128xf32>
    %271 = arith.negf %270 : vector<8x128xf32>
    %272 = math.exp %271 : vector<8x128xf32>
    %cst_141 = arith.constant 1.000000e+00 : f32
    %273 = vector.broadcast %cst_141 : f32 to vector<8x128xf32>
    %274 = arith.addf %273, %272 : vector<8x128xf32>
    %275 = arith.divf %273, %274 : vector<8x128xf32>
    %c1_142 = arith.constant 1 : index
    %c0_143 = arith.constant 0 : index
    %c0_144 = arith.constant 0 : index
    %276 = vector.load %arg9[%c1_142, %c0_143, %c0_144] : memref<2x8x128xf32, #tpu.memory_space<vmem>>, vector<1x8x128xf32>
    %277 = vector.shape_cast %276 : vector<1x8x128xf32> to vector<8x128xf32>
    %278 = arith.mulf %267, %277 : vector<8x128xf32>
    %279 = arith.mulf %261, %269 : vector<8x128xf32>
    %280 = arith.addf %278, %279 : vector<8x128xf32>
    %281 = math.tanh %280 : vector<8x128xf32>
    %282 = arith.mulf %275, %281 : vector<8x128xf32>
    %c1_145 = arith.constant 1 : index
    %c0_146 = arith.constant 0 : index
    %c0_147 = arith.constant 0 : index
    %283 = vector.load %arg9[%c1_145, %c0_146, %c0_147] : memref<2x8x128xf32, #tpu.memory_space<vmem>>, vector<1x8x128xf32>
    %284 = vector.shape_cast %283 : vector<1x8x128xf32> to vector<8x128xf32>
    %285 = vector.shape_cast %280 : vector<8x128xf32> to vector<1x8x128xf32>
    tpu.vector_store %arg9[%c1_145, %c0_146, %c0_147], %285 {strides = array<i32>} : memref<2x8x128xf32, #tpu.memory_space<vmem>>, vector<1x8x128xf32>,
    %c1_148 = arith.constant 1 : index
    %c0_149 = arith.constant 0 : index
    %c0_150 = arith.constant 0 : index
    %286 = vector.load %arg8[%c1_148, %c0_149, %c0_150] : memref<2x8x128xf32, #tpu.memory_space<vmem>>, vector<1x8x128xf32>
    %287 = vector.shape_cast %286 : vector<1x8x128xf32> to vector<8x128xf32>
    %288 = vector.shape_cast %282 : vector<8x128xf32> to vector<1x8x128xf32>
    tpu.vector_store %arg8[%c1_148, %c0_149, %c0_150], %288 {strides = array<i32>} : memref<2x8x128xf32, #tpu.memory_space<vmem>>, vector<1x8x128xf32>,
    %289 = arith.index_cast %c1_i32_132 : i32 to index
    %c0_151 = arith.constant 0 : index
    %c0_152 = arith.constant 0 : index
    %290 = vector.load %arg11[%289, %c0_151, %c0_152] : memref<4x8x128xf32, #tpu.memory_space<vmem>>, vector<1x8x128xf32>
    %291 = vector.shape_cast %290 : vector<1x8x128xf32> to vector<8x128xf32>
    %292 = vector.shape_cast %282 : vector<8x128xf32> to vector<1x8x128xf32>
    tpu.vector_store %arg11[%289, %c0_151, %c0_152], %292 {strides = array<i32>} : memref<4x8x128xf32, #tpu.memory_space<vmem>>, vector<1x8x128xf32>,
    %c2_i32_153 = arith.constant 2 : i32
    %c1_154 = arith.constant 1 : index
    %c0_155 = arith.constant 0 : index
    %c0_156 = arith.constant 0 : index
    %293 = vector.load %arg8[%c1_154, %c0_155, %c0_156] : memref<2x8x128xf32, #tpu.memory_space<vmem>>, vector<1x8x128xf32>
    %294 = vector.shape_cast %293 : vector<1x8x128xf32> to vector<8x128xf32>
    %295 = arith.index_cast %c2_i32_153 : i32 to index
    %c0_157 = arith.constant 0 : index
    %c0_158 = arith.constant 0 : index
    %296 = vector.load %arg10[%295, %c0_157, %c0_158] : memref<4x8x512xf32, #tpu.memory_space<vmem>>, vector<1x8x512xf32>
    %297 = vector.shape_cast %296 : vector<1x8x512xf32> to vector<8x512xf32>
    %cst_159 = arith.constant dense<0.000000e+00> : vector<8x512xf32>
    %298 = tpu.matmul %294, %204, %cst_159 {dimension_numbers = #tpu.dot_dimension_numbers<[1], [0], [0], [1], [0, 0, 1, 1], [], []>} : vector<8x128xf32>, vector<128x512xf32>, vector<8x512xf32> -> vector<8x512xf32>
    %299 = arith.addf %297, %298 : vector<8x512xf32>
    %300 = vector.extract_strided_slice %299 {offsets = [0, 0], sizes = [8, 128], strides = [1, 1]} : vector<8x512xf32> to vector<8x128xf32>
    %301 = arith.negf %300 : vector<8x128xf32>
    %302 = math.exp %301 : vector<8x128xf32>
    %cst_160 = arith.constant 1.000000e+00 : f32
    %303 = vector.broadcast %cst_160 : f32 to vector<8x128xf32>
    %304 = arith.addf %303, %302 : vector<8x128xf32>
    %305 = arith.divf %303, %304 : vector<8x128xf32>
    %306 = vector.extract_strided_slice %299 {offsets = [0, 128], sizes = [8, 128], strides = [1, 1]} : vector<8x512xf32> to vector<8x128xf32>
    %307 = arith.negf %306 : vector<8x128xf32>
    %308 = math.exp %307 : vector<8x128xf32>
    %cst_161 = arith.constant 1.000000e+00 : f32
    %309 = vector.broadcast %cst_161 : f32 to vector<8x128xf32>
    %310 = arith.addf %309, %308 : vector<8x128xf32>
    %311 = arith.divf %309, %310 : vector<8x128xf32>
    %312 = vector.extract_strided_slice %299 {offsets = [0, 256], sizes = [8, 128], strides = [1, 1]} : vector<8x512xf32> to vector<8x128xf32>
    %313 = math.tanh %312 : vector<8x128xf32>
    %314 = vector.extract_strided_slice %299 {offsets = [0, 384], sizes = [8, 128], strides = [1, 1]} : vector<8x512xf32> to vector<8x128xf32>
    %315 = arith.negf %314 : vector<8x128xf32>
    %316 = math.exp %315 : vector<8x128xf32>
    %cst_162 = arith.constant 1.000000e+00 : f32
    %317 = vector.broadcast %cst_162 : f32 to vector<8x128xf32>
    %318 = arith.addf %317, %316 : vector<8x128xf32>
    %319 = arith.divf %317, %318 : vector<8x128xf32>
    %c1_163 = arith.constant 1 : index
    %c0_164 = arith.constant 0 : index
    %c0_165 = arith.constant 0 : index
    %320 = vector.load %arg9[%c1_163, %c0_164, %c0_165] : memref<2x8x128xf32, #tpu.memory_space<vmem>>, vector<1x8x128xf32>
    %321 = vector.shape_cast %320 : vector<1x8x128xf32> to vector<8x128xf32>
    %322 = arith.mulf %311, %321 : vector<8x128xf32>
    %323 = arith.mulf %305, %313 : vector<8x128xf32>
    %324 = arith.addf %322, %323 : vector<8x128xf32>
    %325 = math.tanh %324 : vector<8x128xf32>
    %326 = arith.mulf %319, %325 : vector<8x128xf32>
    %c1_166 = arith.constant 1 : index
    %c0_167 = arith.constant 0 : index
    %c0_168 = arith.constant 0 : index
    %327 = vector.load %arg9[%c1_166, %c0_167, %c0_168] : memref<2x8x128xf32, #tpu.memory_space<vmem>>, vector<1x8x128xf32>
    %328 = vector.shape_cast %327 : vector<1x8x128xf32> to vector<8x128xf32>
    %329 = vector.shape_cast %324 : vector<8x128xf32> to vector<1x8x128xf32>
    tpu.vector_store %arg9[%c1_166, %c0_167, %c0_168], %329 {strides = array<i32>} : memref<2x8x128xf32, #tpu.memory_space<vmem>>, vector<1x8x128xf32>,
    %c1_169 = arith.constant 1 : index
    %c0_170 = arith.constant 0 : index
    %c0_171 = arith.constant 0 : index
    %330 = vector.load %arg8[%c1_169, %c0_170, %c0_171] : memref<2x8x128xf32, #tpu.memory_space<vmem>>, vector<1x8x128xf32>
    %331 = vector.shape_cast %330 : vector<1x8x128xf32> to vector<8x128xf32>
    %332 = vector.shape_cast %326 : vector<8x128xf32> to vector<1x8x128xf32>
    tpu.vector_store %arg8[%c1_169, %c0_170, %c0_171], %332 {strides = array<i32>} : memref<2x8x128xf32, #tpu.memory_space<vmem>>, vector<1x8x128xf32>,
    %333 = arith.index_cast %c2_i32_153 : i32 to index
    %c0_172 = arith.constant 0 : index
    %c0_173 = arith.constant 0 : index
    %334 = vector.load %arg11[%333, %c0_172, %c0_173] : memref<4x8x128xf32, #tpu.memory_space<vmem>>, vector<1x8x128xf32>
    %335 = vector.shape_cast %334 : vector<1x8x128xf32> to vector<8x128xf32>
    %336 = vector.shape_cast %326 : vector<8x128xf32> to vector<1x8x128xf32>
    tpu.vector_store %arg11[%333, %c0_172, %c0_173], %336 {strides = array<i32>} : memref<4x8x128xf32, #tpu.memory_space<vmem>>, vector<1x8x128xf32>,
    %c3_i32_174 = arith.constant 3 : i32
    %c1_175 = arith.constant 1 : index
    %c0_176 = arith.constant 0 : index
    %c0_177 = arith.constant 0 : index
    %337 = vector.load %arg8[%c1_175, %c0_176, %c0_177] : memref<2x8x128xf32, #tpu.memory_space<vmem>>, vector<1x8x128xf32>
    %338 = vector.shape_cast %337 : vector<1x8x128xf32> to vector<8x128xf32>
    %339 = arith.index_cast %c3_i32_174 : i32 to index
    %c0_178 = arith.constant 0 : index
    %c0_179 = arith.constant 0 : index
    %340 = vector.load %arg10[%339, %c0_178, %c0_179] : memref<4x8x512xf32, #tpu.memory_space<vmem>>, vector<1x8x512xf32>
    %341 = vector.shape_cast %340 : vector<1x8x512xf32> to vector<8x512xf32>
    %cst_180 = arith.constant dense<0.000000e+00> : vector<8x512xf32>
    %342 = tpu.matmul %338, %204, %cst_180 {dimension_numbers = #tpu.dot_dimension_numbers<[1], [0], [0], [1], [0, 0, 1, 1], [], []>} : vector<8x128xf32>, vector<128x512xf32>, vector<8x512xf32> -> vector<8x512xf32>
    %343 = arith.addf %341, %342 : vector<8x512xf32>
    %344 = vector.extract_strided_slice %343 {offsets = [0, 0], sizes = [8, 128], strides = [1, 1]} : vector<8x512xf32> to vector<8x128xf32>
    %345 = arith.negf %344 : vector<8x128xf32>
    %346 = math.exp %345 : vector<8x128xf32>
    %cst_181 = arith.constant 1.000000e+00 : f32
    %347 = vector.broadcast %cst_181 : f32 to vector<8x128xf32>
    %348 = arith.addf %347, %346 : vector<8x128xf32>
    %349 = arith.divf %347, %348 : vector<8x128xf32>
    %350 = vector.extract_strided_slice %343 {offsets = [0, 128], sizes = [8, 128], strides = [1, 1]} : vector<8x512xf32> to vector<8x128xf32>
    %351 = arith.negf %350 : vector<8x128xf32>
    %352 = math.exp %351 : vector<8x128xf32>
    %cst_182 = arith.constant 1.000000e+00 : f32
    %353 = vector.broadcast %cst_182 : f32 to vector<8x128xf32>
    %354 = arith.addf %353, %352 : vector<8x128xf32>
    %355 = arith.divf %353, %354 : vector<8x128xf32>
    %356 = vector.extract_strided_slice %343 {offsets = [0, 256], sizes = [8, 128], strides = [1, 1]} : vector<8x512xf32> to vector<8x128xf32>
    %357 = math.tanh %356 : vector<8x128xf32>
    %358 = vector.extract_strided_slice %343 {offsets = [0, 384], sizes = [8, 128], strides = [1, 1]} : vector<8x512xf32> to vector<8x128xf32>
    %359 = arith.negf %358 : vector<8x128xf32>
    %360 = math.exp %359 : vector<8x128xf32>
    %cst_183 = arith.constant 1.000000e+00 : f32
    %361 = vector.broadcast %cst_183 : f32 to vector<8x128xf32>
    %362 = arith.addf %361, %360 : vector<8x128xf32>
    %363 = arith.divf %361, %362 : vector<8x128xf32>
    %c1_184 = arith.constant 1 : index
    %c0_185 = arith.constant 0 : index
    %c0_186 = arith.constant 0 : index
    %364 = vector.load %arg9[%c1_184, %c0_185, %c0_186] : memref<2x8x128xf32, #tpu.memory_space<vmem>>, vector<1x8x128xf32>
    %365 = vector.shape_cast %364 : vector<1x8x128xf32> to vector<8x128xf32>
    %366 = arith.mulf %355, %365 : vector<8x128xf32>
    %367 = arith.mulf %349, %357 : vector<8x128xf32>
    %368 = arith.addf %366, %367 : vector<8x128xf32>
    %369 = math.tanh %368 : vector<8x128xf32>
    %370 = arith.mulf %363, %369 : vector<8x128xf32>
    %c1_187 = arith.constant 1 : index
    %c0_188 = arith.constant 0 : index
    %c0_189 = arith.constant 0 : index
    %371 = vector.load %arg9[%c1_187, %c0_188, %c0_189] : memref<2x8x128xf32, #tpu.memory_space<vmem>>, vector<1x8x128xf32>
    %372 = vector.shape_cast %371 : vector<1x8x128xf32> to vector<8x128xf32>
    %373 = vector.shape_cast %368 : vector<8x128xf32> to vector<1x8x128xf32>
    tpu.vector_store %arg9[%c1_187, %c0_188, %c0_189], %373 {strides = array<i32>} : memref<2x8x128xf32, #tpu.memory_space<vmem>>, vector<1x8x128xf32>,
    %c1_190 = arith.constant 1 : index
    %c0_191 = arith.constant 0 : index
    %c0_192 = arith.constant 0 : index
    %374 = vector.load %arg8[%c1_190, %c0_191, %c0_192] : memref<2x8x128xf32, #tpu.memory_space<vmem>>, vector<1x8x128xf32>
    %375 = vector.shape_cast %374 : vector<1x8x128xf32> to vector<8x128xf32>
    %376 = vector.shape_cast %370 : vector<8x128xf32> to vector<1x8x128xf32>
    tpu.vector_store %arg8[%c1_190, %c0_191, %c0_192], %376 {strides = array<i32>} : memref<2x8x128xf32, #tpu.memory_space<vmem>>, vector<1x8x128xf32>,
    %377 = arith.index_cast %c3_i32_174 : i32 to index
    %c0_193 = arith.constant 0 : index
    %c0_194 = arith.constant 0 : index
    %378 = vector.load %arg11[%377, %c0_193, %c0_194] : memref<4x8x128xf32, #tpu.memory_space<vmem>>, vector<1x8x128xf32>
    %379 = vector.shape_cast %378 : vector<1x8x128xf32> to vector<8x128xf32>
    %380 = vector.shape_cast %370 : vector<8x128xf32> to vector<1x8x128xf32>
    tpu.vector_store %arg11[%377, %c0_193, %c0_194], %380 {strides = array<i32>} : memref<4x8x128xf32, #tpu.memory_space<vmem>>, vector<1x8x128xf32>,
    %c4_i32_195 = arith.constant 4 : i32
    %c0_196 = arith.constant 0 : index
    %c0_197 = arith.constant 0 : index
    %c0_198 = arith.constant 0 : index
    %381 = vector.load %arg11[%c0_196, %c0_197, %c0_198] : memref<4x8x128xf32, #tpu.memory_space<vmem>>, vector<4x8x128xf32>
    %382 = vector.shape_cast %381 : vector<4x8x128xf32> to vector<32x128xf32>
    %c0_199 = arith.constant 0 : index
    %c0_200 = arith.constant 0 : index
    %383 = vector.load %arg5[%c0_199, %c0_200] : memref<128x128xf32, #tpu.memory_space<vmem>>, vector<128x128xf32>
    %cst_201 = arith.constant dense<0.000000e+00> : vector<32x128xf32>
    %384 = tpu.matmul %382, %383, %cst_201 {dimension_numbers = #tpu.dot_dimension_numbers<[1], [0], [0], [1], [0, 0, 1, 1], [], []>} : vector<32x128xf32>, vector<128x128xf32>, vector<32x128xf32> -> vector<32x128xf32>
    %c0_202 = arith.constant 0 : index
    %c0_203 = arith.constant 0 : index
    %385 = vector.load %arg6[%c0_202, %c0_203] : memref<1x128xf32, #tpu.memory_space<vmem>>, vector<1x128xf32>
    %386 = vector.broadcast %385 : vector<1x128xf32> to vector<32x128xf32>
    %387 = arith.addf %384, %386 : vector<32x128xf32>
    %388 = vector.shape_cast %387 : vector<32x128xf32> to vector<4x8x128xf32>
    %c0_204 = arith.constant 0 : index
    %c0_205 = arith.constant 0 : index
    %c0_206 = arith.constant 0 : index
    %389 = vector.load %arg7[%c0_204, %c0_205, %c0_206] : memref<4x8x128xf32, #tpu.memory_space<vmem>>, vector<4x8x128xf32>
    tpu.vector_store %arg7[%c0_204, %c0_205, %c0_206], %388 {strides = array<i32>} : memref<4x8x128xf32, #tpu.memory_space<vmem>>, vector<4x8x128xf32>,
    return
  }
  func.func @transform_0(%arg0: i32) -> (i32, i32, i32) {
    %c0_i32 = arith.constant 0 : i32
    %c0_i32_0 = arith.constant 0 : i32
    %c0_i32_1 = arith.constant 0 : i32
    return %arg0, %c0_i32, %c0_i32_0 : i32, i32, i32
  }
  func.func @transform_1(%arg0: i32) -> (i32, i32, i32) {
    %c0_i32 = arith.constant 0 : i32
    %c0_i32_0 = arith.constant 0 : i32
    %c0_i32_1 = arith.constant 0 : i32
    %c0_i32_2 = arith.constant 0 : i32
    return %c0_i32, %c0_i32_0, %c0_i32_1 : i32, i32, i32
  }
  func.func @transform_2(%arg0: i32) -> (i32, i32, i32) {
    %c0_i32 = arith.constant 0 : i32
    %c0_i32_0 = arith.constant 0 : i32
    %c0_i32_1 = arith.constant 0 : i32
    %c0_i32_2 = arith.constant 0 : i32
    return %c0_i32, %c0_i32_0, %c0_i32_1 : i32, i32, i32
  }
  func.func @transform_3(%arg0: i32) -> (i32, i32, i32) {
    %c0_i32 = arith.constant 0 : i32
    %c0_i32_0 = arith.constant 0 : i32
    %c0_i32_1 = arith.constant 0 : i32
    %c0_i32_2 = arith.constant 0 : i32
    return %c0_i32, %c0_i32_0, %c0_i32_1 : i32, i32, i32
  }
  func.func @transform_4(%arg0: i32) -> (i32, i32) {
    %c0_i32 = arith.constant 0 : i32
    %c0_i32_0 = arith.constant 0 : i32
    %c0_i32_1 = arith.constant 0 : i32
    return %c0_i32, %c0_i32_0 : i32, i32
  }
  func.func @transform_5(%arg0: i32) -> (i32, i32) {
    %c0_i32 = arith.constant 0 : i32
    %c0_i32_0 = arith.constant 0 : i32
    %c0_i32_1 = arith.constant 0 : i32
    return %c0_i32, %c0_i32_0 : i32, i32
  }
  func.func @transform_6(%arg0: i32) -> (i32, i32, i32) {
    %c0_i32 = arith.constant 0 : i32
    %c0_i32_0 = arith.constant 0 : i32
    %c0_i32_1 = arith.constant 0 : i32
    return %arg0, %c0_i32, %c0_i32_0 : i32, i32, i32
  }
}

</mosaic_0001>

<llo_original>
// kernel: rnn_model_forward.1
$region0: #{rnn_model_forward.1}
  #allocation0 [shape = 'u32[]', space=smem, size = 0x4, offset = 0x4, fixed_abs, tag = 'smem constant byte address 0x4 - core index']
  #allocation1 [shape = 'u32[144,128]{1,0:T(1,128)}', space=vmem, size = 0x12000, scoped, tag = 'internal scratch']
  #allocation2 [shape = 'f32[2,8,128]{2,1,0:T(8,128)}', space=vmem, size = 0x2000, scoped, tag = 'scratch operand']
  #allocation3 [shape = 'f32[2,8,128]{2,1,0:T(8,128)}', space=vmem, size = 0x2000, scoped, tag = 'scratch operand']
  #allocation4 [shape = 'f32[4,8,512]{2,1,0:T(8,128)}', space=vmem, size = 0x10000, scoped, tag = 'scratch operand']
  #allocation5 [shape = 'f32[4,8,128]{2,1,0:T(8,128)}', space=vmem, size = 0x4000, scoped, tag = 'scratch operand']
  %s0 = inlined_call_operand.vmem [shape: f32[8,8,128], index: 0, kind: input, shape index: {}]
  %s1 = inlined_call_operand.hbm [shape: f32[2,128,512], index: 1, kind: input, shape index: {}]
  %s2 = inlined_call_operand.hbm [shape: f32[2,128,512], index: 2, kind: input, shape index: {}]
  %s3 = inlined_call_operand.vmem [shape: f32[2,1,512], index: 3, kind: input, shape index: {}]
  %s4 = inlined_call_operand.hbm [shape: f32[128,128], index: 4, kind: input, shape index: {}]
  %s5 = inlined_call_operand.vmem [shape: f32[1,128], index: 5, kind: input, shape index: {}]
  %s6 = inlined_call_operand.vmem [shape: f32[8,8,128], index: 6, kind: output, shape index: {}]
  %s7 = sld [smem:[#allocation0]]
  $region73: #{rnn_model_forward.1} parent=0
    _
  %s9 = ssub.s32 1, %s7
  %s10 = scalar_select 0, %s9, %s7
  $region1: #{rnn_model_forward.1} parent=0
    #allocation6 [shape = 'u8[524288]{0}', space=vmem, size = 0x80000, scoped, tag = 'input window, operand 1, single buffered']
    #allocation7 [shape = 's32[2]{0}', space=sflag, size = 0x8, scoped, tag = 'scoped memory for rnn_model_forward.1']
    #allocation8 [shape = 'u8[524288]{0}', space=vmem, size = 0x80000, scoped, tag = 'input window, operand 2, single buffered']
    #allocation9 [shape = 's32[1]{0}', space=sflag, size = 0x4, scoped, tag = 'scoped memory for rnn_model_forward.1']
    #allocation10 [shape = 'u8[65536]{0}', space=vmem, size = 0x10000, scoped, tag = 'input window, operand 4, single buffered']
    %11 = vsyncpa [#allocation7], 0
    %12 = vsyncpa [#allocation9], 0
    loop: start=0, step=1, limit=4
    $region2: #{rnn_model_forward.1} parent=1 // loop_pre_header
      _
    $region3: #{rnn_model_forward.1} parent=1 // loop_header
      %s14 = sphi 0, %s18
      %p15 = scmp.ge.s32.totalorder %s14, 4
      %s24 = sphi 0, %s26
      %s27 = sphi 0, %s24
      %s28 = sphi 0, %s27
      %s44 = sphi 0, %s28
      %s48 = sphi 0, %s48
      %s50 = sphi 0, %s48
      %s51 = sphi 0, %s50
      %s65 = sphi 0, %s51
      %s69 = sphi 0, %s69
      %s71 = sphi 0, %s69
      %s72 = sphi 0, %s71
      %s86 = sphi 0, %s72
      %s90 = sphi 0, %s90
      %s92 = sphi 0, %s90
      %s93 = sphi 0, %s92
      %s107 = sphi 0, %s93
      %s111 = sphi 0, %s111
      %s113 = sphi 0, %s111
      %s114 = sphi 0, %s113
      %s128 = sphi 0, %s114
      %s132 = sphi 0, %s132
      %s134 = sphi 0, %s132
      %s135 = sphi 0, %s134
      %s149 = sphi 0, %s135
      %s155 = sphi 0, %s157
      %s158 = sphi 0, %s155
      %s159 = sphi 0, %s158
      %s175 = sphi 0, %s159
    $region4: #{rnn_model_forward.1} parent=1 // loop_header_branch
      %17 = sbr.rel (%p15) target = $region8
    $region5: #{rnn_model_forward.1} parent=1 // loop_body
      %s19 = ssub.s32 %s14, 1
      %s20 = ssub.s32 %s14, 2
      %s21 = sadd.s32 %s14, 1
      %s22 = ssub.s32 %s14, %s21
      %p23 = scmp.eq.s32.totalorder %s22, 0
      %s25 = sadd.s32 %s24, 1
      %s26 = scalar_select %p23, %s24, %s25
      %p29 = pneg %p23
      %p30 = scmp.eq.s32.totalorder %s14, 1
      %p31 = por %p29, %p30
      %p32 = scmp.ne.s32.totalorder %s24, %s27
      %p33 = scmp.eq.s32.totalorder %s14, 0
      %p34 = por %p32, %p33
      %p35 = scmp.ne.s32.totalorder %s24, %s27
      %p36 = scmp.eq.s32.totalorder %s19, 1
      %p37 = por %p35, %p36
      %p38 = scmp.ne.s32.totalorder %s27, %s28
      %p39 = scmp.eq.s32.totalorder %s19, 0
      %p40 = por %p38, %p39
      %p41 = scmp.ne.s32.totalorder %s27, %s28
      %p42 = scmp.eq.s32.totalorder %s20, 1
      %p43 = por %p41, %p42
      %p45 = scmp.ne.s32.totalorder %s28, %s44
      %p46 = scmp.eq.s32.totalorder %s20, 0
      %p47 = por %p45, %p46
      %s49 = sadd.s32 %s48, 1
      %p52 = scmp.eq.s32.totalorder %s14, 1
      %p53 = scmp.ne.s32.totalorder %s48, %s50
      %p54 = scmp.eq.s32.totalorder %s14, 0
      %p55 = por %p53, %p54
      %p56 = scmp.ne.s32.totalorder %s48, %s50
      %p57 = scmp.eq.s32.totalorder %s19, 1
      %p58 = por %p56, %p57
      %p59 = scmp.ne.s32.totalorder %s50, %s51
      %p60 = scmp.eq.s32.totalorder %s19, 0
      %p61 = por %p59, %p60
      %p62 = scmp.ne.s32.totalorder %s50, %s51
      %p63 = scmp.eq.s32.totalorder %s20, 1
      %p64 = por %p62, %p63
      %p66 = scmp.ne.s32.totalorder %s51, %s65
      %p67 = scmp.eq.s32.totalorder %s20, 0
      %p68 = por %p66, %p67
      %s70 = sadd.s32 %s69, 1
      %p73 = scmp.eq.s32.totalorder %s14, 1
      %p74 = scmp.ne.s32.totalorder %s69, %s71
      %p75 = scmp.eq.s32.totalorder %s14, 0
      %p76 = por %p74, %p75
      %p77 = scmp.ne.s32.totalorder %s69, %s71
      %p78 = scmp.eq.s32.totalorder %s19, 1
      %p79 = por %p77, %p78
      %p80 = scmp.ne.s32.totalorder %s71, %s72
      %p81 = scmp.eq.s32.totalorder %s19, 0
      %p82 = por %p80, %p81
      %p83 = scmp.ne.s32.totalorder %s71, %s72
      %p84 = scmp.eq.s32.totalorder %s20, 1
      %p85 = por %p83, %p84
      %p87 = scmp.ne.s32.totalorder %s72, %s86
      %p88 = scmp.eq.s32.totalorder %s20, 0
      %p89 = por %p87, %p88
      %s91 = sadd.s32 %s90, 1
      %p94 = scmp.eq.s32.totalorder %s14, 1
      %p95 = scmp.ne.s32.totalorder %s90, %s92
      %p96 = scmp.eq.s32.totalorder %s14, 0
      %p97 = por %p95, %p96
      %p98 = scmp.ne.s32.totalorder %s90, %s92
      %p99 = scmp.eq.s32.totalorder %s19, 1
      %p100 = por %p98, %p99
      %p101 = scmp.ne.s32.totalorder %s92, %s93
      %p102 = scmp.eq.s32.totalorder %s19, 0
      %p103 = por %p101, %p102
      %p104 = scmp.ne.s32.totalorder %s92, %s93
      %p105 = scmp.eq.s32.totalorder %s20, 1
      %p106 = por %p104, %p105
      %p108 = scmp.ne.s32.totalorder %s93, %s107
      %p109 = scmp.eq.s32.totalorder %s20, 0
      %p110 = por %p108, %p109
      %s112 = sadd.s32 %s111, 1
      %p115 = scmp.eq.s32.totalorder %s14, 1
      %p116 = scmp.ne.s32.totalorder %s111, %s113
      %p117 = scmp.eq.s32.totalorder %s14, 0
      %p118 = por %p116, %p117
      %p119 = scmp.ne.s32.totalorder %s111, %s113
      %p120 = scmp.eq.s32.totalorder %s19, 1
      %p121 = por %p119, %p120
      %p122 = scmp.ne.s32.totalorder %s113, %s114
      %p123 = scmp.eq.s32.totalorder %s19, 0
      %p124 = por %p122, %p123
      %p125 = scmp.ne.s32.totalorder %s113, %s114
      %p126 = scmp.eq.s32.totalorder %s20, 1
      %p127 = por %p125, %p126
      %p129 = scmp.ne.s32.totalorder %s114, %s128
      %p130 = scmp.eq.s32.totalorder %s20, 0
      %p131 = por %p129, %p130
      %s133 = sadd.s32 %s132, 1
      %p136 = scmp.eq.s32.totalorder %s14, 1
      %p137 = scmp.ne.s32.totalorder %s132, %s134
      %p138 = scmp.eq.s32.totalorder %s14, 0
      %p139 = por %p137, %p138
      %p140 = scmp.ne.s32.totalorder %s132, %s134
      %p141 = scmp.eq.s32.totalorder %s19, 1
      %p142 = por %p140, %p141
      %p143 = scmp.ne.s32.totalorder %s134, %s135
      %p144 = scmp.eq.s32.totalorder %s19, 0
      %p145 = por %p143, %p144
      %p146 = scmp.ne.s32.totalorder %s134, %s135
      %p147 = scmp.eq.s32.totalorder %s20, 1
      %p148 = por %p146, %p147
      %p150 = scmp.ne.s32.totalorder %s135, %s149
      %p151 = scmp.eq.s32.totalorder %s20, 0
      %p152 = por %p150, %p151
      %s153 = ssub.s32 %s14, %s21
      %p154 = scmp.eq.s32.totalorder %s153, 0
      %s156 = sadd.s32 %s155, 1
      %s157 = scalar_select %p154, %s155, %s156
      %p160 = pneg %p154
      %p161 = scmp.eq.s32.totalorder %s14, 1
      %p162 = por %p160, %p161
      %p163 = scmp.ne.s32.totalorder %s155, %s158
      %p164 = scmp.eq.s32.totalorder %s14, 0
      %p165 = por %p163, %p164
      %p166 = scmp.ne.s32.totalorder %s155, %s158
      %p167 = scmp.eq.s32.totalorder %s19, 1
      %p168 = por %p166, %p167
      %p169 = scmp.ne.s32.totalorder %s158, %s159
      %p170 = scmp.eq.s32.totalorder %s19, 0
      %p171 = por %p169, %p170
      %p172 = scmp.ne.s32.totalorder %s158, %s159
      %p173 = scmp.eq.s32.totalorder %s20, 1
      %p174 = por %p172, %p173
      %p176 = scmp.ne.s32.totalorder %s159, %s175
      %p177 = scmp.eq.s32.totalorder %s20, 0
      %p178 = por %p176, %p177
      %p179 = scmp.le.s32.totalorder 1, %s14
      %p180 = scmp.lt.s32.totalorder %s14, 3
      %p181 = pnand %p179, %p180
      %p182 = pneg %p181
      // Predicated region
      $region9: #{rnn_model_forward.1} parent=5 // pred_check
        _
      $region10: #{rnn_model_forward.1} parent=5 // pred_check_branch
        %184 = sbr.rel (%p181) target = $region12
      $region11: #{rnn_model_forward.1} parent=5 // pred_region
        %s185 = ssub.s32 %s14, 1
        // Predicated region
        $region13: #{rnn_model_forward.1} parent=11 // pred_check
          %p186 = pneg %p61
        $region14: #{rnn_model_forward.1} parent=11 // pred_check_branch
          %188 = sbr.rel (%p186) target = $region16
        $region15: #{rnn_model_forward.1} parent=11 // pred_region
          %s190 = ssub.s32 16384, 16384
          %191 = vsyncadd [#allocation7], %s190
          %s192 = sshll.u32 [#allocation6], 4
          %s193 = int_to_ptr.vmem [resolvable:$true] %s192
          %198 = dma.hbm_to_vmem [thread:$0]  %s1, 16384, %s193, [#allocation7], 512, 512, 32
        $region16: #{rnn_model_forward.1} parent=11 // pred_fallthru
          _
        // Predicated region
        $region17: #{rnn_model_forward.1} parent=11 // pred_check
          %p199 = pneg %p82
        $region18: #{rnn_model_forward.1} parent=11 // pred_check_branch
          %201 = sbr.rel (%p199) target = $region20
        $region19: #{rnn_model_forward.1} parent=11 // pred_region
          %s203 = ssub.s32 16384, 16384
          %204 = vsyncadd [#allocation9], %s203
          %s205 = sshll.u32 [#allocation8], 4
          %s206 = int_to_ptr.vmem [resolvable:$true] %s205
          %211 = dma.hbm_to_vmem [thread:$0]  %s2, 16384, %s206, [#allocation9], 512, 512, 32
        $region20: #{rnn_model_forward.1} parent=11 // pred_fallthru
          _
        // Predicated region
        $region21: #{rnn_model_forward.1} parent=11 // pred_check
          %p212 = pneg %p103
        $region22: #{rnn_model_forward.1} parent=11 // pred_check_branch
          %214 = sbr.rel (%p212) target = $region24
        $region23: #{rnn_model_forward.1} parent=11 // pred_region
          _
        $region24: #{rnn_model_forward.1} parent=11 // pred_fallthru
          _
        // Predicated region
        $region25: #{rnn_model_forward.1} parent=11 // pred_check
          %p215 = pneg %p124
        $region26: #{rnn_model_forward.1} parent=11 // pred_check_branch
          %217 = sbr.rel (%p215) target = $region28
        $region27: #{rnn_model_forward.1} parent=11 // pred_region
          %s219 = ssub.s32 2048, 2048
          %220 = vsyncadd [#allocation9], %s219
          %s221 = sshll.u32 [#allocation10], 4
          %s222 = int_to_ptr.vmem [resolvable:$true] %s221
          %227 = dma.hbm_to_vmem [thread:$0]  %s4, 2048, %s222, [#allocation9], 128, 128, 8
        $region28: #{rnn_model_forward.1} parent=11 // pred_fallthru
          _
        // Predicated region
        $region29: #{rnn_model_forward.1} parent=11 // pred_check
          %p228 = pneg %p145
        $region30: #{rnn_model_forward.1} parent=11 // pred_check_branch
          %230 = sbr.rel (%p228) target = $region32
        $region31: #{rnn_model_forward.1} parent=11 // pred_region
          _
        $region32: #{rnn_model_forward.1} parent=11 // pred_fallthru
          _
      $region12: #{rnn_model_forward.1} parent=5 // pred_fallthru
        _
      %p231 = scmp.lt.s32.totalorder %s14, 2
      // Predicated region
      $region33: #{rnn_model_forward.1} parent=5 // pred_check
        %p232 = pneg %p231
      $region34: #{rnn_model_forward.1} parent=5 // pred_check_branch
        %234 = sbr.rel (%p232) target = $region36
      $region35: #{rnn_model_forward.1} parent=5 // pred_region
        // Predicated region
        $region37: #{rnn_model_forward.1} parent=35 // pred_check
          %p235 = pneg %p34
        $region38: #{rnn_model_forward.1} parent=35 // pred_check_branch
          %237 = sbr.rel (%p235) target = $region40
        $region39: #{rnn_model_forward.1} parent=35 // pred_region
          %s238 = smul.u32 4, %s14
          %p239 = scmp.lt.s32.totalorder %s238, 7
          %s240 = scalar_select %p239, %s238, 7
          %s241 = smul.addr %s240, 8
          %s242 = scalar_lea.vmem %s0, %s241
          %s243 = smul.u32 4, %s14
        $region40: #{rnn_model_forward.1} parent=35 // pred_fallthru
          _
      $region36: #{rnn_model_forward.1} parent=5 // pred_fallthru
        _
      %p244 = scmp.le.s32.totalorder 1, %s14
      %p245 = scmp.lt.s32.totalorder %s14, 3
      %p246 = pnand %p244, %p245
      %p247 = pneg %p246
      // Predicated region
      $region41: #{rnn_model_forward.1} parent=5 // pred_check
        _
      $region42: #{rnn_model_forward.1} parent=5 // pred_check_branch
        %249 = sbr.rel (%p246) target = $region44
      $region43: #{rnn_model_forward.1} parent=5 // pred_region
        %s250 = ssub.s32 %s14, 1
        // Predicated region
        $region45: #{rnn_model_forward.1} parent=43 // pred_check
          %p251 = pneg %p61
        $region46: #{rnn_model_forward.1} parent=43 // pred_check_branch
          %253 = sbr.rel (%p251) target = $region48
        $region47: #{rnn_model_forward.1} parent=43 // pred_region
          %254 = dma.done [#allocation7], 16384
        $region48: #{rnn_model_forward.1} parent=43 // pred_fallthru
          _
        // Predicated region
        $region49: #{rnn_model_forward.1} parent=43 // pred_check
          %p255 = pneg %p82
        $region50: #{rnn_model_forward.1} parent=43 // pred_check_branch
          %257 = sbr.rel (%p255) target = $region52
        $region51: #{rnn_model_forward.1} parent=43 // pred_region
          %258 = dma.done [#allocation9], 16384
        $region52: #{rnn_model_forward.1} parent=43 // pred_fallthru
          _
        // Predicated region
        $region53: #{rnn_model_forward.1} parent=43 // pred_check
          %p259 = pneg %p124
        $region54: #{rnn_model_forward.1} parent=43 // pred_check_branch
          %261 = sbr.rel (%p259) target = $region56
        $region55: #{rnn_model_forward.1} parent=43 // pred_region
          %262 = dma.done [#allocation9], 2048
        $region56: #{rnn_model_forward.1} parent=43 // pred_fallthru
          _
        %s263 = smul.u32 4, %s19
        %p264 = scmp.lt.s32.totalorder %s263, 7
        %s265 = scalar_select %p264, %s263, 7
        %s266 = smul.addr %s265, 8
        %s267 = scalar_lea.vmem %s0, %s266
        %p268 = pneg %p40
        %p269 = pneg %p37
        %p270 = pneg %p61
        %p271 = pneg %p58
        %p272 = pneg %p82
        %p273 = pneg %p79
        %p274 = pneg %p103
        %p275 = pneg %p100
        %p276 = pneg %p124
        %p277 = pneg %p121
        %p278 = pneg %p145
        %p279 = pneg %p142
        %p280 = pneg %p171
        %p281 = pneg %p168
        %s282 = smul.u32 4, %s19
        %p283 = scmp.lt.s32.totalorder %s282, 7
        %s284 = scalar_select %p283, %s282, 7
        %s285 = smul.addr %s284, 8
        %s286 = scalar_lea.vmem %s6, %s285
        %s287 = smul.u32 4, %s19
        %p288 = scmp.lt.s32.totalorder %s287, 7
        %s289 = scalar_select %p288, %s287, 7
        %s290 = smul.addr %s289, 8
        %s291 = scalar_lea.vmem %s0, %s290
        %s292 = smul.u32 4, %s19
        %s293 = smul.u32 4, %s19
        %p294 = scmp.lt.s32.totalorder %s293, 7
        %s295 = scalar_select %p294, %s293, 7
        %s296 = smul.addr %s295, 8
        %s297 = scalar_lea.vmem %s6, %s296
        %s298 = smul.u32 4, %s19
        %p299 = scmp.eq.s32.totalorder %s19, 0
        // Predicated region
        $region57: #{rnn_model_forward.1} parent=43 // pred_check
          %p300 = pneg %p299
        $region58: #{rnn_model_forward.1} parent=43 // pred_check_branch
          %302 = sbr.rel (%p300) target = $region60
        $region59: #{rnn_model_forward.1} parent=43 // pred_region
          %303 = vst [vmem:[#allocation2] sm:$0xff] 0.0
          %304 = vst [vmem:[#allocation2 + $0x8] sm:$0xff] 0.0
          %305 = vst [vmem:[#allocation3] sm:$0xff] 0.0
          %306 = vst [vmem:[#allocation3 + $0x8] sm:$0xff] 0.0
        $region60: #{rnn_model_forward.1} parent=43 // pred_fallthru
          _
        %v307 = vld [vmem:[%s291] sm:$0xff]
        %v308 = vld [vmem:[%s291 + $0x8] sm:$0xff]
        %v309 = vld [vmem:[%s291 + $0x10] sm:$0xff]
        %v310 = vld [vmem:[%s291 + $0x18] sm:$0xff]
        %v311 = vld [vmem:[#allocation6] sm:$0xff]
        %v312 = vld [vmem:[#allocation6 + $0x8] sm:$0xff]
        %v313 = vld [vmem:[#allocation6 + $0x10] sm:$0xff]
        %v314 = vld [vmem:[#allocation6 + $0x18] sm:$0xff]
        %v315 = vld [vmem:[#allocation6 + $0x20] sm:$0xff]
        %v316 = vld [vmem:[#allocation6 + $0x28] sm:$0xff]
        %v317 = vld [vmem:[#allocation6 + $0x30] sm:$0xff]
        %v318 = vld [vmem:[#allocation6 + $0x38] sm:$0xff]
        %v319 = vld [vmem:[#allocation6 + $0x40] sm:$0xff]
        %v320 = vld [vmem:[#allocation6 + $0x48] sm:$0xff]
        %v321 = vld [vmem:[#allocation6 + $0x50] sm:$0xff]
        %v322 = vld [vmem:[#allocation6 + $0x58] sm:$0xff]
        %v323 = vld [vmem:[#allocation6 + $0x60] sm:$0xff]
        %v324 = vld [vmem:[#allocation6 + $0x68] sm:$0xff]
        %v325 = vld [vmem:[#allocation6 + $0x70] sm:$0xff]
        %v326 = vld [vmem:[#allocation6 + $0x78] sm:$0xff]
        %v327 = vld [vmem:[#allocation6 + $0x80] sm:$0xff]
        %v328 = vld [vmem:[#allocation6 + $0x88] sm:$0xff]
        %v329 = vld [vmem:[#allocation6 + $0x90] sm:$0xff]
        %v330 = vld [vmem:[#allocation6 + $0x98] sm:$0xff]
        %v331 = vld [vmem:[#allocation6 + $0xa0] sm:$0xff]
        %v332 = vld [vmem:[#allocation6 + $0xa8] sm:$0xff]
        %v333 = vld [vmem:[#allocation6 + $0xb0] sm:$0xff]
        %v334 = vld [vmem:[#allocation6 + $0xb8] sm:$0xff]
        %v335 = vld [vmem:[#allocation6 + $0xc0] sm:$0xff]
        %v336 = vld [vmem:[#allocation6 + $0xc8] sm:$0xff]
        %v337 = vld [vmem:[#allocation6 + $0xd0] sm:$0xff]
        %v338 = vld [vmem:[#allocation6 + $0xd8] sm:$0xff]
        %v339 = vld [vmem:[#allocation6 + $0xe0] sm:$0xff]
        %v340 = vld [vmem:[#allocation6 + $0xe8] sm:$0xff]
        %v341 = vld [vmem:[#allocation6 + $0xf0] sm:$0xff]
        %v342 = vld [vmem:[#allocation6 + $0xf8] sm:$0xff]
        %v343 = vld [vmem:[#allocation6 + $0x100] sm:$0xff]
        %v344 = vld [vmem:[#allocation6 + $0x108] sm:$0xff]
        %v345 = vld [vmem:[#allocation6 + $0x110] sm:$0xff]
        %v346 = vld [vmem:[#allocation6 + $0x118] sm:$0xff]
        %v347 = vld [vmem:[#allocation6 + $0x120] sm:$0xff]
        %v348 = vld [vmem:[#allocation6 + $0x128] sm:$0xff]
        %v349 = vld [vmem:[#allocation6 + $0x130] sm:$0xff]
        %v350 = vld [vmem:[#allocation6 + $0x138] sm:$0xff]
        %v351 = vld [vmem:[#allocation6 + $0x140] sm:$0xff]
        %v352 = vld [vmem:[#allocation6 + $0x148] sm:$0xff]
        %v353 = vld [vmem:[#allocation6 + $0x150] sm:$0xff]
        %v354 = vld [vmem:[#allocation6 + $0x158] sm:$0xff]
        %v355 = vld [vmem:[#allocation6 + $0x160] sm:$0xff]
        %v356 = vld [vmem:[#allocation6 + $0x168] sm:$0xff]
        %v357 = vld [vmem:[#allocation6 + $0x170] sm:$0xff]
        %v358 = vld [vmem:[#allocation6 + $0x178] sm:$0xff]
        %v359 = vld [vmem:[#allocation6 + $0x180] sm:$0xff]
        %v360 = vld [vmem:[#allocation6 + $0x188] sm:$0xff]
        %v361 = vld [vmem:[#allocation6 + $0x190] sm:$0xff]
        %v362 = vld [vmem:[#allocation6 + $0x198] sm:$0xff]
        %v363 = vld [vmem:[#allocation6 + $0x1a0] sm:$0xff]
        %v364 = vld [vmem:[#allocation6 + $0x1a8] sm:$0xff]
        %v365 = vld [vmem:[#allocation6 + $0x1b0] sm:$0xff]
        %v366 = vld [vmem:[#allocation6 + $0x1b8] sm:$0xff]
        %v367 = vld [vmem:[#allocation6 + $0x1c0] sm:$0xff]
        %v368 = vld [vmem:[#allocation6 + $0x1c8] sm:$0xff]
        %v369 = vld [vmem:[#allocation6 + $0x1d0] sm:$0xff]
        %v370 = vld [vmem:[#allocation6 + $0x1d8] sm:$0xff]
        %v371 = vld [vmem:[#allocation6 + $0x1e0] sm:$0xff]
        %v372 = vld [vmem:[#allocation6 + $0x1e8] sm:$0xff]
        %v373 = vld [vmem:[#allocation6 + $0x1f0] sm:$0xff]
        %v374 = vld [vmem:[#allocation6 + $0x1f8] sm:$0xff]
        %v375 = vld [vmem:[%s3] sm:$0xf]
        %v377 = vlaneseq
        %v378 = vshrl.u32 %v377, 7
        %v379 = vsub.s32 0, %v378
        %v380 = vrot.slane %v375, %v379
        %v381 = vlaneseq
        %v382 = vshrl.u32 %v381, 7
        %v383 = vsub.s32 1, %v382
        %v384 = vrot.slane %v375, %v383
        %v385 = vlaneseq
        %v386 = vshrl.u32 %v385, 7
        %v387 = vsub.s32 2, %v386
        %v388 = vrot.slane %v375, %v387
        %v389 = vlaneseq
        %v390 = vshrl.u32 %v389, 7
        %v391 = vsub.s32 3, %v390
        %v392 = vrot.slane %v375, %v391
        %397 = vmatprep.subr.mxu0 %v372
        %398 = vmatpush1.msra.mxu0 %v371
        %399 = vmatprep.subr.mxu0 %v368
        %400 = vmatpush1.msra.mxu0 %v367
        %401 = vmatprep.subr.mxu0 %v364
        %402 = vmatpush1.msra.mxu0 %v363
        %403 = vmatprep.subr.mxu0 %v360
        %404 = vmatpush1.msra.mxu0 %v359
        %405 = vmatprep.subr.mxu0 %v356
        %406 = vmatpush1.msra.mxu0 %v355
        %407 = vmatprep.subr.mxu0 %v352
        %408 = vmatpush1.msra.mxu0 %v351
        %409 = vmatprep.subr.mxu0 %v348
        %410 = vmatpush1.msra.mxu0 %v347
        %411 = vmatprep.subr.mxu0 %v344
        %412 = vmatpush1.msra.mxu0 %v343
        %413 = vmatprep.subr.mxu0 %v340
        %414 = vmatpush1.msra.mxu0 %v339
        %415 = vmatprep.subr.mxu0 %v336
        %416 = vmatpush1.msra.mxu0 %v335
        %417 = vmatprep.subr.mxu0 %v332
        %418 = vmatpush1.msra.mxu0 %v331
        %419 = vmatprep.subr.mxu0 %v328
        %420 = vmatpush1.msra.mxu0 %v327
        %421 = vmatprep.subr.mxu0 %v324
        %422 = vmatpush1.msra.mxu0 %v323
        %423 = vmatprep.subr.mxu0 %v320
        %424 = vmatpush1.msra.mxu0 %v319
        %425 = vmatprep.subr.mxu0 %v316
        %426 = vmatpush1.msra.mxu0 %v315
        %427 = vmatprep.subr.mxu0 %v312
        %428 = vmatpush1.msra.mxu0 %v311
        %429 = vmatprep.subr.mxu0 0.0
        %430 = vmatpush2.msra.mxu0 0.0
        %431 = vmatprep.subr.mxu0 0.0
        %432 = vmatpush2.msra.mxu0 0.0
        %433 = vmatprep.subr.mxu0 0.0
        %434 = vmatpush2.msra.mxu0 0.0
        %435 = vmatprep.subr.mxu0 0.0
        %436 = vmatpush2.msra.mxu0 0.0
        %437 = vmatprep.subr.mxu0 0.0
        %438 = vmatpush2.msra.mxu0 0.0
        %439 = vmatprep.subr.mxu0 0.0
        %440 = vmatpush2.msra.mxu0 0.0
        %441 = vmatprep.subr.mxu0 0.0
        %442 = vmatpush2.msra.mxu0 0.0
        %443 = vmatprep.subr.mxu0 0.0
        %444 = vmatpush2.msra.mxu0 0.0
        %445 = vmatprep.subr.mxu0 0.0
        %446 = vmatpush2.msra.mxu0 0.0
        %447 = vmatprep.subr.mxu0 0.0
        %448 = vmatpush2.msra.mxu0 0.0
        %449 = vmatprep.subr.mxu0 0.0
        %450 = vmatpush2.msra.mxu0 0.0
        %451 = vmatprep.subr.mxu0 0.0
        %452 = vmatpush2.msra.mxu0 0.0
        %453 = vmatprep.subr.mxu0 0.0
        %454 = vmatpush2.msra.mxu0 0.0
        %455 = vmatprep.subr.mxu0 0.0
        %456 = vmatpush2.msra.mxu0 0.0
        %457 = vmatprep.subr.mxu0 0.0
        %458 = vmatpush2.msra.mxu0 0.0
        %459 = vmatprep.subr.mxu0 0.0
        %460 = vmatpush2.msra.mxu0 0.0
        %461 = vmatprep.mubr.f32.mxu0 0.0
        %462 = vmatmul.mubr.f32.gmra.mxu0 %v307
        %v463 = vpop.f32.mrf.mxu0
        %v464 = vadd.f32 %v380, %v463
        %v465 = vpop.f32.mrf.mxu0
        %v466 = vadd.f32 %v384, %v465
        %467 = vmatprep.mubr.f32.mxu0 0.0
        %468 = vmatmul.mubr.f32.gmra.mxu0 %v308
        %v469 = vpop.f32.mrf.mxu0
        %v470 = vadd.f32 %v380, %v469
        %v471 = vpop.f32.mrf.mxu0
        %v472 = vadd.f32 %v384, %v471
        %473 = vmatprep.mubr.f32.mxu0 0.0
        %474 = vmatmul.mubr.f32.gmra.mxu0 %v309
        %v475 = vpop.f32.mrf.mxu0
        %v476 = vadd.f32 %v380, %v475
        %v477 = vpop.f32.mrf.mxu0
        %v478 = vadd.f32 %v384, %v477
        %479 = vmatprep.mubr.f32.mxu0 0.0
        %480 = vmatmul.mubr.f32.gmra.mxu0 %v310
        %v481 = vpop.f32.mrf.mxu0
        %v482 = vadd.f32 %v380, %v481
        %v483 = vpop.f32.mrf.mxu0
        %v484 = vadd.f32 %v384, %v483
        %485 = vdwg.mxu0
        %486 = vmatprep.subr.mxu0 %v374
        %487 = vmatpush1.msra.mxu0 %v373
        %488 = vmatprep.subr.mxu0 %v370
        %489 = vmatpush1.msra.mxu0 %v369
        %490 = vmatprep.subr.mxu0 %v366
        %491 = vmatpush1.msra.mxu0 %v365
        %492 = vmatprep.subr.mxu0 %v362
        %493 = vmatpush1.msra.mxu0 %v361
        %494 = vmatprep.subr.mxu0 %v358
        %495 = vmatpush1.msra.mxu0 %v357
        %496 = vmatprep.subr.mxu0 %v354
        %497 = vmatpush1.msra.mxu0 %v353
        %498 = vmatprep.subr.mxu0 %v350
        %499 = vmatpush1.msra.mxu0 %v349
        %500 = vmatprep.subr.mxu0 %v346
        %501 = vmatpush1.msra.mxu0 %v345
        %502 = vmatprep.subr.mxu0 %v342
        %503 = vmatpush1.msra.mxu0 %v341
        %504 = vmatprep.subr.mxu0 %v338
        %505 = vmatpush1.msra.mxu0 %v337
        %506 = vmatprep.subr.mxu0 %v334
        %507 = vmatpush1.msra.mxu0 %v333
        %508 = vmatprep.subr.mxu0 %v330
        %509 = vmatpush1.msra.mxu0 %v329
        %510 = vmatprep.subr.mxu0 %v326
        %511 = vmatpush1.msra.mxu0 %v325
        %512 = vmatprep.subr.mxu0 %v322
        %513 = vmatpush1.msra.mxu0 %v321
        %514 = vmatprep.subr.mxu0 %v318
        %515 = vmatpush1.msra.mxu0 %v317
        %516 = vmatprep.subr.mxu0 %v314
        %517 = vmatpush1.msra.mxu0 %v313
        %518 = vmatprep.subr.mxu0 0.0
        %519 = vmatpush2.msra.mxu0 0.0
        %520 = vmatprep.subr.mxu0 0.0
        %521 = vmatpush2.msra.mxu0 0.0
        %522 = vmatprep.subr.mxu0 0.0
        %523 = vmatpush2.msra.mxu0 0.0
        %524 = vmatprep.subr.mxu0 0.0
        %525 = vmatpush2.msra.mxu0 0.0
        %526 = vmatprep.subr.mxu0 0.0
        %527 = vmatpush2.msra.mxu0 0.0
        %528 = vmatprep.subr.mxu0 0.0
        %529 = vmatpush2.msra.mxu0 0.0
        %530 = vmatprep.subr.mxu0 0.0
        %531 = vmatpush2.msra.mxu0 0.0
        %532 = vmatprep.subr.mxu0 0.0
        %533 = vmatpush2.msra.mxu0 0.0
        %534 = vmatprep.subr.mxu0 0.0
        %535 = vmatpush2.msra.mxu0 0.0
        %536 = vmatprep.subr.mxu0 0.0
        %537 = vmatpush2.msra.mxu0 0.0
        %538 = vmatprep.subr.mxu0 0.0
        %539 = vmatpush2.msra.mxu0 0.0
        %540 = vmatprep.subr.mxu0 0.0
        %541 = vmatpush2.msra.mxu0 0.0
        %542 = vmatprep.subr.mxu0 0.0
        %543 = vmatpush2.msra.mxu0 0.0
        %544 = vmatprep.subr.mxu0 0.0
        %545 = vmatpush2.msra.mxu0 0.0
        %546 = vmatprep.subr.mxu0 0.0
        %547 = vmatpush2.msra.mxu0 0.0
        %548 = vmatprep.subr.mxu0 0.0
        %549 = vmatpush2.msra.mxu0 0.0
        %550 = vmatprep.mubr.f32.mxu0 0.0
        %551 = vmatmul.mubr.f32.gmra.mxu0 %v307
        %v552 = vpop.f32.mrf.mxu0
        %v553 = vadd.f32 %v388, %v552
        %v554 = vpop.f32.mrf.mxu0
        %v555 = vadd.f32 %v392, %v554
        %556 = vmatprep.mubr.f32.mxu0 0.0
        %557 = vmatmul.mubr.f32.gmra.mxu0 %v308
        %v558 = vpop.f32.mrf.mxu0
        %v559 = vadd.f32 %v388, %v558
        %v560 = vpop.f32.mrf.mxu0
        %v561 = vadd.f32 %v392, %v560
        %562 = vmatprep.mubr.f32.mxu0 0.0
        %563 = vmatmul.mubr.f32.gmra.mxu0 %v309
        %v564 = vpop.f32.mrf.mxu0
        %v565 = vadd.f32 %v388, %v564
        %v566 = vpop.f32.mrf.mxu0
        %v567 = vadd.f32 %v392, %v566
        %568 = vmatprep.mubr.f32.mxu0 0.0
        %569 = vmatmul.mubr.f32.gmra.mxu0 %v310
        %v570 = vpop.f32.mrf.mxu0
        %v571 = vadd.f32 %v388, %v570
        %v572 = vpop.f32.mrf.mxu0
        %v573 = vadd.f32 %v392, %v572
        %574 = vdwg.mxu0
        %575 = vst [vmem:[#allocation4] sm:$0xff] %v464
        %576 = vst [vmem:[#allocation4 + $0x8] sm:$0xff] %v466
        %577 = vst [vmem:[#allocation4 + $0x10] sm:$0xff] %v553
        %578 = vst [vmem:[#allocation4 + $0x18] sm:$0xff] %v555
        %579 = vst [vmem:[#allocation4 + $0x20] sm:$0xff] %v470
        %580 = vst [vmem:[#allocation4 + $0x28] sm:$0xff] %v472
        %581 = vst [vmem:[#allocation4 + $0x30] sm:$0xff] %v559
        %582 = vst [vmem:[#allocation4 + $0x38] sm:$0xff] %v561
        %583 = vst [vmem:[#allocation4 + $0x40] sm:$0xff] %v476
        %584 = vst [vmem:[#allocation4 + $0x48] sm:$0xff] %v478
        %585 = vst [vmem:[#allocation4 + $0x50] sm:$0xff] %v565
        %586 = vst [vmem:[#allocation4 + $0x58] sm:$0xff] %v567
        %587 = vst [vmem:[#allocation4 + $0x60] sm:$0xff] %v482
        %588 = vst [vmem:[#allocation4 + $0x68] sm:$0xff] %v484
        %589 = vst [vmem:[#allocation4 + $0x70] sm:$0xff] %v571
        %590 = vst [vmem:[#allocation4 + $0x78] sm:$0xff] %v573
        %v591 = vld [vmem:[#allocation8] sm:$0xff]
        %v592 = vld [vmem:[#allocation8 + $0x8] sm:$0xff]
        %v593 = vld [vmem:[#allocation8 + $0x10] sm:$0xff]
        %v594 = vld [vmem:[#allocation8 + $0x18] sm:$0xff]
        %v595 = vld [vmem:[#allocation8 + $0x20] sm:$0xff]
        %v596 = vld [vmem:[#allocation8 + $0x28] sm:$0xff]
        %v597 = vld [vmem:[#allocation8 + $0x30] sm:$0xff]
        %v598 = vld [vmem:[#allocation8 + $0x38] sm:$0xff]
        %v599 = vld [vmem:[#allocation8 + $0x40] sm:$0xff]
        %v600 = vld [vmem:[#allocation8 + $0x48] sm:$0xff]
        %v601 = vld [vmem:[#allocation8 + $0x50] sm:$0xff]
        %v602 = vld [vmem:[#allocation8 + $0x58] sm:$0xff]
        %v603 = vld [vmem:[#allocation8 + $0x60] sm:$0xff]
        %v604 = vld [vmem:[#allocation8 + $0x68] sm:$0xff]
        %v605 = vld [vmem:[#allocation8 + $0x70] sm:$0xff]
        %v606 = vld [vmem:[#allocation8 + $0x78] sm:$0xff]
        %v607 = vld [vmem:[#allocation8 + $0x80] sm:$0xff]
        %v608 = vld [vmem:[#allocation8 + $0x88] sm:$0xff]
        %v609 = vld [vmem:[#allocation8 + $0x90] sm:$0xff]
        %v610 = vld [vmem:[#allocation8 + $0x98] sm:$0xff]
        %v611 = vld [vmem:[#allocation8 + $0xa0] sm:$0xff]
        %v612 = vld [vmem:[#allocation8 + $0xa8] sm:$0xff]
        %v613 = vld [vmem:[#allocation8 + $0xb0] sm:$0xff]
        %v614 = vld [vmem:[#allocation8 + $0xb8] sm:$0xff]
        %v615 = vld [vmem:[#allocation8 + $0xc0] sm:$0xff]
        %v616 = vld [vmem:[#allocation8 + $0xc8] sm:$0xff]
        %v617 = vld [vmem:[#allocation8 + $0xd0] sm:$0xff]
        %v618 = vld [vmem:[#allocation8 + $0xd8] sm:$0xff]
        %v619 = vld [vmem:[#allocation8 + $0xe0] sm:$0xff]
        %v620 = vld [vmem:[#allocation8 + $0xe8] sm:$0xff]
        %v621 = vld [vmem:[#allocation8 + $0xf0] sm:$0xff]
        %v622 = vld [vmem:[#allocation8 + $0xf8] sm:$0xff]
        %v623 = vld [vmem:[#allocation8 + $0x100] sm:$0xff]
        %v624 = vld [vmem:[#allocation8 + $0x108] sm:$0xff]
        %v625 = vld [vmem:[#allocation8 + $0x110] sm:$0xff]
        %v626 = vld [vmem:[#allocation8 + $0x118] sm:$0xff]
        %v627 = vld [vmem:[#allocation8 + $0x120] sm:$0xff]
        %v628 = vld [vmem:[#allocation8 + $0x128] sm:$0xff]
        %v629 = vld [vmem:[#allocation8 + $0x130] sm:$0xff]
        %v630 = vld [vmem:[#allocation8 + $0x138] sm:$0xff]
        %v631 = vld [vmem:[#allocation8 + $0x140] sm:$0xff]
        %v632 = vld [vmem:[#allocation8 + $0x148] sm:$0xff]
        %v633 = vld [vmem:[#allocation8 + $0x150] sm:$0xff]
        %v634 = vld [vmem:[#allocation8 + $0x158] sm:$0xff]
        %v635 = vld [vmem:[#allocation8 + $0x160] sm:$0xff]
        %v636 = vld [vmem:[#allocation8 + $0x168] sm:$0xff]
        %v637 = vld [vmem:[#allocation8 + $0x170] sm:$0xff]
        %v638 = vld [vmem:[#allocation8 + $0x178] sm:$0xff]
        %v639 = vld [vmem:[#allocation8 + $0x180] sm:$0xff]
        %v640 = vld [vmem:[#allocation8 + $0x188] sm:$0xff]
        %v641 = vld [vmem:[#allocation8 + $0x190] sm:$0xff]
        %v642 = vld [vmem:[#allocation8 + $0x198] sm:$0xff]
        %v643 = vld [vmem:[#allocation8 + $0x1a0] sm:$0xff]
        %v644 = vld [vmem:[#allocation8 + $0x1a8] sm:$0xff]
        %v645 = vld [vmem:[#allocation8 + $0x1b0] sm:$0xff]
        %v646 = vld [vmem:[#allocation8 + $0x1b8] sm:$0xff]
        %v647 = vld [vmem:[#allocation8 + $0x1c0] sm:$0xff]
        %v648 = vld [vmem:[#allocation8 + $0x1c8] sm:$0xff]
        %v649 = vld [vmem:[#allocation8 + $0x1d0] sm:$0xff]
        %v650 = vld [vmem:[#allocation8 + $0x1d8] sm:$0xff]
        %v651 = vld [vmem:[#allocation8 + $0x1e0] sm:$0xff]
        %v652 = vld [vmem:[#allocation8 + $0x1e8] sm:$0xff]
        %v653 = vld [vmem:[#allocation8 + $0x1f0] sm:$0xff]
        %v654 = vld [vmem:[#allocation8 + $0x1f8] sm:$0xff]
        %v655 = vld [vmem:[#allocation2] sm:$0xff]
        %v656 = vld [vmem:[#allocation4] sm:$0xff]
        %v657 = vld [vmem:[#allocation4 + $0x8] sm:$0xff]
        %v658 = vld [vmem:[#allocation4 + $0x10] sm:$0xff]
        %v659 = vld [vmem:[#allocation4 + $0x18] sm:$0xff]
        %660 = vmatprep.subr.mxu0 %v652
        %661 = vmatpush1.msra.mxu0 %v651
        %662 = vmatprep.subr.mxu0 %v648
        %663 = vmatpush1.msra.mxu0 %v647
        %664 = vmatprep.subr.mxu0 %v644
        %665 = vmatpush1.msra.mxu0 %v643
        %666 = vmatprep.subr.mxu0 %v640
        %667 = vmatpush1.msra.mxu0 %v639
        %668 = vmatprep.subr.mxu0 %v636
        %669 = vmatpush1.msra.mxu0 %v635
        %670 = vmatprep.subr.mxu0 %v632
        %671 = vmatpush1.msra.mxu0 %v631
        %672 = vmatprep.subr.mxu0 %v628
        %673 = vmatpush1.msra.mxu0 %v627
        %674 = vmatprep.subr.mxu0 %v624
        %675 = vmatpush1.msra.mxu0 %v623
        %676 = vmatprep.subr.mxu0 %v620
        %677 = vmatpush1.msra.mxu0 %v619
        %678 = vmatprep.subr.mxu0 %v616
        %679 = vmatpush1.msra.mxu0 %v615
        %680 = vmatprep.subr.mxu0 %v612
        %681 = vmatpush1.msra.mxu0 %v611
        %682 = vmatprep.subr.mxu0 %v608
        %683 = vmatpush1.msra.mxu0 %v607
        %684 = vmatprep.subr.mxu0 %v604
        %685 = vmatpush1.msra.mxu0 %v603
        %686 = vmatprep.subr.mxu0 %v600
        %687 = vmatpush1.msra.mxu0 %v599
        %688 = vmatprep.subr.mxu0 %v596
        %689 = vmatpush1.msra.mxu0 %v595
        %690 = vmatprep.subr.mxu0 %v592
        %691 = vmatpush1.msra.mxu0 %v591
        %692 = vmatprep.subr.mxu0 0.0
        %693 = vmatpush2.msra.mxu0 0.0
        %694 = vmatprep.subr.mxu0 0.0
        %695 = vmatpush2.msra.mxu0 0.0
        %696 = vmatprep.subr.mxu0 0.0
        %697 = vmatpush2.msra.mxu0 0.0
        %698 = vmatprep.subr.mxu0 0.0
        %699 = vmatpush2.msra.mxu0 0.0
        %700 = vmatprep.subr.mxu0 0.0
        %701 = vmatpush2.msra.mxu0 0.0
        %702 = vmatprep.subr.mxu0 0.0
        %703 = vmatpush2.msra.mxu0 0.0
        %704 = vmatprep.subr.mxu0 0.0
        %705 = vmatpush2.msra.mxu0 0.0
        %706 = vmatprep.subr.mxu0 0.0
        %707 = vmatpush2.msra.mxu0 0.0
        %708 = vmatprep.subr.mxu0 0.0
        %709 = vmatpush2.msra.mxu0 0.0
        %710 = vmatprep.subr.mxu0 0.0
        %711 = vmatpush2.msra.mxu0 0.0
        %712 = vmatprep.subr.mxu0 0.0
        %713 = vmatpush2.msra.mxu0 0.0
        %714 = vmatprep.subr.mxu0 0.0
        %715 = vmatpush2.msra.mxu0 0.0
        %716 = vmatprep.subr.mxu0 0.0
        %717 = vmatpush2.msra.mxu0 0.0
        %718 = vmatprep.subr.mxu0 0.0
        %719 = vmatpush2.msra.mxu0 0.0
        %720 = vmatprep.subr.mxu0 0.0
        %721 = vmatpush2.msra.mxu0 0.0
        %722 = vmatprep.subr.mxu0 0.0
        %723 = vmatpush2.msra.mxu0 0.0
        %724 = vmatprep.mubr.f32.mxu0 0.0
        %725 = vmatmul.mubr.f32.gmra.mxu0 %v655
        %v726 = vpop.f32.mrf.mxu0
        %v727 = vadd.f32 0.0, %v726
        %v728 = vpop.f32.mrf.mxu0
        %v729 = vadd.f32 0.0, %v728
        %730 = vdwg.mxu0
        %731 = vmatprep.subr.mxu0 %v654
        %732 = vmatpush1.msra.mxu0 %v653
        %733 = vmatprep.subr.mxu0 %v650
        %734 = vmatpush1.msra.mxu0 %v649
        %735 = vmatprep.subr.mxu0 %v646
        %736 = vmatpush1.msra.mxu0 %v645
        %737 = vmatprep.subr.mxu0 %v642
        %738 = vmatpush1.msra.mxu0 %v641
        %739 = vmatprep.subr.mxu0 %v638
        %740 = vmatpush1.msra.mxu0 %v637
        %741 = vmatprep.subr.mxu0 %v634
        %742 = vmatpush1.msra.mxu0 %v633
        %743 = vmatprep.subr.mxu0 %v630
        %744 = vmatpush1.msra.mxu0 %v629
        %745 = vmatprep.subr.mxu0 %v626
        %746 = vmatpush1.msra.mxu0 %v625
        %747 = vmatprep.subr.mxu0 %v622
        %748 = vmatpush1.msra.mxu0 %v621
        %749 = vmatprep.subr.mxu0 %v618
        %750 = vmatpush1.msra.mxu0 %v617
        %751 = vmatprep.subr.mxu0 %v614
        %752 = vmatpush1.msra.mxu0 %v613
        %753 = vmatprep.subr.mxu0 %v610
        %754 = vmatpush1.msra.mxu0 %v609
        %755 = vmatprep.subr.mxu0 %v606
        %756 = vmatpush1.msra.mxu0 %v605
        %757 = vmatprep.subr.mxu0 %v602
        %758 = vmatpush1.msra.mxu0 %v601
        %759 = vmatprep.subr.mxu0 %v598
        %760 = vmatpush1.msra.mxu0 %v597
        %761 = vmatprep.subr.mxu0 %v594
        %762 = vmatpush1.msra.mxu0 %v593
        %763 = vmatprep.subr.mxu0 0.0
        %764 = vmatpush2.msra.mxu0 0.0
        %765 = vmatprep.subr.mxu0 0.0
        %766 = vmatpush2.msra.mxu0 0.0
        %767 = vmatprep.subr.mxu0 0.0
        %768 = vmatpush2.msra.mxu0 0.0
        %769 = vmatprep.subr.mxu0 0.0
        %770 = vmatpush2.msra.mxu0 0.0
        %771 = vmatprep.subr.mxu0 0.0
        %772 = vmatpush2.msra.mxu0 0.0
        %773 = vmatprep.subr.mxu0 0.0
        %774 = vmatpush2.msra.mxu0 0.0
        %775 = vmatprep.subr.mxu0 0.0
        %776 = vmatpush2.msra.mxu0 0.0
        %777 = vmatprep.subr.mxu0 0.0
        %778 = vmatpush2.msra.mxu0 0.0
        %779 = vmatprep.subr.mxu0 0.0
        %780 = vmatpush2.msra.mxu0 0.0
        %781 = vmatprep.subr.mxu0 0.0
        %782 = vmatpush2.msra.mxu0 0.0
        %783 = vmatprep.subr.mxu0 0.0
        %784 = vmatpush2.msra.mxu0 0.0
        %785 = vmatprep.subr.mxu0 0.0
        %786 = vmatpush2.msra.mxu0 0.0
        %787 = vmatprep.subr.mxu0 0.0
        %788 = vmatpush2.msra.mxu0 0.0
        %789 = vmatprep.subr.mxu0 0.0
        %790 = vmatpush2.msra.mxu0 0.0
        %791 = vmatprep.subr.mxu0 0.0
        %792 = vmatpush2.msra.mxu0 0.0
        %793 = vmatprep.subr.mxu0 0.0
        %794 = vmatpush2.msra.mxu0 0.0
        %795 = vmatprep.mubr.f32.mxu0 0.0
        %796 = vmatmul.mubr.f32.gmra.mxu0 %v655
        %v797 = vpop.f32.mrf.mxu0
        %v798 = vadd.f32 0.0, %v797
        %v799 = vpop.f32.mrf.mxu0
        %v800 = vadd.f32 0.0, %v799
        %801 = vdwg.mxu0
        %v802 = vadd.f32 %v656, %v727
        %v803 = vadd.f32 %v657, %v729
        %v804 = vadd.f32 %v658, %v798
        %v805 = vadd.f32 %v659, %v800
        %v806 = vxor.u32 %v802, 2147483648
        %v807 = vmul.f32 %v806, 1.442695
        %v808 = vpow.pop %v807
        %v809 = vadd.f32 %v808, 1.0
        %v810 = vrcp.pop %v809
        %v811 = vmul.f32 1.0, %v810
        %v812 = vxor.u32 %v803, 2147483648
        %v813 = vmul.f32 %v812, 1.442695
        %v814 = vpow.pop %v813
        %v815 = vadd.f32 %v814, 1.0
        %v816 = vrcp.pop %v815
        %v817 = vmul.f32 1.0, %v816
        %v818 = vtanh.pop %v804
        %v819 = vxor.u32 %v805, 2147483648
        %v820 = vmul.f32 %v819, 1.442695
        %v821 = vpow.pop %v820
        %v822 = vadd.f32 %v821, 1.0
        %v823 = vrcp.pop %v822
        %v824 = vmul.f32 1.0, %v823
        %v825 = vld [vmem:[#allocation3] sm:$0xff]
        %v826 = vmul.f32 %v817, %v825
        %v827 = vmul.f32 %v811, %v818
        %v828 = vadd.f32 %v826, %v827
        %v829 = vtanh.pop %v828
        %v830 = vmul.f32 %v824, %v829
        %831 = vst [vmem:[#allocation3] sm:$0xff] %v828
        %832 = vst [vmem:[#allocation2] sm:$0xff] %v830
        %833 = vst [vmem:[#allocation5] sm:$0xff] %v830
        %v834 = vld [vmem:[#allocation2] sm:$0xff]
        %s835 = scalar_lea.vmem [#allocation4], 32
        %v836 = vld [vmem:[%s835] sm:$0xff]
        %v837 = vld [vmem:[%s835 + $0x8] sm:$0xff]
        %v838 = vld [vmem:[%s835 + $0x10] sm:$0xff]
        %v839 = vld [vmem:[%s835 + $0x18] sm:$0xff]
        %840 = vmatprep.subr.mxu0 %v652
        %841 = vmatpush1.msra.mxu0 %v651
        %842 = vmatprep.subr.mxu0 %v648
        %843 = vmatpush1.msra.mxu0 %v647
        %844 = vmatprep.subr.mxu0 %v644
        %845 = vmatpush1.msra.mxu0 %v643
        %846 = vmatprep.subr.mxu0 %v640
        %847 = vmatpush1.msra.mxu0 %v639
        %848 = vmatprep.subr.mxu0 %v636
        %849 = vmatpush1.msra.mxu0 %v635
        %850 = vmatprep.subr.mxu0 %v632
        %851 = vmatpush1.msra.mxu0 %v631
        %852 = vmatprep.subr.mxu0 %v628
        %853 = vmatpush1.msra.mxu0 %v627
        %854 = vmatprep.subr.mxu0 %v624
        %855 = vmatpush1.msra.mxu0 %v623
        %856 = vmatprep.subr.mxu0 %v620
        %857 = vmatpush1.msra.mxu0 %v619
        %858 = vmatprep.subr.mxu0 %v616
        %859 = vmatpush1.msra.mxu0 %v615
        %860 = vmatprep.subr.mxu0 %v612
        %861 = vmatpush1.msra.mxu0 %v611
        %862 = vmatprep.subr.mxu0 %v608
        %863 = vmatpush1.msra.mxu0 %v607
        %864 = vmatprep.subr.mxu0 %v604
        %865 = vmatpush1.msra.mxu0 %v603
        %866 = vmatprep.subr.mxu0 %v600
        %867 = vmatpush1.msra.mxu0 %v599
        %868 = vmatprep.subr.mxu0 %v596
        %869 = vmatpush1.msra.mxu0 %v595
        %870 = vmatprep.subr.mxu0 %v592
        %871 = vmatpush1.msra.mxu0 %v591
        %872 = vmatprep.subr.mxu0 0.0
        %873 = vmatpush2.msra.mxu0 0.0
        %874 = vmatprep.subr.mxu0 0.0
        %875 = vmatpush2.msra.mxu0 0.0
        %876 = vmatprep.subr.mxu0 0.0
        %877 = vmatpush2.msra.mxu0 0.0
        %878 = vmatprep.subr.mxu0 0.0
        %879 = vmatpush2.msra.mxu0 0.0
        %880 = vmatprep.subr.mxu0 0.0
        %881 = vmatpush2.msra.mxu0 0.0
        %882 = vmatprep.subr.mxu0 0.0
        %883 = vmatpush2.msra.mxu0 0.0
        %884 = vmatprep.subr.mxu0 0.0
        %885 = vmatpush2.msra.mxu0 0.0
        %886 = vmatprep.subr.mxu0 0.0
        %887 = vmatpush2.msra.mxu0 0.0
        %888 = vmatprep.subr.mxu0 0.0
        %889 = vmatpush2.msra.mxu0 0.0
        %890 = vmatprep.subr.mxu0 0.0
        %891 = vmatpush2.msra.mxu0 0.0
        %892 = vmatprep.subr.mxu0 0.0
        %893 = vmatpush2.msra.mxu0 0.0
        %894 = vmatprep.subr.mxu0 0.0
        %895 = vmatpush2.msra.mxu0 0.0
        %896 = vmatprep.subr.mxu0 0.0
        %897 = vmatpush2.msra.mxu0 0.0
        %898 = vmatprep.subr.mxu0 0.0
        %899 = vmatpush2.msra.mxu0 0.0
        %900 = vmatprep.subr.mxu0 0.0
        %901 = vmatpush2.msra.mxu0 0.0
        %902 = vmatprep.subr.mxu0 0.0
        %903 = vmatpush2.msra.mxu0 0.0
        %904 = vmatprep.mubr.f32.mxu0 0.0
        %905 = vmatmul.mubr.f32.gmra.mxu0 %v834
        %v906 = vpop.f32.mrf.mxu0
        %v907 = vadd.f32 0.0, %v906
        %v908 = vpop.f32.mrf.mxu0
        %v909 = vadd.f32 0.0, %v908
        %910 = vdwg.mxu0
        %911 = vmatprep.subr.mxu0 %v654
        %912 = vmatpush1.msra.mxu0 %v653
        %913 = vmatprep.subr.mxu0 %v650
        %914 = vmatpush1.msra.mxu0 %v649
        %915 = vmatprep.subr.mxu0 %v646
        %916 = vmatpush1.msra.mxu0 %v645
        %917 = vmatprep.subr.mxu0 %v642
        %918 = vmatpush1.msra.mxu0 %v641
        %919 = vmatprep.subr.mxu0 %v638
        %920 = vmatpush1.msra.mxu0 %v637
        %921 = vmatprep.subr.mxu0 %v634
        %922 = vmatpush1.msra.mxu0 %v633
        %923 = vmatprep.subr.mxu0 %v630
        %924 = vmatpush1.msra.mxu0 %v629
        %925 = vmatprep.subr.mxu0 %v626
        %926 = vmatpush1.msra.mxu0 %v625
        %927 = vmatprep.subr.mxu0 %v622
        %928 = vmatpush1.msra.mxu0 %v621
        %929 = vmatprep.subr.mxu0 %v618
        %930 = vmatpush1.msra.mxu0 %v617
        %931 = vmatprep.subr.mxu0 %v614
        %932 = vmatpush1.msra.mxu0 %v613
        %933 = vmatprep.subr.mxu0 %v610
        %934 = vmatpush1.msra.mxu0 %v609
        %935 = vmatprep.subr.mxu0 %v606
        %936 = vmatpush1.msra.mxu0 %v605
        %937 = vmatprep.subr.mxu0 %v602
        %938 = vmatpush1.msra.mxu0 %v601
        %939 = vmatprep.subr.mxu0 %v598
        %940 = vmatpush1.msra.mxu0 %v597
        %941 = vmatprep.subr.mxu0 %v594
        %942 = vmatpush1.msra.mxu0 %v593
        %943 = vmatprep.subr.mxu0 0.0
        %944 = vmatpush2.msra.mxu0 0.0
        %945 = vmatprep.subr.mxu0 0.0
        %946 = vmatpush2.msra.mxu0 0.0
        %947 = vmatprep.subr.mxu0 0.0
        %948 = vmatpush2.msra.mxu0 0.0
        %949 = vmatprep.subr.mxu0 0.0
        %950 = vmatpush2.msra.mxu0 0.0
        %951 = vmatprep.subr.mxu0 0.0
        %952 = vmatpush2.msra.mxu0 0.0
        %953 = vmatprep.subr.mxu0 0.0
        %954 = vmatpush2.msra.mxu0 0.0
        %955 = vmatprep.subr.mxu0 0.0
        %956 = vmatpush2.msra.mxu0 0.0
        %957 = vmatprep.subr.mxu0 0.0
        %958 = vmatpush2.msra.mxu0 0.0
        %959 = vmatprep.subr.mxu0 0.0
        %960 = vmatpush2.msra.mxu0 0.0
        %961 = vmatprep.subr.mxu0 0.0
        %962 = vmatpush2.msra.mxu0 0.0
        %963 = vmatprep.subr.mxu0 0.0
        %964 = vmatpush2.msra.mxu0 0.0
        %965 = vmatprep.subr.mxu0 0.0
        %966 = vmatpush2.msra.mxu0 0.0
        %967 = vmatprep.subr.mxu0 0.0
        %968 = vmatpush2.msra.mxu0 0.0
        %969 = vmatprep.subr.mxu0 0.0
        %970 = vmatpush2.msra.mxu0 0.0
        %971 = vmatprep.subr.mxu0 0.0
        %972 = vmatpush2.msra.mxu0 0.0
        %973 = vmatprep.subr.mxu0 0.0
        %974 = vmatpush2.msra.mxu0 0.0
        %975 = vmatprep.mubr.f32.mxu0 0.0
        %976 = vmatmul.mubr.f32.gmra.mxu0 %v834
        %v977 = vpop.f32.mrf.mxu0
        %v978 = vadd.f32 0.0, %v977
        %v979 = vpop.f32.mrf.mxu0
        %v980 = vadd.f32 0.0, %v979
        %981 = vdwg.mxu0
        %v982 = vadd.f32 %v836, %v907
        %v983 = vadd.f32 %v837, %v909
        %v984 = vadd.f32 %v838, %v978
        %v985 = vadd.f32 %v839, %v980
        %v986 = vxor.u32 %v982, 2147483648
        %v987 = vmul.f32 %v986, 1.442695
        %v988 = vpow.pop %v987
        %v989 = vadd.f32 %v988, 1.0
        %v990 = vrcp.pop %v989
        %v991 = vmul.f32 1.0, %v990
        %v992 = vxor.u32 %v983, 2147483648
        %v993 = vmul.f32 %v992, 1.442695
        %v994 = vpow.pop %v993
        %v995 = vadd.f32 %v994, 1.0
        %v996 = vrcp.pop %v995
        %v997 = vmul.f32 1.0, %v996
        %v998 = vtanh.pop %v984
        %v999 = vxor.u32 %v985, 2147483648
        %v1000 = vmul.f32 %v999, 1.442695
        %v1001 = vpow.pop %v1000
        %v1002 = vadd.f32 %v1001, 1.0
        %v1003 = vrcp.pop %v1002
        %v1004 = vmul.f32 1.0, %v1003
        %v1005 = vld [vmem:[#allocation3] sm:$0xff]
        %v1006 = vmul.f32 %v997, %v1005
        %v1007 = vmul.f32 %v991, %v998
        %v1008 = vadd.f32 %v1006, %v1007
        %v1009 = vtanh.pop %v1008
        %v1010 = vmul.f32 %v1004, %v1009
        %1011 = vst [vmem:[#allocation3] sm:$0xff] %v1008
        %1012 = vst [vmem:[#allocation2] sm:$0xff] %v1010
        %s1013 = scalar_lea.vmem [#allocation5], 8
        %1014 = vst [vmem:[%s1013] sm:$0xff] %v1010
        %v1015 = vld [vmem:[#allocation2] sm:$0xff]
        %s1016 = scalar_lea.vmem [#allocation4], 64
        %v1017 = vld [vmem:[%s1016] sm:$0xff]
        %v1018 = vld [vmem:[%s1016 + $0x8] sm:$0xff]
        %v1019 = vld [vmem:[%s1016 + $0x10] sm:$0xff]
        %v1020 = vld [vmem:[%s1016 + $0x18] sm:$0xff]
        %1021 = vmatprep.subr.mxu0 %v652
        %1022 = vmatpush1.msra.mxu0 %v651
        %1023 = vmatprep.subr.mxu0 %v648
        %1024 = vmatpush1.msra.mxu0 %v647
        %1025 = vmatprep.subr.mxu0 %v644
        %1026 = vmatpush1.msra.mxu0 %v643
        %1027 = vmatprep.subr.mxu0 %v640
        %1028 = vmatpush1.msra.mxu0 %v639
        %1029 = vmatprep.subr.mxu0 %v636
        %1030 = vmatpush1.msra.mxu0 %v635
        %1031 = vmatprep.subr.mxu0 %v632
        %1032 = vmatpush1.msra.mxu0 %v631
        %1033 = vmatprep.subr.mxu0 %v628
        %1034 = vmatpush1.msra.mxu0 %v627
        %1035 = vmatprep.subr.mxu0 %v624
        %1036 = vmatpush1.msra.mxu0 %v623
        %1037 = vmatprep.subr.mxu0 %v620
        %1038 = vmatpush1.msra.mxu0 %v619
        %1039 = vmatprep.subr.mxu0 %v616
        %1040 = vmatpush1.msra.mxu0 %v615
        %1041 = vmatprep.subr.mxu0 %v612
        %1042 = vmatpush1.msra.mxu0 %v611
        %1043 = vmatprep.subr.mxu0 %v608
        %1044 = vmatpush1.msra.mxu0 %v607
        %1045 = vmatprep.subr.mxu0 %v604
        %1046 = vmatpush1.msra.mxu0 %v603
        %1047 = vmatprep.subr.mxu0 %v600
        %1048 = vmatpush1.msra.mxu0 %v599
        %1049 = vmatprep.subr.mxu0 %v596
        %1050 = vmatpush1.msra.mxu0 %v595
        %1051 = vmatprep.subr.mxu0 %v592
        %1052 = vmatpush1.msra.mxu0 %v591
        %1053 = vmatprep.subr.mxu0 0.0
        %1054 = vmatpush2.msra.mxu0 0.0
        %1055 = vmatprep.subr.mxu0 0.0
        %1056 = vmatpush2.msra.mxu0 0.0
        %1057 = vmatprep.subr.mxu0 0.0
        %1058 = vmatpush2.msra.mxu0 0.0
        %1059 = vmatprep.subr.mxu0 0.0
        %1060 = vmatpush2.msra.mxu0 0.0
        %1061 = vmatprep.subr.mxu0 0.0
        %1062 = vmatpush2.msra.mxu0 0.0
        %1063 = vmatprep.subr.mxu0 0.0
        %1064 = vmatpush2.msra.mxu0 0.0
        %1065 = vmatprep.subr.mxu0 0.0
        %1066 = vmatpush2.msra.mxu0 0.0
        %1067 = vmatprep.subr.mxu0 0.0
        %1068 = vmatpush2.msra.mxu0 0.0
        %1069 = vmatprep.subr.mxu0 0.0
        %1070 = vmatpush2.msra.mxu0 0.0
        %1071 = vmatprep.subr.mxu0 0.0
        %1072 = vmatpush2.msra.mxu0 0.0
        %1073 = vmatprep.subr.mxu0 0.0
        %1074 = vmatpush2.msra.mxu0 0.0
        %1075 = vmatprep.subr.mxu0 0.0
        %1076 = vmatpush2.msra.mxu0 0.0
        %1077 = vmatprep.subr.mxu0 0.0
        %1078 = vmatpush2.msra.mxu0 0.0
        %1079 = vmatprep.subr.mxu0 0.0
        %1080 = vmatpush2.msra.mxu0 0.0
        %1081 = vmatprep.subr.mxu0 0.0
        %1082 = vmatpush2.msra.mxu0 0.0
        %1083 = vmatprep.subr.mxu0 0.0
        %1084 = vmatpush2.msra.mxu0 0.0
        %1085 = vmatprep.mubr.f32.mxu0 0.0
        %1086 = vmatmul.mubr.f32.gmra.mxu0 %v1015
        %v1087 = vpop.f32.mrf.mxu0
        %v1088 = vadd.f32 0.0, %v1087
        %v1089 = vpop.f32.mrf.mxu0
        %v1090 = vadd.f32 0.0, %v1089
        %1091 = vdwg.mxu0
        %1092 = vmatprep.subr.mxu0 %v654
        %1093 = vmatpush1.msra.mxu0 %v653
        %1094 = vmatprep.subr.mxu0 %v650
        %1095 = vmatpush1.msra.mxu0 %v649
        %1096 = vmatprep.subr.mxu0 %v646
        %1097 = vmatpush1.msra.mxu0 %v645
        %1098 = vmatprep.subr.mxu0 %v642
        %1099 = vmatpush1.msra.mxu0 %v641
        %1100 = vmatprep.subr.mxu0 %v638
        %1101 = vmatpush1.msra.mxu0 %v637
        %1102 = vmatprep.subr.mxu0 %v634
        %1103 = vmatpush1.msra.mxu0 %v633
        %1104 = vmatprep.subr.mxu0 %v630
        %1105 = vmatpush1.msra.mxu0 %v629
        %1106 = vmatprep.subr.mxu0 %v626
        %1107 = vmatpush1.msra.mxu0 %v625
        %1108 = vmatprep.subr.mxu0 %v622
        %1109 = vmatpush1.msra.mxu0 %v621
        %1110 = vmatprep.subr.mxu0 %v618
        %1111 = vmatpush1.msra.mxu0 %v617
        %1112 = vmatprep.subr.mxu0 %v614
        %1113 = vmatpush1.msra.mxu0 %v613
        %1114 = vmatprep.subr.mxu0 %v610
        %1115 = vmatpush1.msra.mxu0 %v609
        %1116 = vmatprep.subr.mxu0 %v606
        %1117 = vmatpush1.msra.mxu0 %v605
        %1118 = vmatprep.subr.mxu0 %v602
        %1119 = vmatpush1.msra.mxu0 %v601
        %1120 = vmatprep.subr.mxu0 %v598
        %1121 = vmatpush1.msra.mxu0 %v597
        %1122 = vmatprep.subr.mxu0 %v594
        %1123 = vmatpush1.msra.mxu0 %v593
        %1124 = vmatprep.subr.mxu0 0.0
        %1125 = vmatpush2.msra.mxu0 0.0
        %1126 = vmatprep.subr.mxu0 0.0
        %1127 = vmatpush2.msra.mxu0 0.0
        %1128 = vmatprep.subr.mxu0 0.0
        %1129 = vmatpush2.msra.mxu0 0.0
        %1130 = vmatprep.subr.mxu0 0.0
        %1131 = vmatpush2.msra.mxu0 0.0
        %1132 = vmatprep.subr.mxu0 0.0
        %1133 = vmatpush2.msra.mxu0 0.0
        %1134 = vmatprep.subr.mxu0 0.0
        %1135 = vmatpush2.msra.mxu0 0.0
        %1136 = vmatprep.subr.mxu0 0.0
        %1137 = vmatpush2.msra.mxu0 0.0
        %1138 = vmatprep.subr.mxu0 0.0
        %1139 = vmatpush2.msra.mxu0 0.0
        %1140 = vmatprep.subr.mxu0 0.0
        %1141 = vmatpush2.msra.mxu0 0.0
        %1142 = vmatprep.subr.mxu0 0.0
        %1143 = vmatpush2.msra.mxu0 0.0
        %1144 = vmatprep.subr.mxu0 0.0
        %1145 = vmatpush2.msra.mxu0 0.0
        %1146 = vmatprep.subr.mxu0 0.0
        %1147 = vmatpush2.msra.mxu0 0.0
        %1148 = vmatprep.subr.mxu0 0.0
        %1149 = vmatpush2.msra.mxu0 0.0
        %1150 = vmatprep.subr.mxu0 0.0
        %1151 = vmatpush2.msra.mxu0 0.0
        %1152 = vmatprep.subr.mxu0 0.0
        %1153 = vmatpush2.msra.mxu0 0.0
        %1154 = vmatprep.subr.mxu0 0.0
        %1155 = vmatpush2.msra.mxu0 0.0
        %1156 = vmatprep.mubr.f32.mxu0 0.0
        %1157 = vmatmul.mubr.f32.gmra.mxu0 %v1015
        %v1158 = vpop.f32.mrf.mxu0
        %v1159 = vadd.f32 0.0, %v1158
        %v1160 = vpop.f32.mrf.mxu0
        %v1161 = vadd.f32 0.0, %v1160
        %1162 = vdwg.mxu0
        %v1163 = vadd.f32 %v1017, %v1088
        %v1164 = vadd.f32 %v1018, %v1090
        %v1165 = vadd.f32 %v1019, %v1159
        %v1166 = vadd.f32 %v1020, %v1161
        %v1167 = vxor.u32 %v1163, 2147483648
        %v1168 = vmul.f32 %v1167, 1.442695
        %v1169 = vpow.pop %v1168
        %v1170 = vadd.f32 %v1169, 1.0
        %v1171 = vrcp.pop %v1170
        %v1172 = vmul.f32 1.0, %v1171
        %v1173 = vxor.u32 %v1164, 2147483648
        %v1174 = vmul.f32 %v1173, 1.442695
        %v1175 = vpow.pop %v1174
        %v1176 = vadd.f32 %v1175, 1.0
        %v1177 = vrcp.pop %v1176
        %v1178 = vmul.f32 1.0, %v1177
        %v1179 = vtanh.pop %v1165
        %v1180 = vxor.u32 %v1166, 2147483648
        %v1181 = vmul.f32 %v1180, 1.442695
        %v1182 = vpow.pop %v1181
        %v1183 = vadd.f32 %v1182, 1.0
        %v1184 = vrcp.pop %v1183
        %v1185 = vmul.f32 1.0, %v1184
        %v1186 = vld [vmem:[#allocation3] sm:$0xff]
        %v1187 = vmul.f32 %v1178, %v1186
        %v1188 = vmul.f32 %v1172, %v1179
        %v1189 = vadd.f32 %v1187, %v1188
        %v1190 = vtanh.pop %v1189
        %v1191 = vmul.f32 %v1185, %v1190
        %1192 = vst [vmem:[#allocation3] sm:$0xff] %v1189
        %1193 = vst [vmem:[#allocation2] sm:$0xff] %v1191
        %s1194 = scalar_lea.vmem [#allocation5], 16
        %1195 = vst [vmem:[%s1194] sm:$0xff] %v1191
        %v1196 = vld [vmem:[#allocation2] sm:$0xff]
        %s1197 = scalar_lea.vmem [#allocation4], 96
        %v1198 = vld [vmem:[%s1197] sm:$0xff]
        %v1199 = vld [vmem:[%s1197 + $0x8] sm:$0xff]
        %v1200 = vld [vmem:[%s1197 + $0x10] sm:$0xff]
        %v1201 = vld [vmem:[%s1197 + $0x18] sm:$0xff]
        %1202 = vmatprep.subr.mxu0 %v652
        %1203 = vmatpush1.msra.mxu0 %v651
        %1204 = vmatprep.subr.mxu0 %v648
        %1205 = vmatpush1.msra.mxu0 %v647
        %1206 = vmatprep.subr.mxu0 %v644
        %1207 = vmatpush1.msra.mxu0 %v643
        %1208 = vmatprep.subr.mxu0 %v640
        %1209 = vmatpush1.msra.mxu0 %v639
        %1210 = vmatprep.subr.mxu0 %v636
        %1211 = vmatpush1.msra.mxu0 %v635
        %1212 = vmatprep.subr.mxu0 %v632
        %1213 = vmatpush1.msra.mxu0 %v631
        %1214 = vmatprep.subr.mxu0 %v628
        %1215 = vmatpush1.msra.mxu0 %v627
        %1216 = vmatprep.subr.mxu0 %v624
        %1217 = vmatpush1.msra.mxu0 %v623
        %1218 = vmatprep.subr.mxu0 %v620
        %1219 = vmatpush1.msra.mxu0 %v619
        %1220 = vmatprep.subr.mxu0 %v616
        %1221 = vmatpush1.msra.mxu0 %v615
        %1222 = vmatprep.subr.mxu0 %v612
        %1223 = vmatpush1.msra.mxu0 %v611
        %1224 = vmatprep.subr.mxu0 %v608
        %1225 = vmatpush1.msra.mxu0 %v607
        %1226 = vmatprep.subr.mxu0 %v604
        %1227 = vmatpush1.msra.mxu0 %v603
        %1228 = vmatprep.subr.mxu0 %v600
        %1229 = vmatpush1.msra.mxu0 %v599
        %1230 = vmatprep.subr.mxu0 %v596
        %1231 = vmatpush1.msra.mxu0 %v595
        %1232 = vmatprep.subr.mxu0 %v592
        %1233 = vmatpush1.msra.mxu0 %v591
        %1234 = vmatprep.subr.mxu0 0.0
        %1235 = vmatpush2.msra.mxu0 0.0
        %1236 = vmatprep.subr.mxu0 0.0
        %1237 = vmatpush2.msra.mxu0 0.0
        %1238 = vmatprep.subr.mxu0 0.0
        %1239 = vmatpush2.msra.mxu0 0.0
        %1240 = vmatprep.subr.mxu0 0.0
        %1241 = vmatpush2.msra.mxu0 0.0
        %1242 = vmatprep.subr.mxu0 0.0
        %1243 = vmatpush2.msra.mxu0 0.0
        %1244 = vmatprep.subr.mxu0 0.0
        %1245 = vmatpush2.msra.mxu0 0.0
        %1246 = vmatprep.subr.mxu0 0.0
        %1247 = vmatpush2.msra.mxu0 0.0
        %1248 = vmatprep.subr.mxu0 0.0
        %1249 = vmatpush2.msra.mxu0 0.0
        %1250 = vmatprep.subr.mxu0 0.0
        %1251 = vmatpush2.msra.mxu0 0.0
        %1252 = vmatprep.subr.mxu0 0.0
        %1253 = vmatpush2.msra.mxu0 0.0
        %1254 = vmatprep.subr.mxu0 0.0
        %1255 = vmatpush2.msra.mxu0 0.0
        %1256 = vmatprep.subr.mxu0 0.0
        %1257 = vmatpush2.msra.mxu0 0.0
        %1258 = vmatprep.subr.mxu0 0.0
        %1259 = vmatpush2.msra.mxu0 0.0
        %1260 = vmatprep.subr.mxu0 0.0
        %1261 = vmatpush2.msra.mxu0 0.0
        %1262 = vmatprep.subr.mxu0 0.0
        %1263 = vmatpush2.msra.mxu0 0.0
        %1264 = vmatprep.subr.mxu0 0.0
        %1265 = vmatpush2.msra.mxu0 0.0
        %1266 = vmatprep.mubr.f32.mxu0 0.0
        %1267 = vmatmul.mubr.f32.gmra.mxu0 %v1196
        %v1268 = vpop.f32.mrf.mxu0
        %v1269 = vadd.f32 0.0, %v1268
        %v1270 = vpop.f32.mrf.mxu0
        %v1271 = vadd.f32 0.0, %v1270
        %1272 = vdwg.mxu0
        %1273 = vmatprep.subr.mxu0 %v654
        %1274 = vmatpush1.msra.mxu0 %v653
        %1275 = vmatprep.subr.mxu0 %v650
        %1276 = vmatpush1.msra.mxu0 %v649
        %1277 = vmatprep.subr.mxu0 %v646
        %1278 = vmatpush1.msra.mxu0 %v645
        %1279 = vmatprep.subr.mxu0 %v642
        %1280 = vmatpush1.msra.mxu0 %v641
        %1281 = vmatprep.subr.mxu0 %v638
        %1282 = vmatpush1.msra.mxu0 %v637
        %1283 = vmatprep.subr.mxu0 %v634
        %1284 = vmatpush1.msra.mxu0 %v633
        %1285 = vmatprep.subr.mxu0 %v630
        %1286 = vmatpush1.msra.mxu0 %v629
        %1287 = vmatprep.subr.mxu0 %v626
        %1288 = vmatpush1.msra.mxu0 %v625
        %1289 = vmatprep.subr.mxu0 %v622
        %1290 = vmatpush1.msra.mxu0 %v621
        %1291 = vmatprep.subr.mxu0 %v618
        %1292 = vmatpush1.msra.mxu0 %v617
        %1293 = vmatprep.subr.mxu0 %v614
        %1294 = vmatpush1.msra.mxu0 %v613
        %1295 = vmatprep.subr.mxu0 %v610
        %1296 = vmatpush1.msra.mxu0 %v609
        %1297 = vmatprep.subr.mxu0 %v606
        %1298 = vmatpush1.msra.mxu0 %v605
        %1299 = vmatprep.subr.mxu0 %v602
        %1300 = vmatpush1.msra.mxu0 %v601
        %1301 = vmatprep.subr.mxu0 %v598
        %1302 = vmatpush1.msra.mxu0 %v597
        %1303 = vmatprep.subr.mxu0 %v594
        %1304 = vmatpush1.msra.mxu0 %v593
        %1305 = vmatprep.subr.mxu0 0.0
        %1306 = vmatpush2.msra.mxu0 0.0
        %1307 = vmatprep.subr.mxu0 0.0
        %1308 = vmatpush2.msra.mxu0 0.0
        %1309 = vmatprep.subr.mxu0 0.0
        %1310 = vmatpush2.msra.mxu0 0.0
        %1311 = vmatprep.subr.mxu0 0.0
        %1312 = vmatpush2.msra.mxu0 0.0
        %1313 = vmatprep.subr.mxu0 0.0
        %1314 = vmatpush2.msra.mxu0 0.0
        %1315 = vmatprep.subr.mxu0 0.0
        %1316 = vmatpush2.msra.mxu0 0.0
        %1317 = vmatprep.subr.mxu0 0.0
        %1318 = vmatpush2.msra.mxu0 0.0
        %1319 = vmatprep.subr.mxu0 0.0
        %1320 = vmatpush2.msra.mxu0 0.0
        %1321 = vmatprep.subr.mxu0 0.0
        %1322 = vmatpush2.msra.mxu0 0.0
        %1323 = vmatprep.subr.mxu0 0.0
        %1324 = vmatpush2.msra.mxu0 0.0
        %1325 = vmatprep.subr.mxu0 0.0
        %1326 = vmatpush2.msra.mxu0 0.0
        %1327 = vmatprep.subr.mxu0 0.0
        %1328 = vmatpush2.msra.mxu0 0.0
        %1329 = vmatprep.subr.mxu0 0.0
        %1330 = vmatpush2.msra.mxu0 0.0
        %1331 = vmatprep.subr.mxu0 0.0
        %1332 = vmatpush2.msra.mxu0 0.0
        %1333 = vmatprep.subr.mxu0 0.0
        %1334 = vmatpush2.msra.mxu0 0.0
        %1335 = vmatprep.subr.mxu0 0.0
        %1336 = vmatpush2.msra.mxu0 0.0
        %1337 = vmatprep.mubr.f32.mxu0 0.0
        %1338 = vmatmul.mubr.f32.gmra.mxu0 %v1196
        %v1339 = vpop.f32.mrf.mxu0
        %v1340 = vadd.f32 0.0, %v1339
        %v1341 = vpop.f32.mrf.mxu0
        %v1342 = vadd.f32 0.0, %v1341
        %1343 = vdwg.mxu0
        %v1344 = vadd.f32 %v1198, %v1269
        %v1345 = vadd.f32 %v1199, %v1271
        %v1346 = vadd.f32 %v1200, %v1340
        %v1347 = vadd.f32 %v1201, %v1342
        %v1348 = vxor.u32 %v1344, 2147483648
        %v1349 = vmul.f32 %v1348, 1.442695
        %v1350 = vpow.pop %v1349
        %v1351 = vadd.f32 %v1350, 1.0
        %v1352 = vrcp.pop %v1351
        %v1353 = vmul.f32 1.0, %v1352
        %v1354 = vxor.u32 %v1345, 2147483648
        %v1355 = vmul.f32 %v1354, 1.442695
        %v1356 = vpow.pop %v1355
        %v1357 = vadd.f32 %v1356, 1.0
        %v1358 = vrcp.pop %v1357
        %v1359 = vmul.f32 1.0, %v1358
        %v1360 = vtanh.pop %v1346
        %v1361 = vxor.u32 %v1347, 2147483648
        %v1362 = vmul.f32 %v1361, 1.442695
        %v1363 = vpow.pop %v1362
        %v1364 = vadd.f32 %v1363, 1.0
        %v1365 = vrcp.pop %v1364
        %v1366 = vmul.f32 1.0, %v1365
        %v1367 = vld [vmem:[#allocation3] sm:$0xff]
        %v1368 = vmul.f32 %v1359, %v1367
        %v1369 = vmul.f32 %v1353, %v1360
        %v1370 = vadd.f32 %v1368, %v1369
        %v1371 = vtanh.pop %v1370
        %v1372 = vmul.f32 %v1366, %v1371
        %1373 = vst [vmem:[#allocation3] sm:$0xff] %v1370
        %1374 = vst [vmem:[#allocation2] sm:$0xff] %v1372
        %s1375 = scalar_lea.vmem [#allocation5], 24
        %1376 = vst [vmem:[%s1375] sm:$0xff] %v1372
        %v1377 = vld [vmem:[#allocation5] sm:$0xff]
        %v1378 = vld [vmem:[#allocation5 + $0x8] sm:$0xff]
        %v1379 = vld [vmem:[#allocation5 + $0x10] sm:$0xff]
        %v1380 = vld [vmem:[#allocation5 + $0x18] sm:$0xff]
        %s1381 = scalar_lea.vmem [#allocation6], 512
        %v1382 = vld [vmem:[%s1381] sm:$0xff]
        %v1383 = vld [vmem:[%s1381 + $0x8] sm:$0xff]
        %v1384 = vld [vmem:[%s1381 + $0x10] sm:$0xff]
        %v1385 = vld [vmem:[%s1381 + $0x18] sm:$0xff]
        %v1386 = vld [vmem:[%s1381 + $0x20] sm:$0xff]
        %v1387 = vld [vmem:[%s1381 + $0x28] sm:$0xff]
        %v1388 = vld [vmem:[%s1381 + $0x30] sm:$0xff]
        %v1389 = vld [vmem:[%s1381 + $0x38] sm:$0xff]
        %v1390 = vld [vmem:[%s1381 + $0x40] sm:$0xff]
        %v1391 = vld [vmem:[%s1381 + $0x48] sm:$0xff]
        %v1392 = vld [vmem:[%s1381 + $0x50] sm:$0xff]
        %v1393 = vld [vmem:[%s1381 + $0x58] sm:$0xff]
        %v1394 = vld [vmem:[%s1381 + $0x60] sm:$0xff]
        %v1395 = vld [vmem:[%s1381 + $0x68] sm:$0xff]
        %v1396 = vld [vmem:[%s1381 + $0x70] sm:$0xff]
        %v1397 = vld [vmem:[%s1381 + $0x78] sm:$0xff]
        %v1398 = vld [vmem:[%s1381 + $0x80] sm:$0xff]
        %v1399 = vld [vmem:[%s1381 + $0x88] sm:$0xff]
        %v1400 = vld [vmem:[%s1381 + $0x90] sm:$0xff]
        %v1401 = vld [vmem:[%s1381 + $0x98] sm:$0xff]
        %v1402 = vld [vmem:[%s1381 + $0xa0] sm:$0xff]
        %v1403 = vld [vmem:[%s1381 + $0xa8] sm:$0xff]
        %v1404 = vld [vmem:[%s1381 + $0xb0] sm:$0xff]
        %v1405 = vld [vmem:[%s1381 + $0xb8] sm:$0xff]
        %v1406 = vld [vmem:[%s1381 + $0xc0] sm:$0xff]
        %v1407 = vld [vmem:[%s1381 + $0xc8] sm:$0xff]
        %v1408 = vld [vmem:[%s1381 + $0xd0] sm:$0xff]
        %v1409 = vld [vmem:[%s1381 + $0xd8] sm:$0xff]
        %v1410 = vld [vmem:[%s1381 + $0xe0] sm:$0xff]
        %v1411 = vld [vmem:[%s1381 + $0xe8] sm:$0xff]
        %v1412 = vld [vmem:[%s1381 + $0xf0] sm:$0xff]
        %v1413 = vld [vmem:[%s1381 + $0xf8] sm:$0xff]
        %v1414 = vld [vmem:[%s1381 + $0x100] sm:$0xff]
        %v1415 = vld [vmem:[%s1381 + $0x108] sm:$0xff]
        %v1416 = vld [vmem:[%s1381 + $0x110] sm:$0xff]
        %v1417 = vld [vmem:[%s1381 + $0x118] sm:$0xff]
        %v1418 = vld [vmem:[%s1381 + $0x120] sm:$0xff]
        %v1419 = vld [vmem:[%s1381 + $0x128] sm:$0xff]
        %v1420 = vld [vmem:[%s1381 + $0x130] sm:$0xff]
        %v1421 = vld [vmem:[%s1381 + $0x138] sm:$0xff]
        %v1422 = vld [vmem:[%s1381 + $0x140] sm:$0xff]
        %v1423 = vld [vmem:[%s1381 + $0x148] sm:$0xff]
        %v1424 = vld [vmem:[%s1381 + $0x150] sm:$0xff]
        %v1425 = vld [vmem:[%s1381 + $0x158] sm:$0xff]
        %v1426 = vld [vmem:[%s1381 + $0x160] sm:$0xff]
        %v1427 = vld [vmem:[%s1381 + $0x168] sm:$0xff]
        %v1428 = vld [vmem:[%s1381 + $0x170] sm:$0xff]
        %v1429 = vld [vmem:[%s1381 + $0x178] sm:$0xff]
        %v1430 = vld [vmem:[%s1381 + $0x180] sm:$0xff]
        %v1431 = vld [vmem:[%s1381 + $0x188] sm:$0xff]
        %v1432 = vld [vmem:[%s1381 + $0x190] sm:$0xff]
        %v1433 = vld [vmem:[%s1381 + $0x198] sm:$0xff]
        %v1434 = vld [vmem:[%s1381 + $0x1a0] sm:$0xff]
        %v1435 = vld [vmem:[%s1381 + $0x1a8] sm:$0xff]
        %v1436 = vld [vmem:[%s1381 + $0x1b0] sm:$0xff]
        %v1437 = vld [vmem:[%s1381 + $0x1b8] sm:$0xff]
        %v1438 = vld [vmem:[%s1381 + $0x1c0] sm:$0xff]
        %v1439 = vld [vmem:[%s1381 + $0x1c8] sm:$0xff]
        %v1440 = vld [vmem:[%s1381 + $0x1d0] sm:$0xff]
        %v1441 = vld [vmem:[%s1381 + $0x1d8] sm:$0xff]
        %v1442 = vld [vmem:[%s1381 + $0x1e0] sm:$0xff]
        %v1443 = vld [vmem:[%s1381 + $0x1e8] sm:$0xff]
        %v1444 = vld [vmem:[%s1381 + $0x1f0] sm:$0xff]
        %v1445 = vld [vmem:[%s1381 + $0x1f8] sm:$0xff]
        %s1446 = scalar_lea.vmem %s3, 4
        %v1447 = vld [vmem:[%s1446] sm:$0xf]
        %v1449 = vlaneseq
        %v1450 = vshrl.u32 %v1449, 7
        %v1451 = vsub.s32 0, %v1450
        %v1452 = vrot.slane %v1447, %v1451
        %v1453 = vlaneseq
        %v1454 = vshrl.u32 %v1453, 7
        %v1455 = vsub.s32 1, %v1454
        %v1456 = vrot.slane %v1447, %v1455
        %v1457 = vlaneseq
        %v1458 = vshrl.u32 %v1457, 7
        %v1459 = vsub.s32 2, %v1458
        %v1460 = vrot.slane %v1447, %v1459
        %v1461 = vlaneseq
        %v1462 = vshrl.u32 %v1461, 7
        %v1463 = vsub.s32 3, %v1462
        %v1464 = vrot.slane %v1447, %v1463
        %1469 = vmatprep.subr.mxu0 %v1443
        %1470 = vmatpush1.msra.mxu0 %v1442
        %1471 = vmatprep.subr.mxu0 %v1439
        %1472 = vmatpush1.msra.mxu0 %v1438
        %1473 = vmatprep.subr.mxu0 %v1435
        %1474 = vmatpush1.msra.mxu0 %v1434
        %1475 = vmatprep.subr.mxu0 %v1431
        %1476 = vmatpush1.msra.mxu0 %v1430
        %1477 = vmatprep.subr.mxu0 %v1427
        %1478 = vmatpush1.msra.mxu0 %v1426
        %1479 = vmatprep.subr.mxu0 %v1423
        %1480 = vmatpush1.msra.mxu0 %v1422
        %1481 = vmatprep.subr.mxu0 %v1419
        %1482 = vmatpush1.msra.mxu0 %v1418
        %1483 = vmatprep.subr.mxu0 %v1415
        %1484 = vmatpush1.msra.mxu0 %v1414
        %1485 = vmatprep.subr.mxu0 %v1411
        %1486 = vmatpush1.msra.mxu0 %v1410
        %1487 = vmatprep.subr.mxu0 %v1407
        %1488 = vmatpush1.msra.mxu0 %v1406
        %1489 = vmatprep.subr.mxu0 %v1403
        %1490 = vmatpush1.msra.mxu0 %v1402
        %1491 = vmatprep.subr.mxu0 %v1399
        %1492 = vmatpush1.msra.mxu0 %v1398
        %1493 = vmatprep.subr.mxu0 %v1395
        %1494 = vmatpush1.msra.mxu0 %v1394
        %1495 = vmatprep.subr.mxu0 %v1391
        %1496 = vmatpush1.msra.mxu0 %v1390
        %1497 = vmatprep.subr.mxu0 %v1387
        %1498 = vmatpush1.msra.mxu0 %v1386
        %1499 = vmatprep.subr.mxu0 %v1383
        %1500 = vmatpush1.msra.mxu0 %v1382
        %1501 = vmatprep.subr.mxu0 0.0
        %1502 = vmatpush2.msra.mxu0 0.0
        %1503 = vmatprep.subr.mxu0 0.0
        %1504 = vmatpush2.msra.mxu0 0.0
        %1505 = vmatprep.subr.mxu0 0.0
        %1506 = vmatpush2.msra.mxu0 0.0
        %1507 = vmatprep.subr.mxu0 0.0
        %1508 = vmatpush2.msra.mxu0 0.0
        %1509 = vmatprep.subr.mxu0 0.0
        %1510 = vmatpush2.msra.mxu0 0.0
        %1511 = vmatprep.subr.mxu0 0.0
        %1512 = vmatpush2.msra.mxu0 0.0
        %1513 = vmatprep.subr.mxu0 0.0
        %1514 = vmatpush2.msra.mxu0 0.0
        %1515 = vmatprep.subr.mxu0 0.0
        %1516 = vmatpush2.msra.mxu0 0.0
        %1517 = vmatprep.subr.mxu0 0.0
        %1518 = vmatpush2.msra.mxu0 0.0
        %1519 = vmatprep.subr.mxu0 0.0
        %1520 = vmatpush2.msra.mxu0 0.0
        %1521 = vmatprep.subr.mxu0 0.0
        %1522 = vmatpush2.msra.mxu0 0.0
        %1523 = vmatprep.subr.mxu0 0.0
        %1524 = vmatpush2.msra.mxu0 0.0
        %1525 = vmatprep.subr.mxu0 0.0
        %1526 = vmatpush2.msra.mxu0 0.0
        %1527 = vmatprep.subr.mxu0 0.0
        %1528 = vmatpush2.msra.mxu0 0.0
        %1529 = vmatprep.subr.mxu0 0.0
        %1530 = vmatpush2.msra.mxu0 0.0
        %1531 = vmatprep.subr.mxu0 0.0
        %1532 = vmatpush2.msra.mxu0 0.0
        %1533 = vmatprep.mubr.f32.mxu0 0.0
        %1534 = vmatmul.mubr.f32.gmra.mxu0 %v1377
        %v1535 = vpop.f32.mrf.mxu0
        %v1536 = vadd.f32 %v1452, %v1535
        %v1537 = vpop.f32.mrf.mxu0
        %v1538 = vadd.f32 %v1456, %v1537
        %1539 = vmatprep.mubr.f32.mxu0 0.0
        %1540 = vmatmul.mubr.f32.gmra.mxu0 %v1378
        %v1541 = vpop.f32.mrf.mxu0
        %v1542 = vadd.f32 %v1452, %v1541
        %v1543 = vpop.f32.mrf.mxu0
        %v1544 = vadd.f32 %v1456, %v1543
        %1545 = vmatprep.mubr.f32.mxu0 0.0
        %1546 = vmatmul.mubr.f32.gmra.mxu0 %v1379
        %v1547 = vpop.f32.mrf.mxu0
        %v1548 = vadd.f32 %v1452, %v1547
        %v1549 = vpop.f32.mrf.mxu0
        %v1550 = vadd.f32 %v1456, %v1549
        %1551 = vmatprep.mubr.f32.mxu0 0.0
        %1552 = vmatmul.mubr.f32.gmra.mxu0 %v1380
        %v1553 = vpop.f32.mrf.mxu0
        %v1554 = vadd.f32 %v1452, %v1553
        %v1555 = vpop.f32.mrf.mxu0
        %v1556 = vadd.f32 %v1456, %v1555
        %1557 = vdwg.mxu0
        %1558 = vmatprep.subr.mxu0 %v1445
        %1559 = vmatpush1.msra.mxu0 %v1444
        %1560 = vmatprep.subr.mxu0 %v1441
        %1561 = vmatpush1.msra.mxu0 %v1440
        %1562 = vmatprep.subr.mxu0 %v1437
        %1563 = vmatpush1.msra.mxu0 %v1436
        %1564 = vmatprep.subr.mxu0 %v1433
        %1565 = vmatpush1.msra.mxu0 %v1432
        %1566 = vmatprep.subr.mxu0 %v1429
        %1567 = vmatpush1.msra.mxu0 %v1428
        %1568 = vmatprep.subr.mxu0 %v1425
        %1569 = vmatpush1.msra.mxu0 %v1424
        %1570 = vmatprep.subr.mxu0 %v1421
        %1571 = vmatpush1.msra.mxu0 %v1420
        %1572 = vmatprep.subr.mxu0 %v1417
        %1573 = vmatpush1.msra.mxu0 %v1416
        %1574 = vmatprep.subr.mxu0 %v1413
        %1575 = vmatpush1.msra.mxu0 %v1412
        %1576 = vmatprep.subr.mxu0 %v1409
        %1577 = vmatpush1.msra.mxu0 %v1408
        %1578 = vmatprep.subr.mxu0 %v1405
        %1579 = vmatpush1.msra.mxu0 %v1404
        %1580 = vmatprep.subr.mxu0 %v1401
        %1581 = vmatpush1.msra.mxu0 %v1400
        %1582 = vmatprep.subr.mxu0 %v1397
        %1583 = vmatpush1.msra.mxu0 %v1396
        %1584 = vmatprep.subr.mxu0 %v1393
        %1585 = vmatpush1.msra.mxu0 %v1392
        %1586 = vmatprep.subr.mxu0 %v1389
        %1587 = vmatpush1.msra.mxu0 %v1388
        %1588 = vmatprep.subr.mxu0 %v1385
        %1589 = vmatpush1.msra.mxu0 %v1384
        %1590 = vmatprep.subr.mxu0 0.0
        %1591 = vmatpush2.msra.mxu0 0.0
        %1592 = vmatprep.subr.mxu0 0.0
        %1593 = vmatpush2.msra.mxu0 0.0
        %1594 = vmatprep.subr.mxu0 0.0
        %1595 = vmatpush2.msra.mxu0 0.0
        %1596 = vmatprep.subr.mxu0 0.0
        %1597 = vmatpush2.msra.mxu0 0.0
        %1598 = vmatprep.subr.mxu0 0.0
        %1599 = vmatpush2.msra.mxu0 0.0
        %1600 = vmatprep.subr.mxu0 0.0
        %1601 = vmatpush2.msra.mxu0 0.0
        %1602 = vmatprep.subr.mxu0 0.0
        %1603 = vmatpush2.msra.mxu0 0.0
        %1604 = vmatprep.subr.mxu0 0.0
        %1605 = vmatpush2.msra.mxu0 0.0
        %1606 = vmatprep.subr.mxu0 0.0
        %1607 = vmatpush2.msra.mxu0 0.0
        %1608 = vmatprep.subr.mxu0 0.0
        %1609 = vmatpush2.msra.mxu0 0.0
        %1610 = vmatprep.subr.mxu0 0.0
        %1611 = vmatpush2.msra.mxu0 0.0
        %1612 = vmatprep.subr.mxu0 0.0
        %1613 = vmatpush2.msra.mxu0 0.0
        %1614 = vmatprep.subr.mxu0 0.0
        %1615 = vmatpush2.msra.mxu0 0.0
        %1616 = vmatprep.subr.mxu0 0.0
        %1617 = vmatpush2.msra.mxu0 0.0
        %1618 = vmatprep.subr.mxu0 0.0
        %1619 = vmatpush2.msra.mxu0 0.0
        %1620 = vmatprep.subr.mxu0 0.0
        %1621 = vmatpush2.msra.mxu0 0.0
        %1622 = vmatprep.mubr.f32.mxu0 0.0
        %1623 = vmatmul.mubr.f32.gmra.mxu0 %v1377
        %v1624 = vpop.f32.mrf.mxu0
        %v1625 = vadd.f32 %v1460, %v1624
        %v1626 = vpop.f32.mrf.mxu0
        %v1627 = vadd.f32 %v1464, %v1626
        %1628 = vmatprep.mubr.f32.mxu0 0.0
        %1629 = vmatmul.mubr.f32.gmra.mxu0 %v1378
        %v1630 = vpop.f32.mrf.mxu0
        %v1631 = vadd.f32 %v1460, %v1630
        %v1632 = vpop.f32.mrf.mxu0
        %v1633 = vadd.f32 %v1464, %v1632
        %1634 = vmatprep.mubr.f32.mxu0 0.0
        %1635 = vmatmul.mubr.f32.gmra.mxu0 %v1379
        %v1636 = vpop.f32.mrf.mxu0
        %v1637 = vadd.f32 %v1460, %v1636
        %v1638 = vpop.f32.mrf.mxu0
        %v1639 = vadd.f32 %v1464, %v1638
        %1640 = vmatprep.mubr.f32.mxu0 0.0
        %1641 = vmatmul.mubr.f32.gmra.mxu0 %v1380
        %v1642 = vpop.f32.mrf.mxu0
        %v1643 = vadd.f32 %v1460, %v1642
        %v1644 = vpop.f32.mrf.mxu0
        %v1645 = vadd.f32 %v1464, %v1644
        %1646 = vdwg.mxu0
        %1647 = vst [vmem:[#allocation4] sm:$0xff] %v1536
        %1648 = vst [vmem:[#allocation4 + $0x8] sm:$0xff] %v1538
        %1649 = vst [vmem:[#allocation4 + $0x10] sm:$0xff] %v1625
        %1650 = vst [vmem:[#allocation4 + $0x18] sm:$0xff] %v1627
        %1651 = vst [vmem:[#allocation4 + $0x20] sm:$0xff] %v1542
        %1652 = vst [vmem:[#allocation4 + $0x28] sm:$0xff] %v1544
        %1653 = vst [vmem:[#allocation4 + $0x30] sm:$0xff] %v1631
        %1654 = vst [vmem:[#allocation4 + $0x38] sm:$0xff] %v1633
        %1655 = vst [vmem:[#allocation4 + $0x40] sm:$0xff] %v1548
        %1656 = vst [vmem:[#allocation4 + $0x48] sm:$0xff] %v1550
        %1657 = vst [vmem:[#allocation4 + $0x50] sm:$0xff] %v1637
        %1658 = vst [vmem:[#allocation4 + $0x58] sm:$0xff] %v1639
        %1659 = vst [vmem:[#allocation4 + $0x60] sm:$0xff] %v1554
        %1660 = vst [vmem:[#allocation4 + $0x68] sm:$0xff] %v1556
        %1661 = vst [vmem:[#allocation4 + $0x70] sm:$0xff] %v1643
        %1662 = vst [vmem:[#allocation4 + $0x78] sm:$0xff] %v1645
        %s1663 = scalar_lea.vmem [#allocation8], 512
        %v1664 = vld [vmem:[%s1663] sm:$0xff]
        %v1665 = vld [vmem:[%s1663 + $0x8] sm:$0xff]
        %v1666 = vld [vmem:[%s1663 + $0x10] sm:$0xff]
        %v1667 = vld [vmem:[%s1663 + $0x18] sm:$0xff]
        %v1668 = vld [vmem:[%s1663 + $0x20] sm:$0xff]
        %v1669 = vld [vmem:[%s1663 + $0x28] sm:$0xff]
        %v1670 = vld [vmem:[%s1663 + $0x30] sm:$0xff]
        %v1671 = vld [vmem:[%s1663 + $0x38] sm:$0xff]
        %v1672 = vld [vmem:[%s1663 + $0x40] sm:$0xff]
        %v1673 = vld [vmem:[%s1663 + $0x48] sm:$0xff]
        %v1674 = vld [vmem:[%s1663 + $0x50] sm:$0xff]
        %v1675 = vld [vmem:[%s1663 + $0x58] sm:$0xff]
        %v1676 = vld [vmem:[%s1663 + $0x60] sm:$0xff]
        %v1677 = vld [vmem:[%s1663 + $0x68] sm:$0xff]
        %v1678 = vld [vmem:[%s1663 + $0x70] sm:$0xff]
        %v1679 = vld [vmem:[%s1663 + $0x78] sm:$0xff]
        %v1680 = vld [vmem:[%s1663 + $0x80] sm:$0xff]
        %v1681 = vld [vmem:[%s1663 + $0x88] sm:$0xff]
        %v1682 = vld [vmem:[%s1663 + $0x90] sm:$0xff]
        %v1683 = vld [vmem:[%s1663 + $0x98] sm:$0xff]
        %v1684 = vld [vmem:[%s1663 + $0xa0] sm:$0xff]
        %v1685 = vld [vmem:[%s1663 + $0xa8] sm:$0xff]
        %v1686 = vld [vmem:[%s1663 + $0xb0] sm:$0xff]
        %v1687 = vld [vmem:[%s1663 + $0xb8] sm:$0xff]
        %v1688 = vld [vmem:[%s1663 + $0xc0] sm:$0xff]
        %v1689 = vld [vmem:[%s1663 + $0xc8] sm:$0xff]
        %v1690 = vld [vmem:[%s1663 + $0xd0] sm:$0xff]
        %v1691 = vld [vmem:[%s1663 + $0xd8] sm:$0xff]
        %v1692 = vld [vmem:[%s1663 + $0xe0] sm:$0xff]
        %v1693 = vld [vmem:[%s1663 + $0xe8] sm:$0xff]
        %v1694 = vld [vmem:[%s1663 + $0xf0] sm:$0xff]
        %v1695 = vld [vmem:[%s1663 + $0xf8] sm:$0xff]
        %v1696 = vld [vmem:[%s1663 + $0x100] sm:$0xff]
        %v1697 = vld [vmem:[%s1663 + $0x108] sm:$0xff]
        %v1698 = vld [vmem:[%s1663 + $0x110] sm:$0xff]
        %v1699 = vld [vmem:[%s1663 + $0x118] sm:$0xff]
        %v1700 = vld [vmem:[%s1663 + $0x120] sm:$0xff]
        %v1701 = vld [vmem:[%s1663 + $0x128] sm:$0xff]
        %v1702 = vld [vmem:[%s1663 + $0x130] sm:$0xff]
        %v1703 = vld [vmem:[%s1663 + $0x138] sm:$0xff]
        %v1704 = vld [vmem:[%s1663 + $0x140] sm:$0xff]
        %v1705 = vld [vmem:[%s1663 + $0x148] sm:$0xff]
        %v1706 = vld [vmem:[%s1663 + $0x150] sm:$0xff]
        %v1707 = vld [vmem:[%s1663 + $0x158] sm:$0xff]
        %v1708 = vld [vmem:[%s1663 + $0x160] sm:$0xff]
        %v1709 = vld [vmem:[%s1663 + $0x168] sm:$0xff]
        %v1710 = vld [vmem:[%s1663 + $0x170] sm:$0xff]
        %v1711 = vld [vmem:[%s1663 + $0x178] sm:$0xff]
        %v1712 = vld [vmem:[%s1663 + $0x180] sm:$0xff]
        %v1713 = vld [vmem:[%s1663 + $0x188] sm:$0xff]
        %v1714 = vld [vmem:[%s1663 + $0x190] sm:$0xff]
        %v1715 = vld [vmem:[%s1663 + $0x198] sm:$0xff]
        %v1716 = vld [vmem:[%s1663 + $0x1a0] sm:$0xff]
        %v1717 = vld [vmem:[%s1663 + $0x1a8] sm:$0xff]
        %v1718 = vld [vmem:[%s1663 + $0x1b0] sm:$0xff]
        %v1719 = vld [vmem:[%s1663 + $0x1b8] sm:$0xff]
        %v1720 = vld [vmem:[%s1663 + $0x1c0] sm:$0xff]
        %v1721 = vld [vmem:[%s1663 + $0x1c8] sm:$0xff]
        %v1722 = vld [vmem:[%s1663 + $0x1d0] sm:$0xff]
        %v1723 = vld [vmem:[%s1663 + $0x1d8] sm:$0xff]
        %v1724 = vld [vmem:[%s1663 + $0x1e0] sm:$0xff]
        %v1725 = vld [vmem:[%s1663 + $0x1e8] sm:$0xff]
        %v1726 = vld [vmem:[%s1663 + $0x1f0] sm:$0xff]
        %v1727 = vld [vmem:[%s1663 + $0x1f8] sm:$0xff]
        %s1728 = scalar_lea.vmem [#allocation2], 8
        %v1729 = vld [vmem:[%s1728] sm:$0xff]
        %v1730 = vld [vmem:[#allocation4] sm:$0xff]
        %v1731 = vld [vmem:[#allocation4 + $0x8] sm:$0xff]
        %v1732 = vld [vmem:[#allocation4 + $0x10] sm:$0xff]
        %v1733 = vld [vmem:[#allocation4 + $0x18] sm:$0xff]
        %1734 = vmatprep.subr.mxu0 %v1725
        %1735 = vmatpush1.msra.mxu0 %v1724
        %1736 = vmatprep.subr.mxu0 %v1721
        %1737 = vmatpush1.msra.mxu0 %v1720
        %1738 = vmatprep.subr.mxu0 %v1717
        %1739 = vmatpush1.msra.mxu0 %v1716
        %1740 = vmatprep.subr.mxu0 %v1713
        %1741 = vmatpush1.msra.mxu0 %v1712
        %1742 = vmatprep.subr.mxu0 %v1709
        %1743 = vmatpush1.msra.mxu0 %v1708
        %1744 = vmatprep.subr.mxu0 %v1705
        %1745 = vmatpush1.msra.mxu0 %v1704
        %1746 = vmatprep.subr.mxu0 %v1701
        %1747 = vmatpush1.msra.mxu0 %v1700
        %1748 = vmatprep.subr.mxu0 %v1697
        %1749 = vmatpush1.msra.mxu0 %v1696
        %1750 = vmatprep.subr.mxu0 %v1693
        %1751 = vmatpush1.msra.mxu0 %v1692
        %1752 = vmatprep.subr.mxu0 %v1689
        %1753 = vmatpush1.msra.mxu0 %v1688
        %1754 = vmatprep.subr.mxu0 %v1685
        %1755 = vmatpush1.msra.mxu0 %v1684
        %1756 = vmatprep.subr.mxu0 %v1681
        %1757 = vmatpush1.msra.mxu0 %v1680
        %1758 = vmatprep.subr.mxu0 %v1677
        %1759 = vmatpush1.msra.mxu0 %v1676
        %1760 = vmatprep.subr.mxu0 %v1673
        %1761 = vmatpush1.msra.mxu0 %v1672
        %1762 = vmatprep.subr.mxu0 %v1669
        %1763 = vmatpush1.msra.mxu0 %v1668
        %1764 = vmatprep.subr.mxu0 %v1665
        %1765 = vmatpush1.msra.mxu0 %v1664
        %1766 = vmatprep.subr.mxu0 0.0
        %1767 = vmatpush2.msra.mxu0 0.0
        %1768 = vmatprep.subr.mxu0 0.0
        %1769 = vmatpush2.msra.mxu0 0.0
        %1770 = vmatprep.subr.mxu0 0.0
        %1771 = vmatpush2.msra.mxu0 0.0
        %1772 = vmatprep.subr.mxu0 0.0
        %1773 = vmatpush2.msra.mxu0 0.0
        %1774 = vmatprep.subr.mxu0 0.0
        %1775 = vmatpush2.msra.mxu0 0.0
        %1776 = vmatprep.subr.mxu0 0.0
        %1777 = vmatpush2.msra.mxu0 0.0
        %1778 = vmatprep.subr.mxu0 0.0
        %1779 = vmatpush2.msra.mxu0 0.0
        %1780 = vmatprep.subr.mxu0 0.0
        %1781 = vmatpush2.msra.mxu0 0.0
        %1782 = vmatprep.subr.mxu0 0.0
        %1783 = vmatpush2.msra.mxu0 0.0
        %1784 = vmatprep.subr.mxu0 0.0
        %1785 = vmatpush2.msra.mxu0 0.0
        %1786 = vmatprep.subr.mxu0 0.0
        %1787 = vmatpush2.msra.mxu0 0.0
        %1788 = vmatprep.subr.mxu0 0.0
        %1789 = vmatpush2.msra.mxu0 0.0
        %1790 = vmatprep.subr.mxu0 0.0
        %1791 = vmatpush2.msra.mxu0 0.0
        %1792 = vmatprep.subr.mxu0 0.0
        %1793 = vmatpush2.msra.mxu0 0.0
        %1794 = vmatprep.subr.mxu0 0.0
        %1795 = vmatpush2.msra.mxu0 0.0
        %1796 = vmatprep.subr.mxu0 0.0
        %1797 = vmatpush2.msra.mxu0 0.0
        %1798 = vmatprep.mubr.f32.mxu0 0.0
        %1799 = vmatmul.mubr.f32.gmra.mxu0 %v1729
        %v1800 = vpop.f32.mrf.mxu0
        %v1801 = vadd.f32 0.0, %v1800
        %v1802 = vpop.f32.mrf.mxu0
        %v1803 = vadd.f32 0.0, %v1802
        %1804 = vdwg.mxu0
        %1805 = vmatprep.subr.mxu0 %v1727
        %1806 = vmatpush1.msra.mxu0 %v1726
        %1807 = vmatprep.subr.mxu0 %v1723
        %1808 = vmatpush1.msra.mxu0 %v1722
        %1809 = vmatprep.subr.mxu0 %v1719
        %1810 = vmatpush1.msra.mxu0 %v1718
        %1811 = vmatprep.subr.mxu0 %v1715
        %1812 = vmatpush1.msra.mxu0 %v1714
        %1813 = vmatprep.subr.mxu0 %v1711
        %1814 = vmatpush1.msra.mxu0 %v1710
        %1815 = vmatprep.subr.mxu0 %v1707
        %1816 = vmatpush1.msra.mxu0 %v1706
        %1817 = vmatprep.subr.mxu0 %v1703
        %1818 = vmatpush1.msra.mxu0 %v1702
        %1819 = vmatprep.subr.mxu0 %v1699
        %1820 = vmatpush1.msra.mxu0 %v1698
        %1821 = vmatprep.subr.mxu0 %v1695
        %1822 = vmatpush1.msra.mxu0 %v1694
        %1823 = vmatprep.subr.mxu0 %v1691
        %1824 = vmatpush1.msra.mxu0 %v1690
        %1825 = vmatprep.subr.mxu0 %v1687
        %1826 = vmatpush1.msra.mxu0 %v1686
        %1827 = vmatprep.subr.mxu0 %v1683
        %1828 = vmatpush1.msra.mxu0 %v1682
        %1829 = vmatprep.subr.mxu0 %v1679
        %1830 = vmatpush1.msra.mxu0 %v1678
        %1831 = vmatprep.subr.mxu0 %v1675
        %1832 = vmatpush1.msra.mxu0 %v1674
        %1833 = vmatprep.subr.mxu0 %v1671
        %1834 = vmatpush1.msra.mxu0 %v1670
        %1835 = vmatprep.subr.mxu0 %v1667
        %1836 = vmatpush1.msra.mxu0 %v1666
        %1837 = vmatprep.subr.mxu0 0.0
        %1838 = vmatpush2.msra.mxu0 0.0
        %1839 = vmatprep.subr.mxu0 0.0
        %1840 = vmatpush2.msra.mxu0 0.0
        %1841 = vmatprep.subr.mxu0 0.0
        %1842 = vmatpush2.msra.mxu0 0.0
        %1843 = vmatprep.subr.mxu0 0.0
        %1844 = vmatpush2.msra.mxu0 0.0
        %1845 = vmatprep.subr.mxu0 0.0
        %1846 = vmatpush2.msra.mxu0 0.0
        %1847 = vmatprep.subr.mxu0 0.0
        %1848 = vmatpush2.msra.mxu0 0.0
        %1849 = vmatprep.subr.mxu0 0.0
        %1850 = vmatpush2.msra.mxu0 0.0
        %1851 = vmatprep.subr.mxu0 0.0
        %1852 = vmatpush2.msra.mxu0 0.0
        %1853 = vmatprep.subr.mxu0 0.0
        %1854 = vmatpush2.msra.mxu0 0.0
        %1855 = vmatprep.subr.mxu0 0.0
        %1856 = vmatpush2.msra.mxu0 0.0
        %1857 = vmatprep.subr.mxu0 0.0
        %1858 = vmatpush2.msra.mxu0 0.0
        %1859 = vmatprep.subr.mxu0 0.0
        %1860 = vmatpush2.msra.mxu0 0.0
        %1861 = vmatprep.subr.mxu0 0.0
        %1862 = vmatpush2.msra.mxu0 0.0
        %1863 = vmatprep.subr.mxu0 0.0
        %1864 = vmatpush2.msra.mxu0 0.0
        %1865 = vmatprep.subr.mxu0 0.0
        %1866 = vmatpush2.msra.mxu0 0.0
        %1867 = vmatprep.subr.mxu0 0.0
        %1868 = vmatpush2.msra.mxu0 0.0
        %1869 = vmatprep.mubr.f32.mxu0 0.0
        %1870 = vmatmul.mubr.f32.gmra.mxu0 %v1729
        %v1871 = vpop.f32.mrf.mxu0
        %v1872 = vadd.f32 0.0, %v1871
        %v1873 = vpop.f32.mrf.mxu0
        %v1874 = vadd.f32 0.0, %v1873
        %1875 = vdwg.mxu0
        %v1876 = vadd.f32 %v1730, %v1801
        %v1877 = vadd.f32 %v1731, %v1803
        %v1878 = vadd.f32 %v1732, %v1872
        %v1879 = vadd.f32 %v1733, %v1874
        %v1880 = vxor.u32 %v1876, 2147483648
        %v1881 = vmul.f32 %v1880, 1.442695
        %v1882 = vpow.pop %v1881
        %v1883 = vadd.f32 %v1882, 1.0
        %v1884 = vrcp.pop %v1883
        %v1885 = vmul.f32 1.0, %v1884
        %v1886 = vxor.u32 %v1877, 2147483648
        %v1887 = vmul.f32 %v1886, 1.442695
        %v1888 = vpow.pop %v1887
        %v1889 = vadd.f32 %v1888, 1.0
        %v1890 = vrcp.pop %v1889
        %v1891 = vmul.f32 1.0, %v1890
        %v1892 = vtanh.pop %v1878
        %v1893 = vxor.u32 %v1879, 2147483648
        %v1894 = vmul.f32 %v1893, 1.442695
        %v1895 = vpow.pop %v1894
        %v1896 = vadd.f32 %v1895, 1.0
        %v1897 = vrcp.pop %v1896
        %v1898 = vmul.f32 1.0, %v1897
        %s1899 = scalar_lea.vmem [#allocation3], 8
        %v1900 = vld [vmem:[%s1899] sm:$0xff]
        %v1901 = vmul.f32 %v1891, %v1900
        %v1902 = vmul.f32 %v1885, %v1892
        %v1903 = vadd.f32 %v1901, %v1902
        %v1904 = vtanh.pop %v1903
        %v1905 = vmul.f32 %v1898, %v1904
        %1906 = vst [vmem:[%s1899] sm:$0xff] %v1903
        %1907 = vst [vmem:[%s1728] sm:$0xff] %v1905
        %1908 = vst [vmem:[#allocation5] sm:$0xff] %v1905
        %v1909 = vld [vmem:[%s1728] sm:$0xff]
        %v1910 = vld [vmem:[%s835] sm:$0xff]
        %v1911 = vld [vmem:[%s835 + $0x8] sm:$0xff]
        %v1912 = vld [vmem:[%s835 + $0x10] sm:$0xff]
        %v1913 = vld [vmem:[%s835 + $0x18] sm:$0xff]
        %1914 = vmatprep.subr.mxu0 %v1725
        %1915 = vmatpush1.msra.mxu0 %v1724
        %1916 = vmatprep.subr.mxu0 %v1721
        %1917 = vmatpush1.msra.mxu0 %v1720
        %1918 = vmatprep.subr.mxu0 %v1717
        %1919 = vmatpush1.msra.mxu0 %v1716
        %1920 = vmatprep.subr.mxu0 %v1713
        %1921 = vmatpush1.msra.mxu0 %v1712
        %1922 = vmatprep.subr.mxu0 %v1709
        %1923 = vmatpush1.msra.mxu0 %v1708
        %1924 = vmatprep.subr.mxu0 %v1705
        %1925 = vmatpush1.msra.mxu0 %v1704
        %1926 = vmatprep.subr.mxu0 %v1701
        %1927 = vmatpush1.msra.mxu0 %v1700
        %1928 = vmatprep.subr.mxu0 %v1697
        %1929 = vmatpush1.msra.mxu0 %v1696
        %1930 = vmatprep.subr.mxu0 %v1693
        %1931 = vmatpush1.msra.mxu0 %v1692
        %1932 = vmatprep.subr.mxu0 %v1689
        %1933 = vmatpush1.msra.mxu0 %v1688
        %1934 = vmatprep.subr.mxu0 %v1685
        %1935 = vmatpush1.msra.mxu0 %v1684
        %1936 = vmatprep.subr.mxu0 %v1681
        %1937 = vmatpush1.msra.mxu0 %v1680
        %1938 = vmatprep.subr.mxu0 %v1677
        %1939 = vmatpush1.msra.mxu0 %v1676
        %1940 = vmatprep.subr.mxu0 %v1673
        %1941 = vmatpush1.msra.mxu0 %v1672
        %1942 = vmatprep.subr.mxu0 %v1669
        %1943 = vmatpush1.msra.mxu0 %v1668
        %1944 = vmatprep.subr.mxu0 %v1665
        %1945 = vmatpush1.msra.mxu0 %v1664
        %1946 = vmatprep.subr.mxu0 0.0
        %1947 = vmatpush2.msra.mxu0 0.0
        %1948 = vmatprep.subr.mxu0 0.0
        %1949 = vmatpush2.msra.mxu0 0.0
        %1950 = vmatprep.subr.mxu0 0.0
        %1951 = vmatpush2.msra.mxu0 0.0
        %1952 = vmatprep.subr.mxu0 0.0
        %1953 = vmatpush2.msra.mxu0 0.0
        %1954 = vmatprep.subr.mxu0 0.0
        %1955 = vmatpush2.msra.mxu0 0.0
        %1956 = vmatprep.subr.mxu0 0.0
        %1957 = vmatpush2.msra.mxu0 0.0
        %1958 = vmatprep.subr.mxu0 0.0
        %1959 = vmatpush2.msra.mxu0 0.0
        %1960 = vmatprep.subr.mxu0 0.0
        %1961 = vmatpush2.msra.mxu0 0.0
        %1962 = vmatprep.subr.mxu0 0.0
        %1963 = vmatpush2.msra.mxu0 0.0
        %1964 = vmatprep.subr.mxu0 0.0
        %1965 = vmatpush2.msra.mxu0 0.0
        %1966 = vmatprep.subr.mxu0 0.0
        %1967 = vmatpush2.msra.mxu0 0.0
        %1968 = vmatprep.subr.mxu0 0.0
        %1969 = vmatpush2.msra.mxu0 0.0
        %1970 = vmatprep.subr.mxu0 0.0
        %1971 = vmatpush2.msra.mxu0 0.0
        %1972 = vmatprep.subr.mxu0 0.0
        %1973 = vmatpush2.msra.mxu0 0.0
        %1974 = vmatprep.subr.mxu0 0.0
        %1975 = vmatpush2.msra.mxu0 0.0
        %1976 = vmatprep.subr.mxu0 0.0
        %1977 = vmatpush2.msra.mxu0 0.0
        %1978 = vmatprep.mubr.f32.mxu0 0.0
        %1979 = vmatmul.mubr.f32.gmra.mxu0 %v1909
        %v1980 = vpop.f32.mrf.mxu0
        %v1981 = vadd.f32 0.0, %v1980
        %v1982 = vpop.f32.mrf.mxu0
        %v1983 = vadd.f32 0.0, %v1982
        %1984 = vdwg.mxu0
        %1985 = vmatprep.subr.mxu0 %v1727
        %1986 = vmatpush1.msra.mxu0 %v1726
        %1987 = vmatprep.subr.mxu0 %v1723
        %1988 = vmatpush1.msra.mxu0 %v1722
        %1989 = vmatprep.subr.mxu0 %v1719
        %1990 = vmatpush1.msra.mxu0 %v1718
        %1991 = vmatprep.subr.mxu0 %v1715
        %1992 = vmatpush1.msra.mxu0 %v1714
        %1993 = vmatprep.subr.mxu0 %v1711
        %1994 = vmatpush1.msra.mxu0 %v1710
        %1995 = vmatprep.subr.mxu0 %v1707
        %1996 = vmatpush1.msra.mxu0 %v1706
        %1997 = vmatprep.subr.mxu0 %v1703
        %1998 = vmatpush1.msra.mxu0 %v1702
        %1999 = vmatprep.subr.mxu0 %v1699
        %2000 = vmatpush1.msra.mxu0 %v1698
        %2001 = vmatprep.subr.mxu0 %v1695
        %2002 = vmatpush1.msra.mxu0 %v1694
        %2003 = vmatprep.subr.mxu0 %v1691
        %2004 = vmatpush1.msra.mxu0 %v1690
        %2005 = vmatprep.subr.mxu0 %v1687
        %2006 = vmatpush1.msra.mxu0 %v1686
        %2007 = vmatprep.subr.mxu0 %v1683
        %2008 = vmatpush1.msra.mxu0 %v1682
        %2009 = vmatprep.subr.mxu0 %v1679
        %2010 = vmatpush1.msra.mxu0 %v1678
        %2011 = vmatprep.subr.mxu0 %v1675
        %2012 = vmatpush1.msra.mxu0 %v1674
        %2013 = vmatprep.subr.mxu0 %v1671
        %2014 = vmatpush1.msra.mxu0 %v1670
        %2015 = vmatprep.subr.mxu0 %v1667
        %2016 = vmatpush1.msra.mxu0 %v1666
        %2017 = vmatprep.subr.mxu0 0.0
        %2018 = vmatpush2.msra.mxu0 0.0
        %2019 = vmatprep.subr.mxu0 0.0
        %2020 = vmatpush2.msra.mxu0 0.0
        %2021 = vmatprep.subr.mxu0 0.0
        %2022 = vmatpush2.msra.mxu0 0.0
        %2023 = vmatprep.subr.mxu0 0.0
        %2024 = vmatpush2.msra.mxu0 0.0
        %2025 = vmatprep.subr.mxu0 0.0
        %2026 = vmatpush2.msra.mxu0 0.0
        %2027 = vmatprep.subr.mxu0 0.0
        %2028 = vmatpush2.msra.mxu0 0.0
        %2029 = vmatprep.subr.mxu0 0.0
        %2030 = vmatpush2.msra.mxu0 0.0
        %2031 = vmatprep.subr.mxu0 0.0
        %2032 = vmatpush2.msra.mxu0 0.0
        %2033 = vmatprep.subr.mxu0 0.0
        %2034 = vmatpush2.msra.mxu0 0.0
        %2035 = vmatprep.subr.mxu0 0.0
        %2036 = vmatpush2.msra.mxu0 0.0
        %2037 = vmatprep.subr.mxu0 0.0
        %2038 = vmatpush2.msra.mxu0 0.0
        %2039 = vmatprep.subr.mxu0 0.0
        %2040 = vmatpush2.msra.mxu0 0.0
        %2041 = vmatprep.subr.mxu0 0.0
        %2042 = vmatpush2.msra.mxu0 0.0
        %2043 = vmatprep.subr.mxu0 0.0
        %2044 = vmatpush2.msra.mxu0 0.0
        %2045 = vmatprep.subr.mxu0 0.0
        %2046 = vmatpush2.msra.mxu0 0.0
        %2047 = vmatprep.subr.mxu0 0.0
        %2048 = vmatpush2.msra.mxu0 0.0
        %2049 = vmatprep.mubr.f32.mxu0 0.0
        %2050 = vmatmul.mubr.f32.gmra.mxu0 %v1909
        %v2051 = vpop.f32.mrf.mxu0
        %v2052 = vadd.f32 0.0, %v2051
        %v2053 = vpop.f32.mrf.mxu0
        %v2054 = vadd.f32 0.0, %v2053
        %2055 = vdwg.mxu0
        %v2056 = vadd.f32 %v1910, %v1981
        %v2057 = vadd.f32 %v1911, %v1983
        %v2058 = vadd.f32 %v1912, %v2052
        %v2059 = vadd.f32 %v1913, %v2054
        %v2060 = vxor.u32 %v2056, 2147483648
        %v2061 = vmul.f32 %v2060, 1.442695
        %v2062 = vpow.pop %v2061
        %v2063 = vadd.f32 %v2062, 1.0
        %v2064 = vrcp.pop %v2063
        %v2065 = vmul.f32 1.0, %v2064
        %v2066 = vxor.u32 %v2057, 2147483648
        %v2067 = vmul.f32 %v2066, 1.442695
        %v2068 = vpow.pop %v2067
        %v2069 = vadd.f32 %v2068, 1.0
        %v2070 = vrcp.pop %v2069
        %v2071 = vmul.f32 1.0, %v2070
        %v2072 = vtanh.pop %v2058
        %v2073 = vxor.u32 %v2059, 2147483648
        %v2074 = vmul.f32 %v2073, 1.442695
        %v2075 = vpow.pop %v2074
        %v2076 = vadd.f32 %v2075, 1.0
        %v2077 = vrcp.pop %v2076
        %v2078 = vmul.f32 1.0, %v2077
        %v2079 = vld [vmem:[%s1899] sm:$0xff]
        %v2080 = vmul.f32 %v2071, %v2079
        %v2081 = vmul.f32 %v2065, %v2072
        %v2082 = vadd.f32 %v2080, %v2081
        %v2083 = vtanh.pop %v2082
        %v2084 = vmul.f32 %v2078, %v2083
        %2085 = vst [vmem:[%s1899] sm:$0xff] %v2082
        %2086 = vst [vmem:[%s1728] sm:$0xff] %v2084
        %2087 = vst [vmem:[%s1013] sm:$0xff] %v2084
        %v2088 = vld [vmem:[%s1728] sm:$0xff]
        %v2089 = vld [vmem:[%s1016] sm:$0xff]
        %v2090 = vld [vmem:[%s1016 + $0x8] sm:$0xff]
        %v2091 = vld [vmem:[%s1016 + $0x10] sm:$0xff]
        %v2092 = vld [vmem:[%s1016 + $0x18] sm:$0xff]
        %2093 = vmatprep.subr.mxu0 %v1725
        %2094 = vmatpush1.msra.mxu0 %v1724
        %2095 = vmatprep.subr.mxu0 %v1721
        %2096 = vmatpush1.msra.mxu0 %v1720
        %2097 = vmatprep.subr.mxu0 %v1717
        %2098 = vmatpush1.msra.mxu0 %v1716
        %2099 = vmatprep.subr.mxu0 %v1713
        %2100 = vmatpush1.msra.mxu0 %v1712
        %2101 = vmatprep.subr.mxu0 %v1709
        %2102 = vmatpush1.msra.mxu0 %v1708
        %2103 = vmatprep.subr.mxu0 %v1705
        %2104 = vmatpush1.msra.mxu0 %v1704
        %2105 = vmatprep.subr.mxu0 %v1701
        %2106 = vmatpush1.msra.mxu0 %v1700
        %2107 = vmatprep.subr.mxu0 %v1697
        %2108 = vmatpush1.msra.mxu0 %v1696
        %2109 = vmatprep.subr.mxu0 %v1693
        %2110 = vmatpush1.msra.mxu0 %v1692
        %2111 = vmatprep.subr.mxu0 %v1689
        %2112 = vmatpush1.msra.mxu0 %v1688
        %2113 = vmatprep.subr.mxu0 %v1685
        %2114 = vmatpush1.msra.mxu0 %v1684
        %2115 = vmatprep.subr.mxu0 %v1681
        %2116 = vmatpush1.msra.mxu0 %v1680
        %2117 = vmatprep.subr.mxu0 %v1677
        %2118 = vmatpush1.msra.mxu0 %v1676
        %2119 = vmatprep.subr.mxu0 %v1673
        %2120 = vmatpush1.msra.mxu0 %v1672
        %2121 = vmatprep.subr.mxu0 %v1669
        %2122 = vmatpush1.msra.mxu0 %v1668
        %2123 = vmatprep.subr.mxu0 %v1665
        %2124 = vmatpush1.msra.mxu0 %v1664
        %2125 = vmatprep.subr.mxu0 0.0
        %2126 = vmatpush2.msra.mxu0 0.0
        %2127 = vmatprep.subr.mxu0 0.0
        %2128 = vmatpush2.msra.mxu0 0.0
        %2129 = vmatprep.subr.mxu0 0.0
        %2130 = vmatpush2.msra.mxu0 0.0
        %2131 = vmatprep.subr.mxu0 0.0
        %2132 = vmatpush2.msra.mxu0 0.0
        %2133 = vmatprep.subr.mxu0 0.0
        %2134 = vmatpush2.msra.mxu0 0.0
        %2135 = vmatprep.subr.mxu0 0.0
        %2136 = vmatpush2.msra.mxu0 0.0
        %2137 = vmatprep.subr.mxu0 0.0
        %2138 = vmatpush2.msra.mxu0 0.0
        %2139 = vmatprep.subr.mxu0 0.0
        %2140 = vmatpush2.msra.mxu0 0.0
        %2141 = vmatprep.subr.mxu0 0.0
        %2142 = vmatpush2.msra.mxu0 0.0
        %2143 = vmatprep.subr.mxu0 0.0
        %2144 = vmatpush2.msra.mxu0 0.0
        %2145 = vmatprep.subr.mxu0 0.0
        %2146 = vmatpush2.msra.mxu0 0.0
        %2147 = vmatprep.subr.mxu0 0.0
        %2148 = vmatpush2.msra.mxu0 0.0
        %2149 = vmatprep.subr.mxu0 0.0
        %2150 = vmatpush2.msra.mxu0 0.0
        %2151 = vmatprep.subr.mxu0 0.0
        %2152 = vmatpush2.msra.mxu0 0.0
        %2153 = vmatprep.subr.mxu0 0.0
        %2154 = vmatpush2.msra.mxu0 0.0
        %2155 = vmatprep.subr.mxu0 0.0
        %2156 = vmatpush2.msra.mxu0 0.0
        %2157 = vmatprep.mubr.f32.mxu0 0.0
        %2158 = vmatmul.mubr.f32.gmra.mxu0 %v2088
        %v2159 = vpop.f32.mrf.mxu0
        %v2160 = vadd.f32 0.0, %v2159
        %v2161 = vpop.f32.mrf.mxu0
        %v2162 = vadd.f32 0.0, %v2161
        %2163 = vdwg.mxu0
        %2164 = vmatprep.subr.mxu0 %v1727
        %2165 = vmatpush1.msra.mxu0 %v1726
        %2166 = vmatprep.subr.mxu0 %v1723
        %2167 = vmatpush1.msra.mxu0 %v1722
        %2168 = vmatprep.subr.mxu0 %v1719
        %2169 = vmatpush1.msra.mxu0 %v1718
        %2170 = vmatprep.subr.mxu0 %v1715
        %2171 = vmatpush1.msra.mxu0 %v1714
        %2172 = vmatprep.subr.mxu0 %v1711
        %2173 = vmatpush1.msra.mxu0 %v1710
        %2174 = vmatprep.subr.mxu0 %v1707
        %2175 = vmatpush1.msra.mxu0 %v1706
        %2176 = vmatprep.subr.mxu0 %v1703
        %2177 = vmatpush1.msra.mxu0 %v1702
        %2178 = vmatprep.subr.mxu0 %v1699
        %2179 = vmatpush1.msra.mxu0 %v1698
        %2180 = vmatprep.subr.mxu0 %v1695
        %2181 = vmatpush1.msra.mxu0 %v1694
        %2182 = vmatprep.subr.mxu0 %v1691
        %2183 = vmatpush1.msra.mxu0 %v1690
        %2184 = vmatprep.subr.mxu0 %v1687
        %2185 = vmatpush1.msra.mxu0 %v1686
        %2186 = vmatprep.subr.mxu0 %v1683
        %2187 = vmatpush1.msra.mxu0 %v1682
        %2188 = vmatprep.subr.mxu0 %v1679
        %2189 = vmatpush1.msra.mxu0 %v1678
        %2190 = vmatprep.subr.mxu0 %v1675
        %2191 = vmatpush1.msra.mxu0 %v1674
        %2192 = vmatprep.subr.mxu0 %v1671
        %2193 = vmatpush1.msra.mxu0 %v1670
        %2194 = vmatprep.subr.mxu0 %v1667
        %2195 = vmatpush1.msra.mxu0 %v1666
        %2196 = vmatprep.subr.mxu0 0.0
        %2197 = vmatpush2.msra.mxu0 0.0
        %2198 = vmatprep.subr.mxu0 0.0
        %2199 = vmatpush2.msra.mxu0 0.0
        %2200 = vmatprep.subr.mxu0 0.0
        %2201 = vmatpush2.msra.mxu0 0.0
        %2202 = vmatprep.subr.mxu0 0.0
        %2203 = vmatpush2.msra.mxu0 0.0
        %2204 = vmatprep.subr.mxu0 0.0
        %2205 = vmatpush2.msra.mxu0 0.0
        %2206 = vmatprep.subr.mxu0 0.0
        %2207 = vmatpush2.msra.mxu0 0.0
        %2208 = vmatprep.subr.mxu0 0.0
        %2209 = vmatpush2.msra.mxu0 0.0
        %2210 = vmatprep.subr.mxu0 0.0
        %2211 = vmatpush2.msra.mxu0 0.0
        %2212 = vmatprep.subr.mxu0 0.0
        %2213 = vmatpush2.msra.mxu0 0.0
        %2214 = vmatprep.subr.mxu0 0.0
        %2215 = vmatpush2.msra.mxu0 0.0
        %2216 = vmatprep.subr.mxu0 0.0
        %2217 = vmatpush2.msra.mxu0 0.0
        %2218 = vmatprep.subr.mxu0 0.0
        %2219 = vmatpush2.msra.mxu0 0.0
        %2220 = vmatprep.subr.mxu0 0.0
        %2221 = vmatpush2.msra.mxu0 0.0
        %2222 = vmatprep.subr.mxu0 0.0
        %2223 = vmatpush2.msra.mxu0 0.0
        %2224 = vmatprep.subr.mxu0 0.0
        %2225 = vmatpush2.msra.mxu0 0.0
        %2226 = vmatprep.subr.mxu0 0.0
        %2227 = vmatpush2.msra.mxu0 0.0
        %2228 = vmatprep.mubr.f32.mxu0 0.0
        %2229 = vmatmul.mubr.f32.gmra.mxu0 %v2088
        %v2230 = vpop.f32.mrf.mxu0
        %v2231 = vadd.f32 0.0, %v2230
        %v2232 = vpop.f32.mrf.mxu0
        %v2233 = vadd.f32 0.0, %v2232
        %2234 = vdwg.mxu0
        %v2235 = vadd.f32 %v2089, %v2160
        %v2236 = vadd.f32 %v2090, %v2162
        %v2237 = vadd.f32 %v2091, %v2231
        %v2238 = vadd.f32 %v2092, %v2233
        %v2239 = vxor.u32 %v2235, 2147483648
        %v2240 = vmul.f32 %v2239, 1.442695
        %v2241 = vpow.pop %v2240
        %v2242 = vadd.f32 %v2241, 1.0
        %v2243 = vrcp.pop %v2242
        %v2244 = vmul.f32 1.0, %v2243
        %v2245 = vxor.u32 %v2236, 2147483648
        %v2246 = vmul.f32 %v2245, 1.442695
        %v2247 = vpow.pop %v2246
        %v2248 = vadd.f32 %v2247, 1.0
        %v2249 = vrcp.pop %v2248
        %v2250 = vmul.f32 1.0, %v2249
        %v2251 = vtanh.pop %v2237
        %v2252 = vxor.u32 %v2238, 2147483648
        %v2253 = vmul.f32 %v2252, 1.442695
        %v2254 = vpow.pop %v2253
        %v2255 = vadd.f32 %v2254, 1.0
        %v2256 = vrcp.pop %v2255
        %v2257 = vmul.f32 1.0, %v2256
        %v2258 = vld [vmem:[%s1899] sm:$0xff]
        %v2259 = vmul.f32 %v2250, %v2258
        %v2260 = vmul.f32 %v2244, %v2251
        %v2261 = vadd.f32 %v2259, %v2260
        %v2262 = vtanh.pop %v2261
        %v2263 = vmul.f32 %v2257, %v2262
        %2264 = vst [vmem:[%s1899] sm:$0xff] %v2261
        %2265 = vst [vmem:[%s1728] sm:$0xff] %v2263
        %2266 = vst [vmem:[%s1194] sm:$0xff] %v2263
        %v2267 = vld [vmem:[%s1728] sm:$0xff]
        %v2268 = vld [vmem:[%s1197] sm:$0xff]
        %v2269 = vld [vmem:[%s1197 + $0x8] sm:$0xff]
        %v2270 = vld [vmem:[%s1197 + $0x10] sm:$0xff]
        %v2271 = vld [vmem:[%s1197 + $0x18] sm:$0xff]
        %2272 = vmatprep.subr.mxu0 %v1725
        %2273 = vmatpush1.msra.mxu0 %v1724
        %2274 = vmatprep.subr.mxu0 %v1721
        %2275 = vmatpush1.msra.mxu0 %v1720
        %2276 = vmatprep.subr.mxu0 %v1717
        %2277 = vmatpush1.msra.mxu0 %v1716
        %2278 = vmatprep.subr.mxu0 %v1713
        %2279 = vmatpush1.msra.mxu0 %v1712
        %2280 = vmatprep.subr.mxu0 %v1709
        %2281 = vmatpush1.msra.mxu0 %v1708
        %2282 = vmatprep.subr.mxu0 %v1705
        %2283 = vmatpush1.msra.mxu0 %v1704
        %2284 = vmatprep.subr.mxu0 %v1701
        %2285 = vmatpush1.msra.mxu0 %v1700
        %2286 = vmatprep.subr.mxu0 %v1697
        %2287 = vmatpush1.msra.mxu0 %v1696
        %2288 = vmatprep.subr.mxu0 %v1693
        %2289 = vmatpush1.msra.mxu0 %v1692
        %2290 = vmatprep.subr.mxu0 %v1689
        %2291 = vmatpush1.msra.mxu0 %v1688
        %2292 = vmatprep.subr.mxu0 %v1685
        %2293 = vmatpush1.msra.mxu0 %v1684
        %2294 = vmatprep.subr.mxu0 %v1681
        %2295 = vmatpush1.msra.mxu0 %v1680
        %2296 = vmatprep.subr.mxu0 %v1677
        %2297 = vmatpush1.msra.mxu0 %v1676
        %2298 = vmatprep.subr.mxu0 %v1673
        %2299 = vmatpush1.msra.mxu0 %v1672
        %2300 = vmatprep.subr.mxu0 %v1669
        %2301 = vmatpush1.msra.mxu0 %v1668
        %2302 = vmatprep.subr.mxu0 %v1665
        %2303 = vmatpush1.msra.mxu0 %v1664
        %2304 = vmatprep.subr.mxu0 0.0
        %2305 = vmatpush2.msra.mxu0 0.0
        %2306 = vmatprep.subr.mxu0 0.0
        %2307 = vmatpush2.msra.mxu0 0.0
        %2308 = vmatprep.subr.mxu0 0.0
        %2309 = vmatpush2.msra.mxu0 0.0
        %2310 = vmatprep.subr.mxu0 0.0
        %2311 = vmatpush2.msra.mxu0 0.0
        %2312 = vmatprep.subr.mxu0 0.0
        %2313 = vmatpush2.msra.mxu0 0.0
        %2314 = vmatprep.subr.mxu0 0.0
        %2315 = vmatpush2.msra.mxu0 0.0
        %2316 = vmatprep.subr.mxu0 0.0
        %2317 = vmatpush2.msra.mxu0 0.0
        %2318 = vmatprep.subr.mxu0 0.0
        %2319 = vmatpush2.msra.mxu0 0.0
        %2320 = vmatprep.subr.mxu0 0.0
        %2321 = vmatpush2.msra.mxu0 0.0
        %2322 = vmatprep.subr.mxu0 0.0
        %2323 = vmatpush2.msra.mxu0 0.0
        %2324 = vmatprep.subr.mxu0 0.0
        %2325 = vmatpush2.msra.mxu0 0.0
        %2326 = vmatprep.subr.mxu0 0.0
        %2327 = vmatpush2.msra.mxu0 0.0
        %2328 = vmatprep.subr.mxu0 0.0
        %2329 = vmatpush2.msra.mxu0 0.0
        %2330 = vmatprep.subr.mxu0 0.0
        %2331 = vmatpush2.msra.mxu0 0.0
        %2332 = vmatprep.subr.mxu0 0.0
        %2333 = vmatpush2.msra.mxu0 0.0
        %2334 = vmatprep.subr.mxu0 0.0
        %2335 = vmatpush2.msra.mxu0 0.0
        %2336 = vmatprep.mubr.f32.mxu0 0.0
        %2337 = vmatmul.mubr.f32.gmra.mxu0 %v2267
        %v2338 = vpop.f32.mrf.mxu0
        %v2339 = vadd.f32 0.0, %v2338
        %v2340 = vpop.f32.mrf.mxu0
        %v2341 = vadd.f32 0.0, %v2340
        %2342 = vdwg.mxu0
        %2343 = vmatprep.subr.mxu0 %v1727
        %2344 = vmatpush1.msra.mxu0 %v1726
        %2345 = vmatprep.subr.mxu0 %v1723
        %2346 = vmatpush1.msra.mxu0 %v1722
        %2347 = vmatprep.subr.mxu0 %v1719
        %2348 = vmatpush1.msra.mxu0 %v1718
        %2349 = vmatprep.subr.mxu0 %v1715
        %2350 = vmatpush1.msra.mxu0 %v1714
        %2351 = vmatprep.subr.mxu0 %v1711
        %2352 = vmatpush1.msra.mxu0 %v1710
        %2353 = vmatprep.subr.mxu0 %v1707
        %2354 = vmatpush1.msra.mxu0 %v1706
        %2355 = vmatprep.subr.mxu0 %v1703
        %2356 = vmatpush1.msra.mxu0 %v1702
        %2357 = vmatprep.subr.mxu0 %v1699
        %2358 = vmatpush1.msra.mxu0 %v1698
        %2359 = vmatprep.subr.mxu0 %v1695
        %2360 = vmatpush1.msra.mxu0 %v1694
        %2361 = vmatprep.subr.mxu0 %v1691
        %2362 = vmatpush1.msra.mxu0 %v1690
        %2363 = vmatprep.subr.mxu0 %v1687
        %2364 = vmatpush1.msra.mxu0 %v1686
        %2365 = vmatprep.subr.mxu0 %v1683
        %2366 = vmatpush1.msra.mxu0 %v1682
        %2367 = vmatprep.subr.mxu0 %v1679
        %2368 = vmatpush1.msra.mxu0 %v1678
        %2369 = vmatprep.subr.mxu0 %v1675
        %2370 = vmatpush1.msra.mxu0 %v1674
        %2371 = vmatprep.subr.mxu0 %v1671
        %2372 = vmatpush1.msra.mxu0 %v1670
        %2373 = vmatprep.subr.mxu0 %v1667
        %2374 = vmatpush1.msra.mxu0 %v1666
        %2375 = vmatprep.subr.mxu0 0.0
        %2376 = vmatpush2.msra.mxu0 0.0
        %2377 = vmatprep.subr.mxu0 0.0
        %2378 = vmatpush2.msra.mxu0 0.0
        %2379 = vmatprep.subr.mxu0 0.0
        %2380 = vmatpush2.msra.mxu0 0.0
        %2381 = vmatprep.subr.mxu0 0.0
        %2382 = vmatpush2.msra.mxu0 0.0
        %2383 = vmatprep.subr.mxu0 0.0
        %2384 = vmatpush2.msra.mxu0 0.0
        %2385 = vmatprep.subr.mxu0 0.0
        %2386 = vmatpush2.msra.mxu0 0.0
        %2387 = vmatprep.subr.mxu0 0.0
        %2388 = vmatpush2.msra.mxu0 0.0
        %2389 = vmatprep.subr.mxu0 0.0
        %2390 = vmatpush2.msra.mxu0 0.0
        %2391 = vmatprep.subr.mxu0 0.0
        %2392 = vmatpush2.msra.mxu0 0.0
        %2393 = vmatprep.subr.mxu0 0.0
        %2394 = vmatpush2.msra.mxu0 0.0
        %2395 = vmatprep.subr.mxu0 0.0
        %2396 = vmatpush2.msra.mxu0 0.0
        %2397 = vmatprep.subr.mxu0 0.0
        %2398 = vmatpush2.msra.mxu0 0.0
        %2399 = vmatprep.subr.mxu0 0.0
        %2400 = vmatpush2.msra.mxu0 0.0
        %2401 = vmatprep.subr.mxu0 0.0
        %2402 = vmatpush2.msra.mxu0 0.0
        %2403 = vmatprep.subr.mxu0 0.0
        %2404 = vmatpush2.msra.mxu0 0.0
        %2405 = vmatprep.subr.mxu0 0.0
        %2406 = vmatpush2.msra.mxu0 0.0
        %2407 = vmatprep.mubr.f32.mxu0 0.0
        %2408 = vmatmul.mubr.f32.gmra.mxu0 %v2267
        %v2409 = vpop.f32.mrf.mxu0
        %v2410 = vadd.f32 0.0, %v2409
        %v2411 = vpop.f32.mrf.mxu0
        %v2412 = vadd.f32 0.0, %v2411
        %2413 = vdwg.mxu0
        %v2414 = vadd.f32 %v2268, %v2339
        %v2415 = vadd.f32 %v2269, %v2341
        %v2416 = vadd.f32 %v2270, %v2410
        %v2417 = vadd.f32 %v2271, %v2412
        %v2418 = vxor.u32 %v2414, 2147483648
        %v2419 = vmul.f32 %v2418, 1.442695
        %v2420 = vpow.pop %v2419
        %v2421 = vadd.f32 %v2420, 1.0
        %v2422 = vrcp.pop %v2421
        %v2423 = vmul.f32 1.0, %v2422
        %v2424 = vxor.u32 %v2415, 2147483648
        %v2425 = vmul.f32 %v2424, 1.442695
        %v2426 = vpow.pop %v2425
        %v2427 = vadd.f32 %v2426, 1.0
        %v2428 = vrcp.pop %v2427
        %v2429 = vmul.f32 1.0, %v2428
        %v2430 = vtanh.pop %v2416
        %v2431 = vxor.u32 %v2417, 2147483648
        %v2432 = vmul.f32 %v2431, 1.442695
        %v2433 = vpow.pop %v2432
        %v2434 = vadd.f32 %v2433, 1.0
        %v2435 = vrcp.pop %v2434
        %v2436 = vmul.f32 1.0, %v2435
        %v2437 = vld [vmem:[%s1899] sm:$0xff]
        %v2438 = vmul.f32 %v2429, %v2437
        %v2439 = vmul.f32 %v2423, %v2430
        %v2440 = vadd.f32 %v2438, %v2439
        %v2441 = vtanh.pop %v2440
        %v2442 = vmul.f32 %v2436, %v2441
        %2443 = vst [vmem:[%s1899] sm:$0xff] %v2440
        %2444 = vst [vmem:[%s1728] sm:$0xff] %v2442
        %2445 = vst [vmem:[%s1375] sm:$0xff] %v2442
        %v2446 = vld [vmem:[#allocation5] sm:$0xff]
        %v2447 = vld [vmem:[#allocation5 + $0x8] sm:$0xff]
        %v2448 = vld [vmem:[#allocation5 + $0x10] sm:$0xff]
        %v2449 = vld [vmem:[#allocation5 + $0x18] sm:$0xff]
        %v2450 = vld [vmem:[#allocation10] sm:$0xff]
        %v2451 = vld [vmem:[#allocation10 + $0x8] sm:$0xff]
        %v2452 = vld [vmem:[#allocation10 + $0x10] sm:$0xff]
        %v2453 = vld [vmem:[#allocation10 + $0x18] sm:$0xff]
        %v2454 = vld [vmem:[#allocation10 + $0x20] sm:$0xff]
        %v2455 = vld [vmem:[#allocation10 + $0x28] sm:$0xff]
        %v2456 = vld [vmem:[#allocation10 + $0x30] sm:$0xff]
        %v2457 = vld [vmem:[#allocation10 + $0x38] sm:$0xff]
        %v2458 = vld [vmem:[#allocation10 + $0x40] sm:$0xff]
        %v2459 = vld [vmem:[#allocation10 + $0x48] sm:$0xff]
        %v2460 = vld [vmem:[#allocation10 + $0x50] sm:$0xff]
        %v2461 = vld [vmem:[#allocation10 + $0x58] sm:$0xff]
        %v2462 = vld [vmem:[#allocation10 + $0x60] sm:$0xff]
        %v2463 = vld [vmem:[#allocation10 + $0x68] sm:$0xff]
        %v2464 = vld [vmem:[#allocation10 + $0x70] sm:$0xff]
        %v2465 = vld [vmem:[#allocation10 + $0x78] sm:$0xff]
        %v2466 = vld [vmem:[%s5] sm:$0x1]
        %v2468 = vlaneseq
        %v2469 = vshrl.u32 %v2468, 7
        %v2470 = vsub.s32 0, %v2469
        %v2471 = vrot.slane %v2466, %v2470
        %2473 = vmatprep.subr.mxu0 0.0
        %2474 = vmatpush1.msra.mxu0 %v2465
        %2475 = vmatprep.subr.mxu0 0.0
        %2476 = vmatpush1.msra.mxu0 %v2464
        %2477 = vmatprep.subr.mxu0 0.0
        %2478 = vmatpush1.msra.mxu0 %v2463
        %2479 = vmatprep.subr.mxu0 0.0
        %2480 = vmatpush1.msra.mxu0 %v2462
        %2481 = vmatprep.subr.mxu0 0.0
        %2482 = vmatpush1.msra.mxu0 %v2461
        %2483 = vmatprep.subr.mxu0 0.0
        %2484 = vmatpush1.msra.mxu0 %v2460
        %2485 = vmatprep.subr.mxu0 0.0
        %2486 = vmatpush1.msra.mxu0 %v2459
        %2487 = vmatprep.subr.mxu0 0.0
        %2488 = vmatpush1.msra.mxu0 %v2458
        %2489 = vmatprep.subr.mxu0 0.0
        %2490 = vmatpush1.msra.mxu0 %v2457
        %2491 = vmatprep.subr.mxu0 0.0
        %2492 = vmatpush1.msra.mxu0 %v2456
        %2493 = vmatprep.subr.mxu0 0.0
        %2494 = vmatpush1.msra.mxu0 %v2455
        %2495 = vmatprep.subr.mxu0 0.0
        %2496 = vmatpush1.msra.mxu0 %v2454
        %2497 = vmatprep.subr.mxu0 0.0
        %2498 = vmatpush1.msra.mxu0 %v2453
        %2499 = vmatprep.subr.mxu0 0.0
        %2500 = vmatpush1.msra.mxu0 %v2452
        %2501 = vmatprep.subr.mxu0 0.0
        %2502 = vmatpush1.msra.mxu0 %v2451
        %2503 = vmatprep.subr.mxu0 0.0
        %2504 = vmatpush1.msra.mxu0 %v2450
        %2505 = vmatprep.subr.mxu0 0.0
        %2506 = vmatpush2.msra.mxu0 0.0
        %2507 = vmatprep.subr.mxu0 0.0
        %2508 = vmatpush2.msra.mxu0 0.0
        %2509 = vmatprep.subr.mxu0 0.0
        %2510 = vmatpush2.msra.mxu0 0.0
        %2511 = vmatprep.subr.mxu0 0.0
        %2512 = vmatpush2.msra.mxu0 0.0
        %2513 = vmatprep.subr.mxu0 0.0
        %2514 = vmatpush2.msra.mxu0 0.0
        %2515 = vmatprep.subr.mxu0 0.0
        %2516 = vmatpush2.msra.mxu0 0.0
        %2517 = vmatprep.subr.mxu0 0.0
        %2518 = vmatpush2.msra.mxu0 0.0
        %2519 = vmatprep.subr.mxu0 0.0
        %2520 = vmatpush2.msra.mxu0 0.0
        %2521 = vmatprep.subr.mxu0 0.0
        %2522 = vmatpush2.msra.mxu0 0.0
        %2523 = vmatprep.subr.mxu0 0.0
        %2524 = vmatpush2.msra.mxu0 0.0
        %2525 = vmatprep.subr.mxu0 0.0
        %2526 = vmatpush2.msra.mxu0 0.0
        %2527 = vmatprep.subr.mxu0 0.0
        %2528 = vmatpush2.msra.mxu0 0.0
        %2529 = vmatprep.subr.mxu0 0.0
        %2530 = vmatpush2.msra.mxu0 0.0
        %2531 = vmatprep.subr.mxu0 0.0
        %2532 = vmatpush2.msra.mxu0 0.0
        %2533 = vmatprep.subr.mxu0 0.0
        %2534 = vmatpush2.msra.mxu0 0.0
        %2535 = vmatprep.subr.mxu0 0.0
        %2536 = vmatpush2.msra.mxu0 0.0
        %2537 = vmatprep.mubr.f32.mxu0 0.0
        %2538 = vmatmul.mubr.f32.gmra.mxu0 %v2446
        %v2539 = vpop.f32.mrf.mxu0
        %v2540 = vadd.f32 %v2471, %v2539
        %v2541 = vpop.f32.mrf.mxu0
        %2542 = vmatprep.mubr.f32.mxu0 0.0
        %2543 = vmatmul.mubr.f32.gmra.mxu0 %v2447
        %v2544 = vpop.f32.mrf.mxu0
        %v2545 = vadd.f32 %v2471, %v2544
        %v2546 = vpop.f32.mrf.mxu0
        %2547 = vmatprep.mubr.f32.mxu0 0.0
        %2548 = vmatmul.mubr.f32.gmra.mxu0 %v2448
        %v2549 = vpop.f32.mrf.mxu0
        %v2550 = vadd.f32 %v2471, %v2549
        %v2551 = vpop.f32.mrf.mxu0
        %2552 = vmatprep.mubr.f32.mxu0 0.0
        %2553 = vmatmul.mubr.f32.gmra.mxu0 %v2449
        %v2554 = vpop.f32.mrf.mxu0
        %v2555 = vadd.f32 %v2471, %v2554
        %v2556 = vpop.f32.mrf.mxu0
        %2557 = vdwg.mxu0
        %2558 = vst [vmem:[%s297] sm:$0xff] %v2540
        %2559 = vst [vmem:[%s297 + $0x8] sm:$0xff] %v2545
        %2560 = vst [vmem:[%s297 + $0x10] sm:$0xff] %v2550
        %2561 = vst [vmem:[%s297 + $0x18] sm:$0xff] %v2555
        %s2562 = smul.u32 4, %s19
        %p2563 = scmp.lt.s32.totalorder %s2562, 7
        %s2564 = scalar_select %p2563, %s2562, 7
        %s2565 = smul.addr %s2564, 8
        %s2566 = scalar_lea.vmem %s6, %s2565
        // Predicated region
        $region61: #{rnn_model_forward.1} parent=43 // pred_check
          %p2567 = pneg %p168
        $region62: #{rnn_model_forward.1} parent=43 // pred_check_branch
          %2569 = sbr.rel (%p2567) target = $region64
        $region63: #{rnn_model_forward.1} parent=43 // pred_region
          %s2570 = smul.u32 4, %s19
        $region64: #{rnn_model_forward.1} parent=43 // pred_fallthru
          _
      $region44: #{rnn_model_forward.1} parent=5 // pred_fallthru
        _
      %p2571 = scmp.le.s32.totalorder 2, %s14
      // Predicated region
      $region65: #{rnn_model_forward.1} parent=5 // pred_check
        %p2572 = pneg %p2571
      $region66: #{rnn_model_forward.1} parent=5 // pred_check_branch
        %2574 = sbr.rel (%p2572) target = $region68
      $region67: #{rnn_model_forward.1} parent=5 // pred_region
        %s2575 = ssub.s32 %s14, 2
        // Predicated region
        $region69: #{rnn_model_forward.1} parent=67 // pred_check
          %p2576 = pneg %p174
        $region70: #{rnn_model_forward.1} parent=67 // pred_check_branch
          %2578 = sbr.rel (%p2576) target = $region72
        $region71: #{rnn_model_forward.1} parent=67 // pred_region
          %s2579 = smul.u32 4, %s20
          %p2580 = scmp.lt.s32.totalorder %s2579, 7
          %s2581 = scalar_select %p2580, %s2579, 7
          %s2582 = smul.addr %s2581, 8
          %s2583 = scalar_lea.vmem %s6, %s2582
        $region72: #{rnn_model_forward.1} parent=67 // pred_fallthru
          _
      $region68: #{rnn_model_forward.1} parent=5 // pred_fallthru
        _
    $region6: #{rnn_model_forward.1} parent=1 // loop_footer
      %s18 = sadd.s32 1, %s14
    $region7: #{rnn_model_forward.1} parent=1 // loop_footer_branch
      %13 = sbr.rel target = $region3
    $region8: #{rnn_model_forward.1} parent=1 // loop_exit
      _
    %2584 = vsyncpa [#allocation7], 1
    %s2585 = scalar_lea.sflag [#allocation7], 1
    %2586 = vsyncpa %s2585, 1
    %2587 = vsyncpa [#allocation9], 1

</llo_original>
